<compile_context>
chip_gen: v7x
topology: tpu7x:2x2x1
jax: 0.10.0
libtpu: 0.0.40
codegen_flags: <defaults>
</compile_context>

<pallas_src>
import math

import jax
import jax.numpy as jnp
from jax import lax
from jax.experimental import pallas as pl
from jax.experimental.pallas import tpu as pltpu

EPS = 1e-5  # PyTorch LayerNorm default
_INV_SQRT2 = 1.0 / math.sqrt(2.0)


def _round_up(x, m):
    return ((x + m - 1) // m) * m


def _vmem_capacity_bytes():
    """Per-core VMEM capacity; conservative fallback if the query fails."""
    try:
        info = pltpu.get_tpu_info()
        for name in ("vmem_capacity_bytes", "vmem_bytes", "vmem_size_bytes",
                     "vmem_capacity"):
            v = getattr(info, name, None)
            if v:
                return int(v)
    except Exception:
        pass
    return 64 << 20  # v7x per-TC physical; safe lower bound for all gens


def _vmem_footprint(tm, dim, inner, x_bytes, o_bytes):
    """Estimated peak VMEM for one grid step with resident (single-buffer) weights."""
    io = 2 * tm * dim * (x_bytes + o_bytes)            # double-buffered x / out tiles
    weights = 3 * dim * inner * 2                      # w_val + w_gate + w2 (bf16, 1 buffer)
    ln = 2 * (dim + inner) * 4                         # gammas/betas (f32, 1 buffer)
    # live f32 intermediates per row: x/xn (2*dim) + val/gate/h/hn (4*inner),
    # plus the bf16 matmul input copies xn_bf (dim) and hn_bf (inner).
    temps = tm * ((2 * dim + 4 * inner) * 4 + (dim + inner) * 2)
    return io + weights + ln + temps


def _choose_tm(M, dim, inner, x_bytes, o_bytes, budget, tm_max):
    M8 = _round_up(max(M, 1), 8)
    if M8 <= 8:
        rows_cap = 8
    else:
        # Keep at least 2 grid steps so the "parallel" row axis can be sharded
        # across both TensorCores on v7x (and amortize per-step overhead).
        rows_cap = _round_up(pl.cdiv(M, 2), 8)
    rows_cap = min(rows_cap, _round_up(max(tm_max, 8), 8))
    for cand in (1024, 512, 256, 128, 64, 32, 16, 8):
        if cand <= rows_cap and _vmem_footprint(cand, dim, inner, x_bytes,
                                                o_bytes) <= budget:
            return cand
    return 8


def _layernorm(x, gamma, beta):
    mu = jnp.mean(x, axis=-1, keepdims=True)
    var = jnp.mean((x - mu) ** 2, axis=-1, keepdims=True)
    return (x - mu) * lax.rsqrt(var + EPS) * gamma + beta


def feedforward_kernel(x_ref, g1_ref, b1_ref, wv_ref, wg_ref, g2_ref, b2_ref,
                       w2_ref, o_ref):
    # LayerNorm(dim) in f32.
    x = x_ref[...].astype(jnp.float32)
    xn = _layernorm(x, g1_ref[...].astype(jnp.float32),
                    b1_ref[...].astype(jnp.float32))

    # Linear(dim, 2*inner, bias=False) as two lane-aligned bf16 MXU dots
    # (value / gate column halves of the fused weight), f32 accumulation.
    xn_bf = xn.astype(jnp.bfloat16)
    val = jnp.dot(xn_bf, wv_ref[...], preferred_element_type=jnp.float32)
    gate = jnp.dot(xn_bf, wg_ref[...], preferred_element_type=jnp.float32)

    # GEGLU: value * gelu(gate), exact erf GELU (torch default).
    # TODO(synk): tanh-approx GELU would move this off the VALU onto the EUP
    # slot if strict torch parity is not required.
    gate = 0.5 * gate * (1.0 + lax.erf(gate * _INV_SQRT2))
    h = val * gate

    # LayerNorm(inner) in f32.  Dropout(p=0.0) is identity.
    hn = _layernorm(h, g2_ref[...].astype(jnp.float32),
                    b2_ref[...].astype(jnp.float32))

    # Linear(inner, dim, bias=False), bf16 inputs, f32 accumulation.
    o_ref[...] = jnp.dot(hn.astype(jnp.bfloat16), w2_ref[...],
                         preferred_element_type=jnp.float32).astype(o_ref.dtype)


def feedforward(feats, coors, params, *, tm_max=1024):
    """Pallas implementation of FeedForward.forward: returns (net(feats), 0)."""
    g1, b1, w1, g2, b2, w2 = params
    B, N, dim = feats.shape
    inner = w2.shape[0]
    M = B * N

    x2d = feats.reshape(M, dim)  # no-copy reshape

    # Split the fused Linear(dim, 2*inner) weight into value / gate halves
    # (GEGLU chunk order: value first, gate second) and cast weights to bf16.
    w_val = w1[:, :inner].astype(jnp.bfloat16)
    w_gate = w1[:, inner:].astype(jnp.bfloat16)
    w2_bf = w2.astype(jnp.bfloat16)

    # Generation-aware VMEM budget: physical capacity minus headroom.
    cap = _vmem_capacity_bytes()
    headroom = (8 << 20) if cap <= (64 << 20) else (16 << 20)
    budget = max(cap - headroom, 16 << 20)

    x_bytes = x2d.dtype.itemsize
    o_bytes = feats.dtype.itemsize
    tm = _choose_tm(M, dim, inner, x_bytes, o_bytes, budget, tm_max)
    grid = (pl.cdiv(M, tm),)  # ragged last block handled by Pallas (no host pad)

    # TODO(synk): for production widths where 3*dim*inner bf16 outgrows VMEM,
    # stream weight tiles over an extra (arbitrary) grid axis instead of
    # keeping them fully resident.

    vmem = pltpu.MemorySpace.VMEM
    out2d = pl.pallas_call(
        feedforward_kernel,
        out_shape=jax.ShapeDtypeStruct((M, dim), feats.dtype),
        grid=grid,
        in_specs=[
            pl.BlockSpec((tm, dim), lambda i: (i, 0)),   # x rows (pipelined)
            pl.BlockSpec(memory_space=vmem),             # ln1 gamma (resident)
            pl.BlockSpec(memory_space=vmem),             # ln1 beta
            pl.BlockSpec(memory_space=vmem),             # w_val  (bf16, resident)
            pl.BlockSpec(memory_space=vmem),             # w_gate (bf16, resident)
            pl.BlockSpec(memory_space=vmem),             # ln2 gamma
            pl.BlockSpec(memory_space=vmem),             # ln2 beta
            pl.BlockSpec(memory_space=vmem),             # w2     (bf16, resident)
        ],
        out_specs=pl.BlockSpec((tm, dim), lambda i: (i, 0)),
        compiler_params=pltpu.CompilerParams(
            dimension_semantics=("parallel",),
            vmem_limit_bytes=int(budget),
        ),
    )(x2d, g1, b1, w_val, w_gate, g2, b2, w2_bf)

    return out2d.reshape(B, N, dim), 0


def init_params(key, dim, mult=4, dtype=jnp.float32):
    """Deterministic synthetic parameters matching the module's shapes."""
    inner = int(dim * mult * 2 / 3)
    k1, k2, k3, k4 = jax.random.split(key, 4)
    g1 = jnp.ones((1, dim), dtype) + 0.01 * jax.random.normal(k1, (1, dim), dtype)
    b1 = jnp.zeros((1, dim), dtype)
    w1 = jax.random.normal(k2, (dim, 2 * inner), dtype) / math.sqrt(dim)
    g2 = jnp.ones((1, inner), dtype) + 0.01 * jax.random.normal(k3, (1, inner), dtype)
    b2 = jnp.zeros((1, inner), dtype)
    w2 = jax.random.normal(k4, (inner, dim), dtype) / math.sqrt(inner)
    return (g1, b1, w1, g2, b2, w2)


def _reference(feats, params):
    """Pure-JAX f32 reference of the PyTorch forward, for a sanity check."""
    g1, b1, w1, g2, b2, w2 = params
    x = _layernorm(feats.astype(jnp.float32), g1[0], b1[0])
    y = x @ w1
    inner = y.shape[-1] // 2
    val, gate = y[..., :inner], y[..., inner:]
    h = val * (0.5 * gate * (1.0 + lax.erf(gate * _INV_SQRT2)))
    hn = _layernorm(h, g2[0], b2[0])
    return hn @ w2


if __name__ == "__main__":
    # dim and inner multiples of 256: dim=256, mult=3 -> inner = int(256*3*2/3) = 512.
    dim, mult = 256, 3
    B, N = 2, 256                       # M = 512 rows -> 2 grid steps of 256 rows
    key = jax.random.PRNGKey(0)
    kx, kp = jax.random.split(key)

    feats = jax.random.normal(kx, (B, N, dim), jnp.float32)
    params = init_params(kp, dim, mult)

    out, zero = feedforward(feats, None, params)
    out = jax.block_until_ready(out)

    ref = _reference(feats, params)
    assert out.shape == (B, N, dim) and zero == 0
    # bf16 matmul inputs (f32 accumulation) vs pure-f32 reference -> loosened tol.
    err = float(jnp.max(jnp.abs(out - ref)))
    assert jnp.allclose(out, ref, atol=5e-2, rtol=5e-2), err
    print("KERNEL_OK")
</pallas_src>

<mosaic_0001>
module attributes {stable_mosaic.version = 11 : i64} {
  func.func @feedforward_kernel(%arg0: i32, %arg1: memref<256x256xf32, #tpu.memory_space<vmem>>, %arg2: memref<1x256xf32, #tpu.memory_space<vmem>>, %arg3: memref<1x256xf32, #tpu.memory_space<vmem>>, %arg4: memref<256x512xbf16, #tpu.memory_space<vmem>>, %arg5: memref<256x512xbf16, #tpu.memory_space<vmem>>, %arg6: memref<1x512xf32, #tpu.memory_space<vmem>>, %arg7: memref<1x512xf32, #tpu.memory_space<vmem>>, %arg8: memref<512x256xbf16, #tpu.memory_space<vmem>>, %arg9: memref<256x256xf32, #tpu.memory_space<vmem>>) attributes {dimension_semantics = [#tpu.dimension_semantics<parallel>], iteration_bounds = array<i64: 2>, scalar_prefetch = 0 : i64, scratch_operands = 0 : i64, tpu.core_type = #tpu.core_type<tc>, window_params = [{transform_indices = @transform_0, window_bounds = array<i64: 256, 256>}, {pipeline_mode = #tpu.pipeline_mode<synchronous>, transform_indices = @transform_1, window_bounds = array<i64: 1, 256>}, {pipeline_mode = #tpu.pipeline_mode<synchronous>, transform_indices = @transform_2, window_bounds = array<i64: 1, 256>}, {pipeline_mode = #tpu.pipeline_mode<synchronous>, transform_indices = @transform_3, window_bounds = array<i64: 256, 512>}, {pipeline_mode = #tpu.pipeline_mode<synchronous>, transform_indices = @transform_4, window_bounds = array<i64: 256, 512>}, {pipeline_mode = #tpu.pipeline_mode<synchronous>, transform_indices = @transform_5, window_bounds = array<i64: 1, 512>}, {pipeline_mode = #tpu.pipeline_mode<synchronous>, transform_indices = @transform_6, window_bounds = array<i64: 1, 512>}, {pipeline_mode = #tpu.pipeline_mode<synchronous>, transform_indices = @transform_7, window_bounds = array<i64: 512, 256>}, {transform_indices = @transform_8, window_bounds = array<i64: 256, 256>}]} {
    %c0 = arith.constant 0 : index
    %c0_0 = arith.constant 0 : index
    %0 = vector.load %arg1[%c0, %c0_0] : memref<256x256xf32, #tpu.memory_space<vmem>>, vector<256x256xf32>
    %c0_1 = arith.constant 0 : index
    %c0_2 = arith.constant 0 : index
    %1 = vector.load %arg2[%c0_1, %c0_2] : memref<1x256xf32, #tpu.memory_space<vmem>>, vector<1x256xf32>
    %c0_3 = arith.constant 0 : index
    %c0_4 = arith.constant 0 : index
    %2 = vector.load %arg3[%c0_3, %c0_4] : memref<1x256xf32, #tpu.memory_space<vmem>>, vector<1x256xf32>
    %cst = arith.constant dense<0.000000e+00> : vector<256xf32>
    %3 = vector.multi_reduction <add>, %0, %cst [1] : vector<256x256xf32> to vector<256xf32>
    %4 = vector.shape_cast %3 : vector<256xf32> to vector<256x1xf32>
    %cst_5 = arith.constant 2.560000e+02 : f32
    %5 = vector.broadcast %cst_5 : f32 to vector<256x1xf32>
    %6 = arith.divf %4, %5 : vector<256x1xf32>
    %7 = vector.broadcast %6 : vector<256x1xf32> to vector<256x256xf32>
    %8 = arith.subf %0, %7 : vector<256x256xf32>
    %9 = arith.mulf %8, %8 : vector<256x256xf32>
    %cst_6 = arith.constant dense<0.000000e+00> : vector<256xf32>
    %10 = vector.multi_reduction <add>, %9, %cst_6 [1] : vector<256x256xf32> to vector<256xf32>
    %11 = vector.shape_cast %10 : vector<256xf32> to vector<256x1xf32>
    %cst_7 = arith.constant 2.560000e+02 : f32
    %12 = vector.broadcast %cst_7 : f32 to vector<256x1xf32>
    %13 = arith.divf %11, %12 : vector<256x1xf32>
    %14 = vector.broadcast %6 : vector<256x1xf32> to vector<256x256xf32>
    %15 = arith.subf %0, %14 : vector<256x256xf32>
    %cst_8 = arith.constant 9.99999974E-6 : f32
    %16 = vector.broadcast %cst_8 : f32 to vector<256x1xf32>
    %17 = arith.addf %13, %16 : vector<256x1xf32>
    %18 = math.rsqrt %17 : vector<256x1xf32>
    %19 = vector.broadcast %18 : vector<256x1xf32> to vector<256x256xf32>
    %20 = arith.mulf %15, %19 : vector<256x256xf32>
    %21 = vector.broadcast %1 : vector<1x256xf32> to vector<256x256xf32>
    %22 = arith.mulf %20, %21 : vector<256x256xf32>
    %23 = vector.broadcast %2 : vector<1x256xf32> to vector<256x256xf32>
    %24 = arith.addf %22, %23 : vector<256x256xf32>
    %25 = arith.truncf %24 : vector<256x256xf32> to vector<256x256xbf16>
    %c0_9 = arith.constant 0 : index
    %c0_10 = arith.constant 0 : index
    %26 = vector.load %arg4[%c0_9, %c0_10] : memref<256x512xbf16, #tpu.memory_space<vmem>>, vector<256x512xbf16>
    %cst_11 = arith.constant dense<0.000000e+00> : vector<256x512xf32>
    %27 = tpu.matmul %25, %26, %cst_11 {dimension_numbers = #tpu.dot_dimension_numbers<[1], [0], [0], [1], [0, 0, 1, 1], [], []>} : vector<256x256xbf16>, vector<256x512xbf16>, vector<256x512xf32> -> vector<256x512xf32>
    %c0_12 = arith.constant 0 : index
    %c0_13 = arith.constant 0 : index
    %28 = vector.load %arg5[%c0_12, %c0_13] : memref<256x512xbf16, #tpu.memory_space<vmem>>, vector<256x512xbf16>
    %cst_14 = arith.constant dense<0.000000e+00> : vector<256x512xf32>
    %29 = tpu.matmul %25, %28, %cst_14 {dimension_numbers = #tpu.dot_dimension_numbers<[1], [0], [0], [1], [0, 0, 1, 1], [], []>} : vector<256x256xbf16>, vector<256x512xbf16>, vector<256x512xf32> -> vector<256x512xf32>
    %cst_15 = arith.constant 5.000000e-01 : f32
    %30 = vector.broadcast %cst_15 : f32 to vector<256x512xf32>
    %31 = arith.mulf %30, %29 : vector<256x512xf32>
    %cst_16 = arith.constant 0.707106769 : f32
    %32 = vector.broadcast %cst_16 : f32 to vector<256x512xf32>
    %33 = arith.mulf %29, %32 : vector<256x512xf32>
    %34 = math.erf %33 : vector<256x512xf32>
    %cst_17 = arith.constant 1.000000e+00 : f32
    %35 = vector.broadcast %cst_17 : f32 to vector<256x512xf32>
    %36 = arith.addf %35, %34 : vector<256x512xf32>
    %37 = arith.mulf %31, %36 : vector<256x512xf32>
    %38 = arith.mulf %27, %37 : vector<256x512xf32>
    %c0_18 = arith.constant 0 : index
    %c0_19 = arith.constant 0 : index
    %39 = vector.load %arg6[%c0_18, %c0_19] : memref<1x512xf32, #tpu.memory_space<vmem>>, vector<1x512xf32>
    %c0_20 = arith.constant 0 : index
    %c0_21 = arith.constant 0 : index
    %40 = vector.load %arg7[%c0_20, %c0_21] : memref<1x512xf32, #tpu.memory_space<vmem>>, vector<1x512xf32>
    %cst_22 = arith.constant dense<0.000000e+00> : vector<256xf32>
    %41 = vector.multi_reduction <add>, %38, %cst_22 [1] : vector<256x512xf32> to vector<256xf32>
    %42 = vector.shape_cast %41 : vector<256xf32> to vector<256x1xf32>
    %cst_23 = arith.constant 5.120000e+02 : f32
    %43 = vector.broadcast %cst_23 : f32 to vector<256x1xf32>
    %44 = arith.divf %42, %43 : vector<256x1xf32>
    %45 = vector.broadcast %44 : vector<256x1xf32> to vector<256x512xf32>
    %46 = arith.subf %38, %45 : vector<256x512xf32>
    %47 = arith.mulf %46, %46 : vector<256x512xf32>
    %cst_24 = arith.constant dense<0.000000e+00> : vector<256xf32>
    %48 = vector.multi_reduction <add>, %47, %cst_24 [1] : vector<256x512xf32> to vector<256xf32>
    %49 = vector.shape_cast %48 : vector<256xf32> to vector<256x1xf32>
    %cst_25 = arith.constant 5.120000e+02 : f32
    %50 = vector.broadcast %cst_25 : f32 to vector<256x1xf32>
    %51 = arith.divf %49, %50 : vector<256x1xf32>
    %52 = vector.broadcast %44 : vector<256x1xf32> to vector<256x512xf32>
    %53 = arith.subf %38, %52 : vector<256x512xf32>
    %cst_26 = arith.constant 9.99999974E-6 : f32
    %54 = vector.broadcast %cst_26 : f32 to vector<256x1xf32>
    %55 = arith.addf %51, %54 : vector<256x1xf32>
    %56 = math.rsqrt %55 : vector<256x1xf32>
    %57 = vector.broadcast %56 : vector<256x1xf32> to vector<256x512xf32>
    %58 = arith.mulf %53, %57 : vector<256x512xf32>
    %59 = vector.broadcast %39 : vector<1x512xf32> to vector<256x512xf32>
    %60 = arith.mulf %58, %59 : vector<256x512xf32>
    %61 = vector.broadcast %40 : vector<1x512xf32> to vector<256x512xf32>
    %62 = arith.addf %60, %61 : vector<256x512xf32>
    %63 = arith.truncf %62 : vector<256x512xf32> to vector<256x512xbf16>
    %c0_27 = arith.constant 0 : index
    %c0_28 = arith.constant 0 : index
    %64 = vector.load %arg8[%c0_27, %c0_28] : memref<512x256xbf16, #tpu.memory_space<vmem>>, vector<512x256xbf16>
    %cst_29 = arith.constant dense<0.000000e+00> : vector<256x256xf32>
    %65 = tpu.matmul %63, %64, %cst_29 {dimension_numbers = #tpu.dot_dimension_numbers<[1], [0], [0], [1], [0, 0, 1, 1], [], []>} : vector<256x512xbf16>, vector<512x256xbf16>, vector<256x256xf32> -> vector<256x256xf32>
    %c0_30 = arith.constant 0 : index
    %c0_31 = arith.constant 0 : index
    %66 = vector.load %arg9[%c0_30, %c0_31] : memref<256x256xf32, #tpu.memory_space<vmem>>, vector<256x256xf32>
    tpu.vector_store %arg9[%c0_30, %c0_31], %65 {strides = array<i32>} : memref<256x256xf32, #tpu.memory_space<vmem>>, vector<256x256xf32>,
    return
  }
  func.func @transform_0(%arg0: i32) -> (i32, i32) {
    %c0_i32 = arith.constant 0 : i32
    %c0_i32_0 = arith.constant 0 : i32
    return %arg0, %c0_i32 : i32, i32
  }
  func.func @transform_1(%arg0: i32) -> (i32, i32) {
    %c0_i32 = arith.constant 0 : i32
    %c0_i32_0 = arith.constant 0 : i32
    %c0_i32_1 = arith.constant 0 : i32
    return %c0_i32, %c0_i32_0 : i32, i32
  }
  func.func @transform_2(%arg0: i32) -> (i32, i32) {
    %c0_i32 = arith.constant 0 : i32
    %c0_i32_0 = arith.constant 0 : i32
    %c0_i32_1 = arith.constant 0 : i32
    return %c0_i32, %c0_i32_0 : i32, i32
  }
  func.func @transform_3(%arg0: i32) -> (i32, i32) {
    %c0_i32 = arith.constant 0 : i32
    %c0_i32_0 = arith.constant 0 : i32
    %c0_i32_1 = arith.constant 0 : i32
    return %c0_i32, %c0_i32_0 : i32, i32
  }
  func.func @transform_4(%arg0: i32) -> (i32, i32) {
    %c0_i32 = arith.constant 0 : i32
    %c0_i32_0 = arith.constant 0 : i32
    %c0_i32_1 = arith.constant 0 : i32
    return %c0_i32, %c0_i32_0 : i32, i32
  }
  func.func @transform_5(%arg0: i32) -> (i32, i32) {
    %c0_i32 = arith.constant 0 : i32
    %c0_i32_0 = arith.constant 0 : i32
    %c0_i32_1 = arith.constant 0 : i32
    return %c0_i32, %c0_i32_0 : i32, i32
  }
  func.func @transform_6(%arg0: i32) -> (i32, i32) {
    %c0_i32 = arith.constant 0 : i32
    %c0_i32_0 = arith.constant 0 : i32
    %c0_i32_1 = arith.constant 0 : i32
    return %c0_i32, %c0_i32_0 : i32, i32
  }
  func.func @transform_7(%arg0: i32) -> (i32, i32) {
    %c0_i32 = arith.constant 0 : i32
    %c0_i32_0 = arith.constant 0 : i32
    %c0_i32_1 = arith.constant 0 : i32
    return %c0_i32, %c0_i32_0 : i32, i32
  }
  func.func @transform_8(%arg0: i32) -> (i32, i32) {
    %c0_i32 = arith.constant 0 : i32
    %c0_i32_0 = arith.constant 0 : i32
    return %arg0, %c0_i32 : i32, i32
  }
}

</mosaic_0001>

<llo_original>
// kernel: tpu_custom_call.1
$region0: #{tpu_custom_call.1}
  #allocation0 [shape = 'u32[]', space=smem, size = 0x4, offset = 0x4, fixed_abs, tag = 'smem constant byte address 0x4 - core index']
  #allocation1 [shape = 'u32[144,128]{1,0:T(1,128)}', space=vmem, size = 0x12000, scoped, tag = 'internal scratch']
  %s0 = inlined_call_operand.hbm [shape: f32[512,256], index: 0, kind: input, shape index: {}]
  %s1 = inlined_call_operand.vmem [shape: f32[1,256], index: 1, kind: input, shape index: {}]
  %s2 = inlined_call_operand.hbm [shape: f32[1,256], index: 2, kind: input, shape index: {}]
  %s3 = inlined_call_operand.hbm [shape: bf16[256,512], index: 3, kind: input, shape index: {}]
  %s4 = inlined_call_operand.hbm [shape: bf16[256,512], index: 4, kind: input, shape index: {}]
  %s5 = inlined_call_operand.vmem [shape: f32[1,512], index: 5, kind: input, shape index: {}]
  %s6 = inlined_call_operand.vmem [shape: f32[1,512], index: 6, kind: input, shape index: {}]
  %s7 = inlined_call_operand.hbm [shape: bf16[512,256], index: 7, kind: input, shape index: {}]
  %s8 = inlined_call_operand.hbm [shape: f32[512,256], index: 8, kind: output, shape index: {}]
  %s9 = sld [smem:[#allocation0]]
  $region85: #{tpu_custom_call.1} parent=0
    _
  %s11 = ssub.s32 1, %s9
  %s12 = scalar_select 0, %s11, %s9
  $region1: #{tpu_custom_call.1} parent=0
    #allocation2 [shape = 'u8[524288]{0}', space=vmem, size = 0x80000, scoped, tag = 'input window, operand 0']
    #allocation3 [shape = 's32[2]{0}', space=sflag, size = 0x8, scoped, tag = 'scoped memory for tpu_custom_call.1']
    #allocation4 [shape = 's32[2]{0}', space=sflag, size = 0x8, scoped, tag = 'scoped memory for tpu_custom_call.1']
    #allocation5 [shape = 'u8[1024]{0}', space=vmem, size = 0x400, scoped, tag = 'input window, operand 2, single buffered']
    #allocation6 [shape = 's32[1]{0}', space=sflag, size = 0x4, scoped, tag = 'scoped memory for tpu_custom_call.1']
    #allocation7 [shape = 'u8[262144]{0}', space=vmem, size = 0x40000, scoped, tag = 'input window, operand 3, single buffered']
    #allocation8 [shape = 'u8[262144]{0}', space=vmem, size = 0x40000, scoped, tag = 'input window, operand 4, single buffered']
    #allocation9 [shape = 's32[1]{0}', space=sflag, size = 0x4, scoped, tag = 'scoped memory for tpu_custom_call.1']
    #allocation10 [shape = 'u8[262144]{0}', space=vmem, size = 0x40000, scoped, tag = 'input window, operand 7, single buffered']
    #allocation11 [shape = 'u8[524288]{0}', space=vmem, size = 0x80000, scoped, tag = 'output window, operand 0']
    %13 = vsyncpa [#allocation3], 0
    %s14 = scalar_lea.sflag [#allocation3], 1
    %15 = vsyncpa %s14, 0
    %16 = vsyncpa [#allocation6], 0
    %17 = vsyncpa [#allocation9], 0
    %18 = vsyncpa [#allocation4], 0
    %s19 = scalar_lea.sflag [#allocation4], 1
    %20 = vsyncpa %s19, 0
    loop: start=0, step=1, limit=4
    $region2: #{tpu_custom_call.1} parent=1 // loop_pre_header
      _
    $region3: #{tpu_custom_call.1} parent=1 // loop_header
      %s22 = sphi 0, %s26
      %p23 = scmp.ge.s32.totalorder %s22, 4
      %s32 = sphi 0, %s34
      %s35 = sphi 0, %s32
      %s36 = sphi 0, %s35
      %s52 = sphi 0, %s36
      %s56 = sphi 0, %s56
      %s58 = sphi 0, %s56
      %s59 = sphi 0, %s58
      %s73 = sphi 0, %s59
      %s77 = sphi 0, %s77
      %s79 = sphi 0, %s77
      %s80 = sphi 0, %s79
      %s94 = sphi 0, %s80
      %s98 = sphi 0, %s98
      %s100 = sphi 0, %s98
      %s101 = sphi 0, %s100
      %s115 = sphi 0, %s101
      %s119 = sphi 0, %s119
      %s121 = sphi 0, %s119
      %s122 = sphi 0, %s121
      %s136 = sphi 0, %s122
      %s140 = sphi 0, %s140
      %s142 = sphi 0, %s140
      %s143 = sphi 0, %s142
      %s157 = sphi 0, %s143
      %s161 = sphi 0, %s161
      %s163 = sphi 0, %s161
      %s164 = sphi 0, %s163
      %s178 = sphi 0, %s164
      %s182 = sphi 0, %s182
      %s184 = sphi 0, %s182
      %s185 = sphi 0, %s184
      %s199 = sphi 0, %s185
      %s205 = sphi 0, %s207
      %s208 = sphi 0, %s205
      %s209 = sphi 0, %s208
      %s225 = sphi 0, %s209
    $region4: #{tpu_custom_call.1} parent=1 // loop_header_branch
      %25 = sbr.rel (%p23) target = $region8
    $region5: #{tpu_custom_call.1} parent=1 // loop_body
      %s27 = ssub.s32 %s22, 1
      %s28 = ssub.s32 %s22, 2
      %s29 = sadd.s32 %s22, 1
      %s30 = ssub.s32 %s22, %s29
      %p31 = scmp.eq.s32.totalorder %s30, 0
      %s33 = sadd.s32 %s32, 1
      %s34 = scalar_select %p31, %s32, %s33
      %p37 = pneg %p31
      %p38 = scmp.eq.s32.totalorder %s22, 1
      %p39 = por %p37, %p38
      %p40 = scmp.ne.s32.totalorder %s32, %s35
      %p41 = scmp.eq.s32.totalorder %s22, 0
      %p42 = por %p40, %p41
      %p43 = scmp.ne.s32.totalorder %s32, %s35
      %p44 = scmp.eq.s32.totalorder %s27, 1
      %p45 = por %p43, %p44
      %p46 = scmp.ne.s32.totalorder %s35, %s36
      %p47 = scmp.eq.s32.totalorder %s27, 0
      %p48 = por %p46, %p47
      %p49 = scmp.ne.s32.totalorder %s35, %s36
      %p50 = scmp.eq.s32.totalorder %s28, 1
      %p51 = por %p49, %p50
      %p53 = scmp.ne.s32.totalorder %s36, %s52
      %p54 = scmp.eq.s32.totalorder %s28, 0
      %p55 = por %p53, %p54
      %s57 = sadd.s32 %s56, 1
      %p60 = scmp.eq.s32.totalorder %s22, 1
      %p61 = scmp.ne.s32.totalorder %s56, %s58
      %p62 = scmp.eq.s32.totalorder %s22, 0
      %p63 = por %p61, %p62
      %p64 = scmp.ne.s32.totalorder %s56, %s58
      %p65 = scmp.eq.s32.totalorder %s27, 1
      %p66 = por %p64, %p65
      %p67 = scmp.ne.s32.totalorder %s58, %s59
      %p68 = scmp.eq.s32.totalorder %s27, 0
      %p69 = por %p67, %p68
      %p70 = scmp.ne.s32.totalorder %s58, %s59
      %p71 = scmp.eq.s32.totalorder %s28, 1
      %p72 = por %p70, %p71
      %p74 = scmp.ne.s32.totalorder %s59, %s73
      %p75 = scmp.eq.s32.totalorder %s28, 0
      %p76 = por %p74, %p75
      %s78 = sadd.s32 %s77, 1
      %p81 = scmp.eq.s32.totalorder %s22, 1
      %p82 = scmp.ne.s32.totalorder %s77, %s79
      %p83 = scmp.eq.s32.totalorder %s22, 0
      %p84 = por %p82, %p83
      %p85 = scmp.ne.s32.totalorder %s77, %s79
      %p86 = scmp.eq.s32.totalorder %s27, 1
      %p87 = por %p85, %p86
      %p88 = scmp.ne.s32.totalorder %s79, %s80
      %p89 = scmp.eq.s32.totalorder %s27, 0
      %p90 = por %p88, %p89
      %p91 = scmp.ne.s32.totalorder %s79, %s80
      %p92 = scmp.eq.s32.totalorder %s28, 1
      %p93 = por %p91, %p92
      %p95 = scmp.ne.s32.totalorder %s80, %s94
      %p96 = scmp.eq.s32.totalorder %s28, 0
      %p97 = por %p95, %p96
      %s99 = sadd.s32 %s98, 1
      %p102 = scmp.eq.s32.totalorder %s22, 1
      %p103 = scmp.ne.s32.totalorder %s98, %s100
      %p104 = scmp.eq.s32.totalorder %s22, 0
      %p105 = por %p103, %p104
      %p106 = scmp.ne.s32.totalorder %s98, %s100
      %p107 = scmp.eq.s32.totalorder %s27, 1
      %p108 = por %p106, %p107
      %p109 = scmp.ne.s32.totalorder %s100, %s101
      %p110 = scmp.eq.s32.totalorder %s27, 0
      %p111 = por %p109, %p110
      %p112 = scmp.ne.s32.totalorder %s100, %s101
      %p113 = scmp.eq.s32.totalorder %s28, 1
      %p114 = por %p112, %p113
      %p116 = scmp.ne.s32.totalorder %s101, %s115
      %p117 = scmp.eq.s32.totalorder %s28, 0
      %p118 = por %p116, %p117
      %s120 = sadd.s32 %s119, 1
      %p123 = scmp.eq.s32.totalorder %s22, 1
      %p124 = scmp.ne.s32.totalorder %s119, %s121
      %p125 = scmp.eq.s32.totalorder %s22, 0
      %p126 = por %p124, %p125
      %p127 = scmp.ne.s32.totalorder %s119, %s121
      %p128 = scmp.eq.s32.totalorder %s27, 1
      %p129 = por %p127, %p128
      %p130 = scmp.ne.s32.totalorder %s121, %s122
      %p131 = scmp.eq.s32.totalorder %s27, 0
      %p132 = por %p130, %p131
      %p133 = scmp.ne.s32.totalorder %s121, %s122
      %p134 = scmp.eq.s32.totalorder %s28, 1
      %p135 = por %p133, %p134
      %p137 = scmp.ne.s32.totalorder %s122, %s136
      %p138 = scmp.eq.s32.totalorder %s28, 0
      %p139 = por %p137, %p138
      %s141 = sadd.s32 %s140, 1
      %p144 = scmp.eq.s32.totalorder %s22, 1
      %p145 = scmp.ne.s32.totalorder %s140, %s142
      %p146 = scmp.eq.s32.totalorder %s22, 0
      %p147 = por %p145, %p146
      %p148 = scmp.ne.s32.totalorder %s140, %s142
      %p149 = scmp.eq.s32.totalorder %s27, 1
      %p150 = por %p148, %p149
      %p151 = scmp.ne.s32.totalorder %s142, %s143
      %p152 = scmp.eq.s32.totalorder %s27, 0
      %p153 = por %p151, %p152
      %p154 = scmp.ne.s32.totalorder %s142, %s143
      %p155 = scmp.eq.s32.totalorder %s28, 1
      %p156 = por %p154, %p155
      %p158 = scmp.ne.s32.totalorder %s143, %s157
      %p159 = scmp.eq.s32.totalorder %s28, 0
      %p160 = por %p158, %p159
      %s162 = sadd.s32 %s161, 1
      %p165 = scmp.eq.s32.totalorder %s22, 1
      %p166 = scmp.ne.s32.totalorder %s161, %s163
      %p167 = scmp.eq.s32.totalorder %s22, 0
      %p168 = por %p166, %p167
      %p169 = scmp.ne.s32.totalorder %s161, %s163
      %p170 = scmp.eq.s32.totalorder %s27, 1
      %p171 = por %p169, %p170
      %p172 = scmp.ne.s32.totalorder %s163, %s164
      %p173 = scmp.eq.s32.totalorder %s27, 0
      %p174 = por %p172, %p173
      %p175 = scmp.ne.s32.totalorder %s163, %s164
      %p176 = scmp.eq.s32.totalorder %s28, 1
      %p177 = por %p175, %p176
      %p179 = scmp.ne.s32.totalorder %s164, %s178
      %p180 = scmp.eq.s32.totalorder %s28, 0
      %p181 = por %p179, %p180
      %s183 = sadd.s32 %s182, 1
      %p186 = scmp.eq.s32.totalorder %s22, 1
      %p187 = scmp.ne.s32.totalorder %s182, %s184
      %p188 = scmp.eq.s32.totalorder %s22, 0
      %p189 = por %p187, %p188
      %p190 = scmp.ne.s32.totalorder %s182, %s184
      %p191 = scmp.eq.s32.totalorder %s27, 1
      %p192 = por %p190, %p191
      %p193 = scmp.ne.s32.totalorder %s184, %s185
      %p194 = scmp.eq.s32.totalorder %s27, 0
      %p195 = por %p193, %p194
      %p196 = scmp.ne.s32.totalorder %s184, %s185
      %p197 = scmp.eq.s32.totalorder %s28, 1
      %p198 = por %p196, %p197
      %p200 = scmp.ne.s32.totalorder %s185, %s199
      %p201 = scmp.eq.s32.totalorder %s28, 0
      %p202 = por %p200, %p201
      %s203 = ssub.s32 %s22, %s29
      %p204 = scmp.eq.s32.totalorder %s203, 0
      %s206 = sadd.s32 %s205, 1
      %s207 = scalar_select %p204, %s205, %s206
      %p210 = pneg %p204
      %p211 = scmp.eq.s32.totalorder %s22, 1
      %p212 = por %p210, %p211
      %p213 = scmp.ne.s32.totalorder %s205, %s208
      %p214 = scmp.eq.s32.totalorder %s22, 0
      %p215 = por %p213, %p214
      %p216 = scmp.ne.s32.totalorder %s205, %s208
      %p217 = scmp.eq.s32.totalorder %s27, 1
      %p218 = por %p216, %p217
      %p219 = scmp.ne.s32.totalorder %s208, %s209
      %p220 = scmp.eq.s32.totalorder %s27, 0
      %p221 = por %p219, %p220
      %p222 = scmp.ne.s32.totalorder %s208, %s209
      %p223 = scmp.eq.s32.totalorder %s28, 1
      %p224 = por %p222, %p223
      %p226 = scmp.ne.s32.totalorder %s209, %s225
      %p227 = scmp.eq.s32.totalorder %s28, 0
      %p228 = por %p226, %p227
      %p229 = scmp.le.s32.totalorder 1, %s22
      %p230 = scmp.lt.s32.totalorder %s22, 3
      %p231 = pnand %p229, %p230
      %p232 = pneg %p231
      // Predicated region
      $region9: #{tpu_custom_call.1} parent=5 // pred_check
        _
      $region10: #{tpu_custom_call.1} parent=5 // pred_check_branch
        %234 = sbr.rel (%p231) target = $region12
      $region11: #{tpu_custom_call.1} parent=5 // pred_region
        %s235 = ssub.s32 %s22, 1
        // Predicated region
        $region13: #{tpu_custom_call.1} parent=11 // pred_check
          %p236 = pneg %p69
        $region14: #{tpu_custom_call.1} parent=11 // pred_check_branch
          %238 = sbr.rel (%p236) target = $region16
        $region15: #{tpu_custom_call.1} parent=11 // pred_region
          _
        $region16: #{tpu_custom_call.1} parent=11 // pred_fallthru
          _
        // Predicated region
        $region17: #{tpu_custom_call.1} parent=11 // pred_check
          %p239 = pneg %p90
        $region18: #{tpu_custom_call.1} parent=11 // pred_check_branch
          %241 = sbr.rel (%p239) target = $region20
        $region19: #{tpu_custom_call.1} parent=11 // pred_region
          %s243 = ssub.s32 32, 32
          %244 = vsyncadd [#allocation6], %s243
          %s246 = sshll.u32 [#allocation5], 4
          %s247 = int_to_ptr.vmem [resolvable:$true] %s246
          %249 = dma.hbm_to_vmem [thread:$0]  %s2, 32, %s247, [#allocation6]
        $region20: #{tpu_custom_call.1} parent=11 // pred_fallthru
          _
        // Predicated region
        $region21: #{tpu_custom_call.1} parent=11 // pred_check
          %p250 = pneg %p111
        $region22: #{tpu_custom_call.1} parent=11 // pred_check_branch
          %252 = sbr.rel (%p250) target = $region24
        $region23: #{tpu_custom_call.1} parent=11 // pred_region
          %s254 = ssub.s32 8192, 8192
          %255 = vsyncadd [#allocation6], %s254
          %s256 = sshll.u32 [#allocation7], 4
          %s257 = int_to_ptr.vmem [resolvable:$true] %s256
          %262 = dma.hbm_to_vmem [thread:$0]  %s3, 8192, %s257, [#allocation6], 256, 256, 16
        $region24: #{tpu_custom_call.1} parent=11 // pred_fallthru
          _
        // Predicated region
        $region25: #{tpu_custom_call.1} parent=11 // pred_check
          %p263 = pneg %p132
        $region26: #{tpu_custom_call.1} parent=11 // pred_check_branch
          %265 = sbr.rel (%p263) target = $region28
        $region27: #{tpu_custom_call.1} parent=11 // pred_region
          %s267 = ssub.s32 8192, 8192
          %268 = vsyncadd [#allocation9], %s267
          %s269 = sshll.u32 [#allocation8], 4
          %s270 = int_to_ptr.vmem [resolvable:$true] %s269
          %275 = dma.hbm_to_vmem [thread:$0]  %s4, 8192, %s270, [#allocation9], 256, 256, 16
        $region28: #{tpu_custom_call.1} parent=11 // pred_fallthru
          _
        // Predicated region
        $region29: #{tpu_custom_call.1} parent=11 // pred_check
          %p276 = pneg %p153
        $region30: #{tpu_custom_call.1} parent=11 // pred_check_branch
          %278 = sbr.rel (%p276) target = $region32
        $region31: #{tpu_custom_call.1} parent=11 // pred_region
          _
        $region32: #{tpu_custom_call.1} parent=11 // pred_fallthru
          _
        // Predicated region
        $region33: #{tpu_custom_call.1} parent=11 // pred_check
          %p279 = pneg %p174
        $region34: #{tpu_custom_call.1} parent=11 // pred_check_branch
          %281 = sbr.rel (%p279) target = $region36
        $region35: #{tpu_custom_call.1} parent=11 // pred_region
          _
        $region36: #{tpu_custom_call.1} parent=11 // pred_fallthru
          _
        // Predicated region
        $region37: #{tpu_custom_call.1} parent=11 // pred_check
          %p282 = pneg %p195
        $region38: #{tpu_custom_call.1} parent=11 // pred_check_branch
          %284 = sbr.rel (%p282) target = $region40
        $region39: #{tpu_custom_call.1} parent=11 // pred_region
          %s286 = ssub.s32 8192, 8192
          %287 = vsyncadd [#allocation9], %s286
          %s288 = sshll.u32 [#allocation10], 4
          %s289 = int_to_ptr.vmem [resolvable:$true] %s288
          %294 = dma.hbm_to_vmem [thread:$0]  %s7, 8192, %s289, [#allocation9], 128, 128, 8
        $region40: #{tpu_custom_call.1} parent=11 // pred_fallthru
          _
      $region12: #{tpu_custom_call.1} parent=5 // pred_fallthru
        _
      %p295 = scmp.lt.s32.totalorder %s22, 2
      // Predicated region
      $region41: #{tpu_custom_call.1} parent=5 // pred_check
        %p296 = pneg %p295
      $region42: #{tpu_custom_call.1} parent=5 // pred_check_branch
        %298 = sbr.rel (%p296) target = $region44
      $region43: #{tpu_custom_call.1} parent=5 // pred_region
        // Predicated region
        $region45: #{tpu_custom_call.1} parent=43 // pred_check
          %p299 = pneg %p42
        $region46: #{tpu_custom_call.1} parent=43 // pred_check_branch
          %301 = sbr.rel (%p299) target = $region48
        $region47: #{tpu_custom_call.1} parent=43 // pred_region
          %s302 = sand.u32 %s32, 1
          %s303 = scalar_lea.sflag [#allocation3], %s302
          %s304 = sand.u32 %s32, 1
          %s305 = smul.addr %s304, 512
          %s306 = scalar_lea.vmem [#allocation2], %s305
          %s307 = smul.u32 32, %s22
          %s309 = ssub.s32 8192, 8192
          %310 = vsyncadd %s303, %s309
          %s311 = smul.addr %s307, 2
          %s312 = smul.addr %s311, 128
          %s313 = scalar_lea.hbm %s0, %s312
          %s314 = sshll.u32 %s306, 4
          %s315 = int_to_ptr.vmem [resolvable:$true] %s314
          %320 = dma.hbm_to_vmem [thread:$0]  %s313, 8192, %s315, %s303, 256, 256, 16
        $region48: #{tpu_custom_call.1} parent=43 // pred_fallthru
          _
      $region44: #{tpu_custom_call.1} parent=5 // pred_fallthru
        _
      %p321 = scmp.le.s32.totalorder 1, %s22
      %p322 = scmp.lt.s32.totalorder %s22, 3
      %p323 = pnand %p321, %p322
      %p324 = pneg %p323
      // Predicated region
      $region49: #{tpu_custom_call.1} parent=5 // pred_check
        _
      $region50: #{tpu_custom_call.1} parent=5 // pred_check_branch
        %326 = sbr.rel (%p323) target = $region52
      $region51: #{tpu_custom_call.1} parent=5 // pred_region
        %s327 = ssub.s32 %s22, 1
        %s328 = sand.u32 %s35, 1
        %s329 = scalar_lea.sflag [#allocation3], %s328
        %s330 = sand.u32 %s35, 1
        %s331 = smul.addr %s330, 512
        %s332 = scalar_lea.vmem [#allocation2], %s331
        // Predicated region
        $region53: #{tpu_custom_call.1} parent=51 // pred_check
          %p333 = pneg %p48
        $region54: #{tpu_custom_call.1} parent=51 // pred_check_branch
          %335 = sbr.rel (%p333) target = $region56
        $region55: #{tpu_custom_call.1} parent=51 // pred_region
          %336 = dma.done %s329, 8192
        $region56: #{tpu_custom_call.1} parent=51 // pred_fallthru
          _
        // Predicated region
        $region57: #{tpu_custom_call.1} parent=51 // pred_check
          %p337 = pneg %p90
        $region58: #{tpu_custom_call.1} parent=51 // pred_check_branch
          %339 = sbr.rel (%p337) target = $region60
        $region59: #{tpu_custom_call.1} parent=51 // pred_region
          %340 = dma.done [#allocation6], 32
        $region60: #{tpu_custom_call.1} parent=51 // pred_fallthru
          _
        // Predicated region
        $region61: #{tpu_custom_call.1} parent=51 // pred_check
          %p341 = pneg %p111
        $region62: #{tpu_custom_call.1} parent=51 // pred_check_branch
          %343 = sbr.rel (%p341) target = $region64
        $region63: #{tpu_custom_call.1} parent=51 // pred_region
          %344 = dma.done [#allocation6], 8192
        $region64: #{tpu_custom_call.1} parent=51 // pred_fallthru
          _
        // Predicated region
        $region65: #{tpu_custom_call.1} parent=51 // pred_check
          %p345 = pneg %p132
        $region66: #{tpu_custom_call.1} parent=51 // pred_check_branch
          %347 = sbr.rel (%p345) target = $region68
        $region67: #{tpu_custom_call.1} parent=51 // pred_region
          %348 = dma.done [#allocation9], 8192
        $region68: #{tpu_custom_call.1} parent=51 // pred_fallthru
          _
        // Predicated region
        $region69: #{tpu_custom_call.1} parent=51 // pred_check
          %p349 = pneg %p195
        $region70: #{tpu_custom_call.1} parent=51 // pred_check_branch
          %351 = sbr.rel (%p349) target = $region72
        $region71: #{tpu_custom_call.1} parent=51 // pred_region
          %352 = dma.done [#allocation9], 8192
        $region72: #{tpu_custom_call.1} parent=51 // pred_fallthru
          _
        %s353 = sand.u32 %s35, 1
        %s354 = scalar_lea.sflag [#allocation3], %s353
        %s355 = sand.u32 %s35, 1
        %s356 = smul.addr %s355, 512
        %s357 = scalar_lea.vmem [#allocation2], %s356
        %p358 = pneg %p48
        %p359 = pneg %p45
        %p360 = pneg %p69
        %p361 = pneg %p66
        %p362 = pneg %p90
        %p363 = pneg %p87
        %p364 = pneg %p111
        %p365 = pneg %p108
        %p366 = pneg %p132
        %p367 = pneg %p129
        %p368 = pneg %p153
        %p369 = pneg %p150
        %p370 = pneg %p174
        %p371 = pneg %p171
        %p372 = pneg %p195
        %p373 = pneg %p192
        %p374 = pneg %p221
        %p375 = pneg %p218
        %s376 = sand.u32 %s208, 1
        %s377 = scalar_lea.sflag [#allocation4], %s376
        %s378 = sand.u32 %s208, 1
        %s379 = smul.addr %s378, 512
        %s380 = scalar_lea.vmem [#allocation11], %s379
        %s381 = smul.u32 32, %s27
        %s382 = smul.u32 32, %s27
        %v383 = vld [vmem:[%s332] sm:$0xff]
        %v384 = vld [vmem:[%s332 + $0x8] sm:$0xff]
        %v385 = vld [vmem:[%s332 + $0x10] sm:$0xff]
        %v386 = vld [vmem:[%s332 + $0x18] sm:$0xff]
        %v387 = vld [vmem:[%s332 + $0x20] sm:$0xff]
        %v388 = vld [vmem:[%s332 + $0x28] sm:$0xff]
        %v389 = vld [vmem:[%s332 + $0x30] sm:$0xff]
        %v390 = vld [vmem:[%s332 + $0x38] sm:$0xff]
        %v391 = vld [vmem:[%s332 + $0x40] sm:$0xff]
        %v392 = vld [vmem:[%s332 + $0x48] sm:$0xff]
        %v393 = vld [vmem:[%s332 + $0x50] sm:$0xff]
        %v394 = vld [vmem:[%s332 + $0x58] sm:$0xff]
        %v395 = vld [vmem:[%s332 + $0x60] sm:$0xff]
        %v396 = vld [vmem:[%s332 + $0x68] sm:$0xff]
        %v397 = vld [vmem:[%s332 + $0x70] sm:$0xff]
        %v398 = vld [vmem:[%s332 + $0x78] sm:$0xff]
        %v399 = vld [vmem:[%s332 + $0x80] sm:$0xff]
        %v400 = vld [vmem:[%s332 + $0x88] sm:$0xff]
        %v401 = vld [vmem:[%s332 + $0x90] sm:$0xff]
        %v402 = vld [vmem:[%s332 + $0x98] sm:$0xff]
        %v403 = vld [vmem:[%s332 + $0xa0] sm:$0xff]
        %v404 = vld [vmem:[%s332 + $0xa8] sm:$0xff]
        %v405 = vld [vmem:[%s332 + $0xb0] sm:$0xff]
        %v406 = vld [vmem:[%s332 + $0xb8] sm:$0xff]
        %v407 = vld [vmem:[%s332 + $0xc0] sm:$0xff]
        %v408 = vld [vmem:[%s332 + $0xc8] sm:$0xff]
        %v409 = vld [vmem:[%s332 + $0xd0] sm:$0xff]
        %v410 = vld [vmem:[%s332 + $0xd8] sm:$0xff]
        %v411 = vld [vmem:[%s332 + $0xe0] sm:$0xff]
        %v412 = vld [vmem:[%s332 + $0xe8] sm:$0xff]
        %v413 = vld [vmem:[%s332 + $0xf0] sm:$0xff]
        %v414 = vld [vmem:[%s332 + $0xf8] sm:$0xff]
        %v415 = vld [vmem:[%s332 + $0x100] sm:$0xff]
        %v416 = vld [vmem:[%s332 + $0x108] sm:$0xff]
        %v417 = vld [vmem:[%s332 + $0x110] sm:$0xff]
        %v418 = vld [vmem:[%s332 + $0x118] sm:$0xff]
        %v419 = vld [vmem:[%s332 + $0x120] sm:$0xff]
        %v420 = vld [vmem:[%s332 + $0x128] sm:$0xff]
        %v421 = vld [vmem:[%s332 + $0x130] sm:$0xff]
        %v422 = vld [vmem:[%s332 + $0x138] sm:$0xff]
        %v423 = vld [vmem:[%s332 + $0x140] sm:$0xff]
        %v424 = vld [vmem:[%s332 + $0x148] sm:$0xff]
        %v425 = vld [vmem:[%s332 + $0x150] sm:$0xff]
        %v426 = vld [vmem:[%s332 + $0x158] sm:$0xff]
        %v427 = vld [vmem:[%s332 + $0x160] sm:$0xff]
        %v428 = vld [vmem:[%s332 + $0x168] sm:$0xff]
        %v429 = vld [vmem:[%s332 + $0x170] sm:$0xff]
        %v430 = vld [vmem:[%s332 + $0x178] sm:$0xff]
        %v431 = vld [vmem:[%s332 + $0x180] sm:$0xff]
        %v432 = vld [vmem:[%s332 + $0x188] sm:$0xff]
        %v433 = vld [vmem:[%s332 + $0x190] sm:$0xff]
        %v434 = vld [vmem:[%s332 + $0x198] sm:$0xff]
        %v435 = vld [vmem:[%s332 + $0x1a0] sm:$0xff]
        %v436 = vld [vmem:[%s332 + $0x1a8] sm:$0xff]
        %v437 = vld [vmem:[%s332 + $0x1b0] sm:$0xff]
        %v438 = vld [vmem:[%s332 + $0x1b8] sm:$0xff]
        %v439 = vld [vmem:[%s332 + $0x1c0] sm:$0xff]
        %v440 = vld [vmem:[%s332 + $0x1c8] sm:$0xff]
        %v441 = vld [vmem:[%s332 + $0x1d0] sm:$0xff]
        %v442 = vld [vmem:[%s332 + $0x1d8] sm:$0xff]
        %v443 = vld [vmem:[%s332 + $0x1e0] sm:$0xff]
        %v444 = vld [vmem:[%s332 + $0x1e8] sm:$0xff]
        %v445 = vld [vmem:[%s332 + $0x1f0] sm:$0xff]
        %v446 = vld [vmem:[%s332 + $0x1f8] sm:$0xff]
        %v447 = vld [vmem:[%s1] sm:$0x3]
        %v448 = vld [vmem:[#allocation5] sm:$0x3]
        %v449 = vadd.f32 %v383, %v384
        %450 = vadd.xlane.f32.xlu0 %v449
        %v451 = vpop.xlane.xlu0 %450
        %v452 = vadd.f32 %v385, %v386
        %453 = vadd.xlane.f32.xlu0 %v452
        %v454 = vpop.xlane.xlu0 %453
        %v455 = vadd.f32 %v387, %v388
        %456 = vadd.xlane.f32.xlu0 %v455
        %v457 = vpop.xlane.xlu0 %456
        %v458 = vadd.f32 %v389, %v390
        %459 = vadd.xlane.f32.xlu0 %v458
        %v460 = vpop.xlane.xlu0 %459
        %v461 = vadd.f32 %v391, %v392
        %462 = vadd.xlane.f32.xlu0 %v461
        %v463 = vpop.xlane.xlu0 %462
        %v464 = vadd.f32 %v393, %v394
        %465 = vadd.xlane.f32.xlu0 %v464
        %v466 = vpop.xlane.xlu0 %465
        %v467 = vadd.f32 %v395, %v396
        %468 = vadd.xlane.f32.xlu0 %v467
        %v469 = vpop.xlane.xlu0 %468
        %v470 = vadd.f32 %v397, %v398
        %471 = vadd.xlane.f32.xlu0 %v470
        %v472 = vpop.xlane.xlu0 %471
        %v473 = vadd.f32 %v399, %v400
        %474 = vadd.xlane.f32.xlu0 %v473
        %v475 = vpop.xlane.xlu0 %474
        %v476 = vadd.f32 %v401, %v402
        %477 = vadd.xlane.f32.xlu0 %v476
        %v478 = vpop.xlane.xlu0 %477
        %v479 = vadd.f32 %v403, %v404
        %480 = vadd.xlane.f32.xlu0 %v479
        %v481 = vpop.xlane.xlu0 %480
        %v482 = vadd.f32 %v405, %v406
        %483 = vadd.xlane.f32.xlu0 %v482
        %v484 = vpop.xlane.xlu0 %483
        %v485 = vadd.f32 %v407, %v408
        %486 = vadd.xlane.f32.xlu0 %v485
        %v487 = vpop.xlane.xlu0 %486
        %v488 = vadd.f32 %v409, %v410
        %489 = vadd.xlane.f32.xlu0 %v488
        %v490 = vpop.xlane.xlu0 %489
        %v491 = vadd.f32 %v411, %v412
        %492 = vadd.xlane.f32.xlu0 %v491
        %v493 = vpop.xlane.xlu0 %492
        %v494 = vadd.f32 %v413, %v414
        %495 = vadd.xlane.f32.xlu0 %v494
        %v496 = vpop.xlane.xlu0 %495
        %v497 = vadd.f32 %v415, %v416
        %498 = vadd.xlane.f32.xlu0 %v497
        %v499 = vpop.xlane.xlu0 %498
        %v500 = vadd.f32 %v417, %v418
        %501 = vadd.xlane.f32.xlu0 %v500
        %v502 = vpop.xlane.xlu0 %501
        %v503 = vadd.f32 %v419, %v420
        %504 = vadd.xlane.f32.xlu0 %v503
        %v505 = vpop.xlane.xlu0 %504
        %v506 = vadd.f32 %v421, %v422
        %507 = vadd.xlane.f32.xlu0 %v506
        %v508 = vpop.xlane.xlu0 %507
        %v509 = vadd.f32 %v423, %v424
        %510 = vadd.xlane.f32.xlu0 %v509
        %v511 = vpop.xlane.xlu0 %510
        %v512 = vadd.f32 %v425, %v426
        %513 = vadd.xlane.f32.xlu0 %v512
        %v514 = vpop.xlane.xlu0 %513
        %v515 = vadd.f32 %v427, %v428
        %516 = vadd.xlane.f32.xlu0 %v515
        %v517 = vpop.xlane.xlu0 %516
        %v518 = vadd.f32 %v429, %v430
        %519 = vadd.xlane.f32.xlu0 %v518
        %v520 = vpop.xlane.xlu0 %519
        %v521 = vadd.f32 %v431, %v432
        %522 = vadd.xlane.f32.xlu0 %v521
        %v523 = vpop.xlane.xlu0 %522
        %v524 = vadd.f32 %v433, %v434
        %525 = vadd.xlane.f32.xlu0 %v524
        %v526 = vpop.xlane.xlu0 %525
        %v527 = vadd.f32 %v435, %v436
        %528 = vadd.xlane.f32.xlu0 %v527
        %v529 = vpop.xlane.xlu0 %528
        %v530 = vadd.f32 %v437, %v438
        %531 = vadd.xlane.f32.xlu0 %v530
        %v532 = vpop.xlane.xlu0 %531
        %v533 = vadd.f32 %v439, %v440
        %534 = vadd.xlane.f32.xlu0 %v533
        %v535 = vpop.xlane.xlu0 %534
        %v536 = vadd.f32 %v441, %v442
        %537 = vadd.xlane.f32.xlu0 %v536
        %v538 = vpop.xlane.xlu0 %537
        %v539 = vadd.f32 %v443, %v444
        %540 = vadd.xlane.f32.xlu0 %v539
        %v541 = vpop.xlane.xlu0 %540
        %v542 = vadd.f32 %v445, %v446
        %543 = vadd.xlane.f32.xlu0 %v542
        %v544 = vpop.xlane.xlu0 %543
        %v545 = vrcp.pop 256.0
        %v546 = vmul.f32 %v451, %v545
        %v547 = vmul.f32 %v454, %v545
        %v548 = vmul.f32 %v457, %v545
        %v549 = vmul.f32 %v460, %v545
        %v550 = vmul.f32 %v463, %v545
        %v551 = vmul.f32 %v466, %v545
        %v552 = vmul.f32 %v469, %v545
        %v553 = vmul.f32 %v472, %v545
        %v554 = vmul.f32 %v475, %v545
        %v555 = vmul.f32 %v478, %v545
        %v556 = vmul.f32 %v481, %v545
        %v557 = vmul.f32 %v484, %v545
        %v558 = vmul.f32 %v487, %v545
        %v559 = vmul.f32 %v490, %v545
        %v560 = vmul.f32 %v493, %v545
        %v561 = vmul.f32 %v496, %v545
        %v562 = vmul.f32 %v499, %v545
        %v563 = vmul.f32 %v502, %v545
        %v564 = vmul.f32 %v505, %v545
        %v565 = vmul.f32 %v508, %v545
        %v566 = vmul.f32 %v511, %v545
        %v567 = vmul.f32 %v514, %v545
        %v568 = vmul.f32 %v517, %v545
        %v569 = vmul.f32 %v520, %v545
        %v570 = vmul.f32 %v523, %v545
        %v571 = vmul.f32 %v526, %v545
        %v572 = vmul.f32 %v529, %v545
        %v573 = vmul.f32 %v532, %v545
        %v574 = vmul.f32 %v535, %v545
        %v575 = vmul.f32 %v538, %v545
        %v576 = vmul.f32 %v541, %v545
        %v577 = vmul.f32 %v544, %v545
        %v578 = vsub.f32 %v383, %v546
        %v579 = vsub.f32 %v384, %v546
        %v580 = vsub.f32 %v385, %v547
        %v581 = vsub.f32 %v386, %v547
        %v582 = vsub.f32 %v387, %v548
        %v583 = vsub.f32 %v388, %v548
        %v584 = vsub.f32 %v389, %v549
        %v585 = vsub.f32 %v390, %v549
        %v586 = vsub.f32 %v391, %v550
        %v587 = vsub.f32 %v392, %v550
        %v588 = vsub.f32 %v393, %v551
        %v589 = vsub.f32 %v394, %v551
        %v590 = vsub.f32 %v395, %v552
        %v591 = vsub.f32 %v396, %v552
        %v592 = vsub.f32 %v397, %v553
        %v593 = vsub.f32 %v398, %v553
        %v594 = vsub.f32 %v399, %v554
        %v595 = vsub.f32 %v400, %v554
        %v596 = vsub.f32 %v401, %v555
        %v597 = vsub.f32 %v402, %v555
        %v598 = vsub.f32 %v403, %v556
        %v599 = vsub.f32 %v404, %v556
        %v600 = vsub.f32 %v405, %v557
        %v601 = vsub.f32 %v406, %v557
        %v602 = vsub.f32 %v407, %v558
        %v603 = vsub.f32 %v408, %v558
        %v604 = vsub.f32 %v409, %v559
        %v605 = vsub.f32 %v410, %v559
        %v606 = vsub.f32 %v411, %v560
        %v607 = vsub.f32 %v412, %v560
        %v608 = vsub.f32 %v413, %v561
        %v609 = vsub.f32 %v414, %v561
        %v610 = vsub.f32 %v415, %v562
        %v611 = vsub.f32 %v416, %v562
        %v612 = vsub.f32 %v417, %v563
        %v613 = vsub.f32 %v418, %v563
        %v614 = vsub.f32 %v419, %v564
        %v615 = vsub.f32 %v420, %v564
        %v616 = vsub.f32 %v421, %v565
        %v617 = vsub.f32 %v422, %v565
        %v618 = vsub.f32 %v423, %v566
        %v619 = vsub.f32 %v424, %v566
        %v620 = vsub.f32 %v425, %v567
        %v621 = vsub.f32 %v426, %v567
        %v622 = vsub.f32 %v427, %v568
        %v623 = vsub.f32 %v428, %v568
        %v624 = vsub.f32 %v429, %v569
        %v625 = vsub.f32 %v430, %v569
        %v626 = vsub.f32 %v431, %v570
        %v627 = vsub.f32 %v432, %v570
        %v628 = vsub.f32 %v433, %v571
        %v629 = vsub.f32 %v434, %v571
        %v630 = vsub.f32 %v435, %v572
        %v631 = vsub.f32 %v436, %v572
        %v632 = vsub.f32 %v437, %v573
        %v633 = vsub.f32 %v438, %v573
        %v634 = vsub.f32 %v439, %v574
        %v635 = vsub.f32 %v440, %v574
        %v636 = vsub.f32 %v441, %v575
        %v637 = vsub.f32 %v442, %v575
        %v638 = vsub.f32 %v443, %v576
        %v639 = vsub.f32 %v444, %v576
        %v640 = vsub.f32 %v445, %v577
        %v641 = vsub.f32 %v446, %v577
        %v642 = vmul.f32 %v578, %v578
        %v643 = vmul.f32 %v579, %v579
        %v644 = vmul.f32 %v580, %v580
        %v645 = vmul.f32 %v581, %v581
        %v646 = vmul.f32 %v582, %v582
        %v647 = vmul.f32 %v583, %v583
        %v648 = vmul.f32 %v584, %v584
        %v649 = vmul.f32 %v585, %v585
        %v650 = vmul.f32 %v586, %v586
        %v651 = vmul.f32 %v587, %v587
        %v652 = vmul.f32 %v588, %v588
        %v653 = vmul.f32 %v589, %v589
        %v654 = vmul.f32 %v590, %v590
        %v655 = vmul.f32 %v591, %v591
        %v656 = vmul.f32 %v592, %v592
        %v657 = vmul.f32 %v593, %v593
        %v658 = vmul.f32 %v594, %v594
        %v659 = vmul.f32 %v595, %v595
        %v660 = vmul.f32 %v596, %v596
        %v661 = vmul.f32 %v597, %v597
        %v662 = vmul.f32 %v598, %v598
        %v663 = vmul.f32 %v599, %v599
        %v664 = vmul.f32 %v600, %v600
        %v665 = vmul.f32 %v601, %v601
        %v666 = vmul.f32 %v602, %v602
        %v667 = vmul.f32 %v603, %v603
        %v668 = vmul.f32 %v604, %v604
        %v669 = vmul.f32 %v605, %v605
        %v670 = vmul.f32 %v606, %v606
        %v671 = vmul.f32 %v607, %v607
        %v672 = vmul.f32 %v608, %v608
        %v673 = vmul.f32 %v609, %v609
        %v674 = vmul.f32 %v610, %v610
        %v675 = vmul.f32 %v611, %v611
        %v676 = vmul.f32 %v612, %v612
        %v677 = vmul.f32 %v613, %v613
        %v678 = vmul.f32 %v614, %v614
        %v679 = vmul.f32 %v615, %v615
        %v680 = vmul.f32 %v616, %v616
        %v681 = vmul.f32 %v617, %v617
        %v682 = vmul.f32 %v618, %v618
        %v683 = vmul.f32 %v619, %v619
        %v684 = vmul.f32 %v620, %v620
        %v685 = vmul.f32 %v621, %v621
        %v686 = vmul.f32 %v622, %v622
        %v687 = vmul.f32 %v623, %v623
        %v688 = vmul.f32 %v624, %v624
        %v689 = vmul.f32 %v625, %v625
        %v690 = vmul.f32 %v626, %v626
        %v691 = vmul.f32 %v627, %v627
        %v692 = vmul.f32 %v628, %v628
        %v693 = vmul.f32 %v629, %v629
        %v694 = vmul.f32 %v630, %v630
        %v695 = vmul.f32 %v631, %v631
        %v696 = vmul.f32 %v632, %v632
        %v697 = vmul.f32 %v633, %v633
        %v698 = vmul.f32 %v634, %v634
        %v699 = vmul.f32 %v635, %v635
        %v700 = vmul.f32 %v636, %v636
        %v701 = vmul.f32 %v637, %v637
        %v702 = vmul.f32 %v638, %v638
        %v703 = vmul.f32 %v639, %v639
        %v704 = vmul.f32 %v640, %v640
        %v705 = vmul.f32 %v641, %v641
        %v706 = vadd.f32 %v642, %v643
        %707 = vadd.xlane.f32.xlu0 %v706
        %v708 = vpop.xlane.xlu0 %707
        %v709 = vadd.f32 %v644, %v645
        %710 = vadd.xlane.f32.xlu0 %v709
        %v711 = vpop.xlane.xlu0 %710
        %v712 = vadd.f32 %v646, %v647
        %713 = vadd.xlane.f32.xlu0 %v712
        %v714 = vpop.xlane.xlu0 %713
        %v715 = vadd.f32 %v648, %v649
        %716 = vadd.xlane.f32.xlu0 %v715
        %v717 = vpop.xlane.xlu0 %716
        %v718 = vadd.f32 %v650, %v651
        %719 = vadd.xlane.f32.xlu0 %v718
        %v720 = vpop.xlane.xlu0 %719
        %v721 = vadd.f32 %v652, %v653
        %722 = vadd.xlane.f32.xlu0 %v721
        %v723 = vpop.xlane.xlu0 %722
        %v724 = vadd.f32 %v654, %v655
        %725 = vadd.xlane.f32.xlu0 %v724
        %v726 = vpop.xlane.xlu0 %725
        %v727 = vadd.f32 %v656, %v657
        %728 = vadd.xlane.f32.xlu0 %v727
        %v729 = vpop.xlane.xlu0 %728
        %v730 = vadd.f32 %v658, %v659
        %731 = vadd.xlane.f32.xlu0 %v730
        %v732 = vpop.xlane.xlu0 %731
        %v733 = vadd.f32 %v660, %v661
        %734 = vadd.xlane.f32.xlu0 %v733
        %v735 = vpop.xlane.xlu0 %734
        %v736 = vadd.f32 %v662, %v663
        %737 = vadd.xlane.f32.xlu0 %v736
        %v738 = vpop.xlane.xlu0 %737
        %v739 = vadd.f32 %v664, %v665
        %740 = vadd.xlane.f32.xlu0 %v739
        %v741 = vpop.xlane.xlu0 %740
        %v742 = vadd.f32 %v666, %v667
        %743 = vadd.xlane.f32.xlu0 %v742
        %v744 = vpop.xlane.xlu0 %743
        %v745 = vadd.f32 %v668, %v669
        %746 = vadd.xlane.f32.xlu0 %v745
        %v747 = vpop.xlane.xlu0 %746
        %v748 = vadd.f32 %v670, %v671
        %749 = vadd.xlane.f32.xlu0 %v748
        %v750 = vpop.xlane.xlu0 %749
        %v751 = vadd.f32 %v672, %v673
        %752 = vadd.xlane.f32.xlu0 %v751
        %v753 = vpop.xlane.xlu0 %752
        %v754 = vadd.f32 %v674, %v675
        %755 = vadd.xlane.f32.xlu0 %v754
        %v756 = vpop.xlane.xlu0 %755
        %v757 = vadd.f32 %v676, %v677
        %758 = vadd.xlane.f32.xlu0 %v757
        %v759 = vpop.xlane.xlu0 %758
        %v760 = vadd.f32 %v678, %v679
        %761 = vadd.xlane.f32.xlu0 %v760
        %v762 = vpop.xlane.xlu0 %761
        %v763 = vadd.f32 %v680, %v681
        %764 = vadd.xlane.f32.xlu0 %v763
        %v765 = vpop.xlane.xlu0 %764
        %v766 = vadd.f32 %v682, %v683
        %767 = vadd.xlane.f32.xlu0 %v766
        %v768 = vpop.xlane.xlu0 %767
        %v769 = vadd.f32 %v684, %v685
        %770 = vadd.xlane.f32.xlu0 %v769
        %v771 = vpop.xlane.xlu0 %770
        %v772 = vadd.f32 %v686, %v687
        %773 = vadd.xlane.f32.xlu0 %v772
        %v774 = vpop.xlane.xlu0 %773
        %v775 = vadd.f32 %v688, %v689
        %776 = vadd.xlane.f32.xlu0 %v775
        %v777 = vpop.xlane.xlu0 %776
        %v778 = vadd.f32 %v690, %v691
        %779 = vadd.xlane.f32.xlu0 %v778
        %v780 = vpop.xlane.xlu0 %779
        %v781 = vadd.f32 %v692, %v693
        %782 = vadd.xlane.f32.xlu0 %v781
        %v783 = vpop.xlane.xlu0 %782
        %v784 = vadd.f32 %v694, %v695
        %785 = vadd.xlane.f32.xlu0 %v784
        %v786 = vpop.xlane.xlu0 %785
        %v787 = vadd.f32 %v696, %v697
        %788 = vadd.xlane.f32.xlu0 %v787
        %v789 = vpop.xlane.xlu0 %788
        %v790 = vadd.f32 %v698, %v699
        %791 = vadd.xlane.f32.xlu0 %v790
        %v792 = vpop.xlane.xlu0 %791
        %v793 = vadd.f32 %v700, %v701
        %794 = vadd.xlane.f32.xlu0 %v793
        %v795 = vpop.xlane.xlu0 %794
        %v796 = vadd.f32 %v702, %v703
        %797 = vadd.xlane.f32.xlu0 %v796
        %v798 = vpop.xlane.xlu0 %797
        %v799 = vadd.f32 %v704, %v705
        %800 = vadd.xlane.f32.xlu0 %v799
        %v801 = vpop.xlane.xlu0 %800
        %v802 = vmul.f32 %v708, %v545
        %v803 = vmul.f32 %v711, %v545
        %v804 = vmul.f32 %v714, %v545
        %v805 = vmul.f32 %v717, %v545
        %v806 = vmul.f32 %v720, %v545
        %v807 = vmul.f32 %v723, %v545
        %v808 = vmul.f32 %v726, %v545
        %v809 = vmul.f32 %v729, %v545
        %v810 = vmul.f32 %v732, %v545
        %v811 = vmul.f32 %v735, %v545
        %v812 = vmul.f32 %v738, %v545
        %v813 = vmul.f32 %v741, %v545
        %v814 = vmul.f32 %v744, %v545
        %v815 = vmul.f32 %v747, %v545
        %v816 = vmul.f32 %v750, %v545
        %v817 = vmul.f32 %v753, %v545
        %v818 = vmul.f32 %v756, %v545
        %v819 = vmul.f32 %v759, %v545
        %v820 = vmul.f32 %v762, %v545
        %v821 = vmul.f32 %v765, %v545
        %v822 = vmul.f32 %v768, %v545
        %v823 = vmul.f32 %v771, %v545
        %v824 = vmul.f32 %v774, %v545
        %v825 = vmul.f32 %v777, %v545
        %v826 = vmul.f32 %v780, %v545
        %v827 = vmul.f32 %v783, %v545
        %v828 = vmul.f32 %v786, %v545
        %v829 = vmul.f32 %v789, %v545
        %v830 = vmul.f32 %v792, %v545
        %v831 = vmul.f32 %v795, %v545
        %v832 = vmul.f32 %v798, %v545
        %v833 = vmul.f32 %v801, %v545
        %v834 = vadd.f32 %v802, 1e-05
        %v835 = vadd.f32 %v803, 1e-05
        %v836 = vadd.f32 %v804, 1e-05
        %v837 = vadd.f32 %v805, 1e-05
        %v838 = vadd.f32 %v806, 1e-05
        %v839 = vadd.f32 %v807, 1e-05
        %v840 = vadd.f32 %v808, 1e-05
        %v841 = vadd.f32 %v809, 1e-05
        %v842 = vadd.f32 %v810, 1e-05
        %v843 = vadd.f32 %v811, 1e-05
        %v844 = vadd.f32 %v812, 1e-05
        %v845 = vadd.f32 %v813, 1e-05
        %v846 = vadd.f32 %v814, 1e-05
        %v847 = vadd.f32 %v815, 1e-05
        %v848 = vadd.f32 %v816, 1e-05
        %v849 = vadd.f32 %v817, 1e-05
        %v850 = vadd.f32 %v818, 1e-05
        %v851 = vadd.f32 %v819, 1e-05
        %v852 = vadd.f32 %v820, 1e-05
        %v853 = vadd.f32 %v821, 1e-05
        %v854 = vadd.f32 %v822, 1e-05
        %v855 = vadd.f32 %v823, 1e-05
        %v856 = vadd.f32 %v824, 1e-05
        %v857 = vadd.f32 %v825, 1e-05
        %v858 = vadd.f32 %v826, 1e-05
        %v859 = vadd.f32 %v827, 1e-05
        %v860 = vadd.f32 %v828, 1e-05
        %v861 = vadd.f32 %v829, 1e-05
        %v862 = vadd.f32 %v830, 1e-05
        %v863 = vadd.f32 %v831, 1e-05
        %v864 = vadd.f32 %v832, 1e-05
        %v865 = vadd.f32 %v833, 1e-05
        %v866 = vrsqrt.pop %v834
        %v867 = vrsqrt.pop %v835
        %v868 = vrsqrt.pop %v836
        %v869 = vrsqrt.pop %v837
        %v870 = vrsqrt.pop %v838
        %v871 = vrsqrt.pop %v839
        %v872 = vrsqrt.pop %v840
        %v873 = vrsqrt.pop %v841
        %v874 = vrsqrt.pop %v842
        %v875 = vrsqrt.pop %v843
        %v876 = vrsqrt.pop %v844
        %v877 = vrsqrt.pop %v845
        %v878 = vrsqrt.pop %v846
        %v879 = vrsqrt.pop %v847
        %v880 = vrsqrt.pop %v848
        %v881 = vrsqrt.pop %v849
        %v882 = vrsqrt.pop %v850
        %v883 = vrsqrt.pop %v851
        %v884 = vrsqrt.pop %v852
        %v885 = vrsqrt.pop %v853
        %v886 = vrsqrt.pop %v854
        %v887 = vrsqrt.pop %v855
        %v888 = vrsqrt.pop %v856
        %v889 = vrsqrt.pop %v857
        %v890 = vrsqrt.pop %v858
        %v891 = vrsqrt.pop %v859
        %v892 = vrsqrt.pop %v860
        %v893 = vrsqrt.pop %v861
        %v894 = vrsqrt.pop %v862
        %v895 = vrsqrt.pop %v863
        %v896 = vrsqrt.pop %v864
        %v897 = vrsqrt.pop %v865
        %v898 = vmul.f32 %v578, %v866
        %v899 = vmul.f32 %v579, %v866
        %v900 = vmul.f32 %v580, %v867
        %v901 = vmul.f32 %v581, %v867
        %v902 = vmul.f32 %v582, %v868
        %v903 = vmul.f32 %v583, %v868
        %v904 = vmul.f32 %v584, %v869
        %v905 = vmul.f32 %v585, %v869
        %v906 = vmul.f32 %v586, %v870
        %v907 = vmul.f32 %v587, %v870
        %v908 = vmul.f32 %v588, %v871
        %v909 = vmul.f32 %v589, %v871
        %v910 = vmul.f32 %v590, %v872
        %v911 = vmul.f32 %v591, %v872
        %v912 = vmul.f32 %v592, %v873
        %v913 = vmul.f32 %v593, %v873
        %v914 = vmul.f32 %v594, %v874
        %v915 = vmul.f32 %v595, %v874
        %v916 = vmul.f32 %v596, %v875
        %v917 = vmul.f32 %v597, %v875
        %v918 = vmul.f32 %v598, %v876
        %v919 = vmul.f32 %v599, %v876
        %v920 = vmul.f32 %v600, %v877
        %v921 = vmul.f32 %v601, %v877
        %v922 = vmul.f32 %v602, %v878
        %v923 = vmul.f32 %v603, %v878
        %v924 = vmul.f32 %v604, %v879
        %v925 = vmul.f32 %v605, %v879
        %v926 = vmul.f32 %v606, %v880
        %v927 = vmul.f32 %v607, %v880
        %v928 = vmul.f32 %v608, %v881
        %v929 = vmul.f32 %v609, %v881
        %v930 = vmul.f32 %v610, %v882
        %v931 = vmul.f32 %v611, %v882
        %v932 = vmul.f32 %v612, %v883
        %v933 = vmul.f32 %v613, %v883
        %v934 = vmul.f32 %v614, %v884
        %v935 = vmul.f32 %v615, %v884
        %v936 = vmul.f32 %v616, %v885
        %v937 = vmul.f32 %v617, %v885
        %v938 = vmul.f32 %v618, %v886
        %v939 = vmul.f32 %v619, %v886
        %v940 = vmul.f32 %v620, %v887
        %v941 = vmul.f32 %v621, %v887
        %v942 = vmul.f32 %v622, %v888
        %v943 = vmul.f32 %v623, %v888
        %v944 = vmul.f32 %v624, %v889
        %v945 = vmul.f32 %v625, %v889
        %v946 = vmul.f32 %v626, %v890
        %v947 = vmul.f32 %v627, %v890
        %v948 = vmul.f32 %v628, %v891
        %v949 = vmul.f32 %v629, %v891
        %v950 = vmul.f32 %v630, %v892
        %v951 = vmul.f32 %v631, %v892
        %v952 = vmul.f32 %v632, %v893
        %v953 = vmul.f32 %v633, %v893
        %v954 = vmul.f32 %v634, %v894
        %v955 = vmul.f32 %v635, %v894
        %v956 = vmul.f32 %v636, %v895
        %v957 = vmul.f32 %v637, %v895
        %v958 = vmul.f32 %v638, %v896
        %v959 = vmul.f32 %v639, %v896
        %v960 = vmul.f32 %v640, %v897
        %v961 = vmul.f32 %v641, %v897
        %v963 = vlaneseq
        %v964 = vshrl.u32 %v963, 7
        %v965 = vsub.s32 0, %v964
        %v966 = vrot.slane %v447, %v965
        %v967 = vlaneseq
        %v968 = vshrl.u32 %v967, 7
        %v969 = vsub.s32 1, %v968
        %v970 = vrot.slane %v447, %v969
        %v973 = vmul.f32 %v898, %v966
        %v974 = vmul.f32 %v899, %v970
        %v975 = vmul.f32 %v900, %v966
        %v976 = vmul.f32 %v901, %v970
        %v977 = vmul.f32 %v902, %v966
        %v978 = vmul.f32 %v903, %v970
        %v979 = vmul.f32 %v904, %v966
        %v980 = vmul.f32 %v905, %v970
        %v981 = vmul.f32 %v906, %v966
        %v982 = vmul.f32 %v907, %v970
        %v983 = vmul.f32 %v908, %v966
        %v984 = vmul.f32 %v909, %v970
        %v985 = vmul.f32 %v910, %v966
        %v986 = vmul.f32 %v911, %v970
        %v987 = vmul.f32 %v912, %v966
        %v988 = vmul.f32 %v913, %v970
        %v989 = vmul.f32 %v914, %v966
        %v990 = vmul.f32 %v915, %v970
        %v991 = vmul.f32 %v916, %v966
        %v992 = vmul.f32 %v917, %v970
        %v993 = vmul.f32 %v918, %v966
        %v994 = vmul.f32 %v919, %v970
        %v995 = vmul.f32 %v920, %v966
        %v996 = vmul.f32 %v921, %v970
        %v997 = vmul.f32 %v922, %v966
        %v998 = vmul.f32 %v923, %v970
        %v999 = vmul.f32 %v924, %v966
        %v1000 = vmul.f32 %v925, %v970
        %v1001 = vmul.f32 %v926, %v966
        %v1002 = vmul.f32 %v927, %v970
        %v1003 = vmul.f32 %v928, %v966
        %v1004 = vmul.f32 %v929, %v970
        %v1005 = vmul.f32 %v930, %v966
        %v1006 = vmul.f32 %v931, %v970
        %v1007 = vmul.f32 %v932, %v966
        %v1008 = vmul.f32 %v933, %v970
        %v1009 = vmul.f32 %v934, %v966
        %v1010 = vmul.f32 %v935, %v970
        %v1011 = vmul.f32 %v936, %v966
        %v1012 = vmul.f32 %v937, %v970
        %v1013 = vmul.f32 %v938, %v966
        %v1014 = vmul.f32 %v939, %v970
        %v1015 = vmul.f32 %v940, %v966
        %v1016 = vmul.f32 %v941, %v970
        %v1017 = vmul.f32 %v942, %v966
        %v1018 = vmul.f32 %v943, %v970
        %v1019 = vmul.f32 %v944, %v966
        %v1020 = vmul.f32 %v945, %v970
        %v1021 = vmul.f32 %v946, %v966
        %v1022 = vmul.f32 %v947, %v970
        %v1023 = vmul.f32 %v948, %v966
        %v1024 = vmul.f32 %v949, %v970
        %v1025 = vmul.f32 %v950, %v966
        %v1026 = vmul.f32 %v951, %v970
        %v1027 = vmul.f32 %v952, %v966
        %v1028 = vmul.f32 %v953, %v970
        %v1029 = vmul.f32 %v954, %v966
        %v1030 = vmul.f32 %v955, %v970
        %v1031 = vmul.f32 %v956, %v966
        %v1032 = vmul.f32 %v957, %v970
        %v1033 = vmul.f32 %v958, %v966
        %v1034 = vmul.f32 %v959, %v970
        %v1035 = vmul.f32 %v960, %v966
        %v1036 = vmul.f32 %v961, %v970
        %v1038 = vlaneseq
        %v1039 = vshrl.u32 %v1038, 7
        %v1040 = vsub.s32 0, %v1039
        %v1041 = vrot.slane %v448, %v1040
        %v1042 = vlaneseq
        %v1043 = vshrl.u32 %v1042, 7
        %v1044 = vsub.s32 1, %v1043
        %v1045 = vrot.slane %v448, %v1044
        %v1048 = vadd.f32 %v973, %v1041
        %v1049 = vadd.f32 %v974, %v1045
        %v1050 = vadd.f32 %v975, %v1041
        %v1051 = vadd.f32 %v976, %v1045
        %v1052 = vadd.f32 %v977, %v1041
        %v1053 = vadd.f32 %v978, %v1045
        %v1054 = vadd.f32 %v979, %v1041
        %v1055 = vadd.f32 %v980, %v1045
        %v1056 = vadd.f32 %v981, %v1041
        %v1057 = vadd.f32 %v982, %v1045
        %v1058 = vadd.f32 %v983, %v1041
        %v1059 = vadd.f32 %v984, %v1045
        %v1060 = vadd.f32 %v985, %v1041
        %v1061 = vadd.f32 %v986, %v1045
        %v1062 = vadd.f32 %v987, %v1041
        %v1063 = vadd.f32 %v988, %v1045
        %v1064 = vadd.f32 %v989, %v1041
        %v1065 = vadd.f32 %v990, %v1045
        %v1066 = vadd.f32 %v991, %v1041
        %v1067 = vadd.f32 %v992, %v1045
        %v1068 = vadd.f32 %v993, %v1041
        %v1069 = vadd.f32 %v994, %v1045
        %v1070 = vadd.f32 %v995, %v1041
        %v1071 = vadd.f32 %v996, %v1045
        %v1072 = vadd.f32 %v997, %v1041
        %v1073 = vadd.f32 %v998, %v1045
        %v1074 = vadd.f32 %v999, %v1041
        %v1075 = vadd.f32 %v1000, %v1045
        %v1076 = vadd.f32 %v1001, %v1041
        %v1077 = vadd.f32 %v1002, %v1045
        %v1078 = vadd.f32 %v1003, %v1041
        %v1079 = vadd.f32 %v1004, %v1045
        %v1080 = vadd.f32 %v1005, %v1041
        %v1081 = vadd.f32 %v1006, %v1045
        %v1082 = vadd.f32 %v1007, %v1041
        %v1083 = vadd.f32 %v1008, %v1045
        %v1084 = vadd.f32 %v1009, %v1041
        %v1085 = vadd.f32 %v1010, %v1045
        %v1086 = vadd.f32 %v1011, %v1041
        %v1087 = vadd.f32 %v1012, %v1045
        %v1088 = vadd.f32 %v1013, %v1041
        %v1089 = vadd.f32 %v1014, %v1045
        %v1090 = vadd.f32 %v1015, %v1041
        %v1091 = vadd.f32 %v1016, %v1045
        %v1092 = vadd.f32 %v1017, %v1041
        %v1093 = vadd.f32 %v1018, %v1045
        %v1094 = vadd.f32 %v1019, %v1041
        %v1095 = vadd.f32 %v1020, %v1045
        %v1096 = vadd.f32 %v1021, %v1041
        %v1097 = vadd.f32 %v1022, %v1045
        %v1098 = vadd.f32 %v1023, %v1041
        %v1099 = vadd.f32 %v1024, %v1045
        %v1100 = vadd.f32 %v1025, %v1041
        %v1101 = vadd.f32 %v1026, %v1045
        %v1102 = vadd.f32 %v1027, %v1041
        %v1103 = vadd.f32 %v1028, %v1045
        %v1104 = vadd.f32 %v1029, %v1041
        %v1105 = vadd.f32 %v1030, %v1045
        %v1106 = vadd.f32 %v1031, %v1041
        %v1107 = vadd.f32 %v1032, %v1045
        %v1108 = vadd.f32 %v1033, %v1041
        %v1109 = vadd.f32 %v1034, %v1045
        %v1110 = vadd.f32 %v1035, %v1041
        %v1111 = vadd.f32 %v1036, %v1045
        %v1112 = vpack.c.bf16 %v1050, %v1048
        %v1113 = vpack.c.bf16 %v1051, %v1049
        %v1114 = vpack.c.bf16 %v1054, %v1052
        %v1115 = vpack.c.bf16 %v1055, %v1053
        %v1116 = vpack.c.bf16 %v1058, %v1056
        %v1117 = vpack.c.bf16 %v1059, %v1057
        %v1118 = vpack.c.bf16 %v1062, %v1060
        %v1119 = vpack.c.bf16 %v1063, %v1061
        %v1120 = vpack.c.bf16 %v1066, %v1064
        %v1121 = vpack.c.bf16 %v1067, %v1065
        %v1122 = vpack.c.bf16 %v1070, %v1068
        %v1123 = vpack.c.bf16 %v1071, %v1069
        %v1124 = vpack.c.bf16 %v1074, %v1072
        %v1125 = vpack.c.bf16 %v1075, %v1073
        %v1126 = vpack.c.bf16 %v1078, %v1076
        %v1127 = vpack.c.bf16 %v1079, %v1077
        %v1128 = vpack.c.bf16 %v1082, %v1080
        %v1129 = vpack.c.bf16 %v1083, %v1081
        %v1130 = vpack.c.bf16 %v1086, %v1084
        %v1131 = vpack.c.bf16 %v1087, %v1085
        %v1132 = vpack.c.bf16 %v1090, %v1088
        %v1133 = vpack.c.bf16 %v1091, %v1089
        %v1134 = vpack.c.bf16 %v1094, %v1092
        %v1135 = vpack.c.bf16 %v1095, %v1093
        %v1136 = vpack.c.bf16 %v1098, %v1096
        %v1137 = vpack.c.bf16 %v1099, %v1097
        %v1138 = vpack.c.bf16 %v1102, %v1100
        %v1139 = vpack.c.bf16 %v1103, %v1101
        %v1140 = vpack.c.bf16 %v1106, %v1104
        %v1141 = vpack.c.bf16 %v1107, %v1105
        %v1142 = vpack.c.bf16 %v1110, %v1108
        %v1143 = vpack.c.bf16 %v1111, %v1109
        %v1144 = vld [vmem:[#allocation7] sm:$0xff]
        %v1145 = vld [vmem:[#allocation7 + $0x8] sm:$0xff]
        %v1146 = vld [vmem:[#allocation7 + $0x10] sm:$0xff]
        %v1147 = vld [vmem:[#allocation7 + $0x18] sm:$0xff]
        %v1148 = vld [vmem:[#allocation7 + $0x20] sm:$0xff]
        %v1149 = vld [vmem:[#allocation7 + $0x28] sm:$0xff]
        %v1150 = vld [vmem:[#allocation7 + $0x30] sm:$0xff]
        %v1151 = vld [vmem:[#allocation7 + $0x38] sm:$0xff]
        %v1152 = vld [vmem:[#allocation7 + $0x40] sm:$0xff]
        %v1153 = vld [vmem:[#allocation7 + $0x48] sm:$0xff]
        %v1154 = vld [vmem:[#allocation7 + $0x50] sm:$0xff]
        %v1155 = vld [vmem:[#allocation7 + $0x58] sm:$0xff]
        %v1156 = vld [vmem:[#allocation7 + $0x60] sm:$0xff]
        %v1157 = vld [vmem:[#allocation7 + $0x68] sm:$0xff]
        %v1158 = vld [vmem:[#allocation7 + $0x70] sm:$0xff]
        %v1159 = vld [vmem:[#allocation7 + $0x78] sm:$0xff]
        %v1160 = vld [vmem:[#allocation7 + $0x80] sm:$0xff]
        %v1161 = vld [vmem:[#allocation7 + $0x88] sm:$0xff]
        %v1162 = vld [vmem:[#allocation7 + $0x90] sm:$0xff]
        %v1163 = vld [vmem:[#allocation7 + $0x98] sm:$0xff]
        %v1164 = vld [vmem:[#allocation7 + $0xa0] sm:$0xff]
        %v1165 = vld [vmem:[#allocation7 + $0xa8] sm:$0xff]
        %v1166 = vld [vmem:[#allocation7 + $0xb0] sm:$0xff]
        %v1167 = vld [vmem:[#allocation7 + $0xb8] sm:$0xff]
        %v1168 = vld [vmem:[#allocation7 + $0xc0] sm:$0xff]
        %v1169 = vld [vmem:[#allocation7 + $0xc8] sm:$0xff]
        %v1170 = vld [vmem:[#allocation7 + $0xd0] sm:$0xff]
        %v1171 = vld [vmem:[#allocation7 + $0xd8] sm:$0xff]
        %v1172 = vld [vmem:[#allocation7 + $0xe0] sm:$0xff]
        %v1173 = vld [vmem:[#allocation7 + $0xe8] sm:$0xff]
        %v1174 = vld [vmem:[#allocation7 + $0xf0] sm:$0xff]
        %v1175 = vld [vmem:[#allocation7 + $0xf8] sm:$0xff]
        %v1176 = vld [vmem:[#allocation7 + $0x100] sm:$0xff]
        %v1177 = vld [vmem:[#allocation7 + $0x108] sm:$0xff]
        %v1178 = vld [vmem:[#allocation7 + $0x110] sm:$0xff]
        %v1179 = vld [vmem:[#allocation7 + $0x118] sm:$0xff]
        %v1180 = vld [vmem:[#allocation7 + $0x120] sm:$0xff]
        %v1181 = vld [vmem:[#allocation7 + $0x128] sm:$0xff]
        %v1182 = vld [vmem:[#allocation7 + $0x130] sm:$0xff]
        %v1183 = vld [vmem:[#allocation7 + $0x138] sm:$0xff]
        %v1184 = vld [vmem:[#allocation7 + $0x140] sm:$0xff]
        %v1185 = vld [vmem:[#allocation7 + $0x148] sm:$0xff]
        %v1186 = vld [vmem:[#allocation7 + $0x150] sm:$0xff]
        %v1187 = vld [vmem:[#allocation7 + $0x158] sm:$0xff]
        %v1188 = vld [vmem:[#allocation7 + $0x160] sm:$0xff]
        %v1189 = vld [vmem:[#allocation7 + $0x168] sm:$0xff]
        %v1190 = vld [vmem:[#allocation7 + $0x170] sm:$0xff]
        %v1191 = vld [vmem:[#allocation7 + $0x178] sm:$0xff]
        %v1192 = vld [vmem:[#allocation7 + $0x180] sm:$0xff]
        %v1193 = vld [vmem:[#allocation7 + $0x188] sm:$0xff]
        %v1194 = vld [vmem:[#allocation7 + $0x190] sm:$0xff]
        %v1195 = vld [vmem:[#allocation7 + $0x198] sm:$0xff]
        %v1196 = vld [vmem:[#allocation7 + $0x1a0] sm:$0xff]
        %v1197 = vld [vmem:[#allocation7 + $0x1a8] sm:$0xff]
        %v1198 = vld [vmem:[#allocation7 + $0x1b0] sm:$0xff]
        %v1199 = vld [vmem:[#allocation7 + $0x1b8] sm:$0xff]
        %v1200 = vld [vmem:[#allocation7 + $0x1c0] sm:$0xff]
        %v1201 = vld [vmem:[#allocation7 + $0x1c8] sm:$0xff]
        %v1202 = vld [vmem:[#allocation7 + $0x1d0] sm:$0xff]
        %v1203 = vld [vmem:[#allocation7 + $0x1d8] sm:$0xff]
        %v1204 = vld [vmem:[#allocation7 + $0x1e0] sm:$0xff]
        %v1205 = vld [vmem:[#allocation7 + $0x1e8] sm:$0xff]
        %v1206 = vld [vmem:[#allocation7 + $0x1f0] sm:$0xff]
        %v1207 = vld [vmem:[#allocation7 + $0x1f8] sm:$0xff]
        %v1272 = vunpack.c.l.b16 %v1144
        %v1273 = vunpack.c.h.b16 %v1144
        %v1274 = vunpack.c.l.b16 %v1145
        %v1275 = vunpack.c.h.b16 %v1145
        %v1276 = vunpack.c.l.b16 %v1146
        %v1277 = vunpack.c.h.b16 %v1146
        %v1278 = vunpack.c.l.b16 %v1147
        %v1279 = vunpack.c.h.b16 %v1147
        %v1280 = vunpack.c.l.b16 %v1148
        %v1281 = vunpack.c.h.b16 %v1148
        %v1282 = vunpack.c.l.b16 %v1149
        %v1283 = vunpack.c.h.b16 %v1149
        %v1284 = vunpack.c.l.b16 %v1150
        %v1285 = vunpack.c.h.b16 %v1150
        %v1286 = vunpack.c.l.b16 %v1151
        %v1287 = vunpack.c.h.b16 %v1151
        %v1288 = vunpack.c.l.b16 %v1152
        %v1289 = vunpack.c.h.b16 %v1152
        %v1290 = vunpack.c.l.b16 %v1153
        %v1291 = vunpack.c.h.b16 %v1153
        %v1292 = vunpack.c.l.b16 %v1154
        %v1293 = vunpack.c.h.b16 %v1154
        %v1294 = vunpack.c.l.b16 %v1155
        %v1295 = vunpack.c.h.b16 %v1155
        %v1296 = vunpack.c.l.b16 %v1156
        %v1297 = vunpack.c.h.b16 %v1156
        %v1298 = vunpack.c.l.b16 %v1157
        %v1299 = vunpack.c.h.b16 %v1157
        %v1300 = vunpack.c.l.b16 %v1158
        %v1301 = vunpack.c.h.b16 %v1158
        %v1302 = vunpack.c.l.b16 %v1159
        %v1303 = vunpack.c.h.b16 %v1159
        %v1304 = vunpack.c.l.b16 %v1160
        %v1305 = vunpack.c.h.b16 %v1160
        %v1306 = vunpack.c.l.b16 %v1161
        %v1307 = vunpack.c.h.b16 %v1161
        %v1308 = vunpack.c.l.b16 %v1162
        %v1309 = vunpack.c.h.b16 %v1162
        %v1310 = vunpack.c.l.b16 %v1163
        %v1311 = vunpack.c.h.b16 %v1163
        %v1312 = vunpack.c.l.b16 %v1164
        %v1313 = vunpack.c.h.b16 %v1164
        %v1314 = vunpack.c.l.b16 %v1165
        %v1315 = vunpack.c.h.b16 %v1165
        %v1316 = vunpack.c.l.b16 %v1166
        %v1317 = vunpack.c.h.b16 %v1166
        %v1318 = vunpack.c.l.b16 %v1167
        %v1319 = vunpack.c.h.b16 %v1167
        %v1320 = vunpack.c.l.b16 %v1168
        %v1321 = vunpack.c.h.b16 %v1168
        %v1322 = vunpack.c.l.b16 %v1169
        %v1323 = vunpack.c.h.b16 %v1169
        %v1324 = vunpack.c.l.b16 %v1170
        %v1325 = vunpack.c.h.b16 %v1170
        %v1326 = vunpack.c.l.b16 %v1171
        %v1327 = vunpack.c.h.b16 %v1171
        %v1328 = vunpack.c.l.b16 %v1172
        %v1329 = vunpack.c.h.b16 %v1172
        %v1330 = vunpack.c.l.b16 %v1173
        %v1331 = vunpack.c.h.b16 %v1173
        %v1332 = vunpack.c.l.b16 %v1174
        %v1333 = vunpack.c.h.b16 %v1174
        %v1334 = vunpack.c.l.b16 %v1175
        %v1335 = vunpack.c.h.b16 %v1175
        %v1336 = vunpack.c.l.b16 %v1176
        %v1337 = vunpack.c.h.b16 %v1176
        %v1338 = vunpack.c.l.b16 %v1177
        %v1339 = vunpack.c.h.b16 %v1177
        %v1340 = vunpack.c.l.b16 %v1178
        %v1341 = vunpack.c.h.b16 %v1178
        %v1342 = vunpack.c.l.b16 %v1179
        %v1343 = vunpack.c.h.b16 %v1179
        %v1344 = vunpack.c.l.b16 %v1180
        %v1345 = vunpack.c.h.b16 %v1180
        %v1346 = vunpack.c.l.b16 %v1181
        %v1347 = vunpack.c.h.b16 %v1181
        %v1348 = vunpack.c.l.b16 %v1182
        %v1349 = vunpack.c.h.b16 %v1182
        %v1350 = vunpack.c.l.b16 %v1183
        %v1351 = vunpack.c.h.b16 %v1183
        %v1352 = vunpack.c.l.b16 %v1184
        %v1353 = vunpack.c.h.b16 %v1184
        %v1354 = vunpack.c.l.b16 %v1185
        %v1355 = vunpack.c.h.b16 %v1185
        %v1356 = vunpack.c.l.b16 %v1186
        %v1357 = vunpack.c.h.b16 %v1186
        %v1358 = vunpack.c.l.b16 %v1187
        %v1359 = vunpack.c.h.b16 %v1187
        %v1360 = vunpack.c.l.b16 %v1188
        %v1361 = vunpack.c.h.b16 %v1188
        %v1362 = vunpack.c.l.b16 %v1189
        %v1363 = vunpack.c.h.b16 %v1189
        %v1364 = vunpack.c.l.b16 %v1190
        %v1365 = vunpack.c.h.b16 %v1190
        %v1366 = vunpack.c.l.b16 %v1191
        %v1367 = vunpack.c.h.b16 %v1191
        %v1368 = vunpack.c.l.b16 %v1192
        %v1369 = vunpack.c.h.b16 %v1192
        %v1370 = vunpack.c.l.b16 %v1193
        %v1371 = vunpack.c.h.b16 %v1193
        %v1372 = vunpack.c.l.b16 %v1194
        %v1373 = vunpack.c.h.b16 %v1194
        %v1374 = vunpack.c.l.b16 %v1195
        %v1375 = vunpack.c.h.b16 %v1195
        %v1376 = vunpack.c.l.b16 %v1196
        %v1377 = vunpack.c.h.b16 %v1196
        %v1378 = vunpack.c.l.b16 %v1197
        %v1379 = vunpack.c.h.b16 %v1197
        %v1380 = vunpack.c.l.b16 %v1198
        %v1381 = vunpack.c.h.b16 %v1198
        %v1382 = vunpack.c.l.b16 %v1199
        %v1383 = vunpack.c.h.b16 %v1199
        %v1384 = vunpack.c.l.b16 %v1200
        %v1385 = vunpack.c.h.b16 %v1200
        %v1386 = vunpack.c.l.b16 %v1201
        %v1387 = vunpack.c.h.b16 %v1201
        %v1388 = vunpack.c.l.b16 %v1202
        %v1389 = vunpack.c.h.b16 %v1202
        %v1390 = vunpack.c.l.b16 %v1203
        %v1391 = vunpack.c.h.b16 %v1203
        %v1392 = vunpack.c.l.b16 %v1204
        %v1393 = vunpack.c.h.b16 %v1204
        %v1394 = vunpack.c.l.b16 %v1205
        %v1395 = vunpack.c.h.b16 %v1205
        %v1396 = vunpack.c.l.b16 %v1206
        %v1397 = vunpack.c.h.b16 %v1206
        %v1398 = vunpack.c.l.b16 %v1207
        %v1399 = vunpack.c.h.b16 %v1207
        %v1400 = vpack.c.b16 %v1276, %v1272
        %v1401 = vpack.c.b16 %v1277, %v1273
        %v1402 = vpack.c.b16 %v1278, %v1274
        %v1403 = vpack.c.b16 %v1279, %v1275
        %v1404 = vpack.c.b16 %v1284, %v1280
        %v1405 = vpack.c.b16 %v1285, %v1281
        %v1406 = vpack.c.b16 %v1286, %v1282
        %v1407 = vpack.c.b16 %v1287, %v1283
        %v1408 = vpack.c.b16 %v1292, %v1288
        %v1409 = vpack.c.b16 %v1293, %v1289
        %v1410 = vpack.c.b16 %v1294, %v1290
        %v1411 = vpack.c.b16 %v1295, %v1291
        %v1412 = vpack.c.b16 %v1300, %v1296
        %v1413 = vpack.c.b16 %v1301, %v1297
        %v1414 = vpack.c.b16 %v1302, %v1298
        %v1415 = vpack.c.b16 %v1303, %v1299
        %v1416 = vpack.c.b16 %v1308, %v1304
        %v1417 = vpack.c.b16 %v1309, %v1305
        %v1418 = vpack.c.b16 %v1310, %v1306
        %v1419 = vpack.c.b16 %v1311, %v1307
        %v1420 = vpack.c.b16 %v1316, %v1312
        %v1421 = vpack.c.b16 %v1317, %v1313
        %v1422 = vpack.c.b16 %v1318, %v1314
        %v1423 = vpack.c.b16 %v1319, %v1315
        %v1424 = vpack.c.b16 %v1324, %v1320
        %v1425 = vpack.c.b16 %v1325, %v1321
        %v1426 = vpack.c.b16 %v1326, %v1322
        %v1427 = vpack.c.b16 %v1327, %v1323
        %v1428 = vpack.c.b16 %v1332, %v1328
        %v1429 = vpack.c.b16 %v1333, %v1329
        %v1430 = vpack.c.b16 %v1334, %v1330
        %v1431 = vpack.c.b16 %v1335, %v1331
        %v1432 = vpack.c.b16 %v1340, %v1336
        %v1433 = vpack.c.b16 %v1341, %v1337
        %v1434 = vpack.c.b16 %v1342, %v1338
        %v1435 = vpack.c.b16 %v1343, %v1339
        %v1436 = vpack.c.b16 %v1348, %v1344
        %v1437 = vpack.c.b16 %v1349, %v1345
        %v1438 = vpack.c.b16 %v1350, %v1346
        %v1439 = vpack.c.b16 %v1351, %v1347
        %v1440 = vpack.c.b16 %v1356, %v1352
        %v1441 = vpack.c.b16 %v1357, %v1353
        %v1442 = vpack.c.b16 %v1358, %v1354
        %v1443 = vpack.c.b16 %v1359, %v1355
        %v1444 = vpack.c.b16 %v1364, %v1360
        %v1445 = vpack.c.b16 %v1365, %v1361
        %v1446 = vpack.c.b16 %v1366, %v1362
        %v1447 = vpack.c.b16 %v1367, %v1363
        %v1448 = vpack.c.b16 %v1372, %v1368
        %v1449 = vpack.c.b16 %v1373, %v1369
        %v1450 = vpack.c.b16 %v1374, %v1370
        %v1451 = vpack.c.b16 %v1375, %v1371
        %v1452 = vpack.c.b16 %v1380, %v1376
        %v1453 = vpack.c.b16 %v1381, %v1377
        %v1454 = vpack.c.b16 %v1382, %v1378
        %v1455 = vpack.c.b16 %v1383, %v1379
        %v1456 = vpack.c.b16 %v1388, %v1384
        %v1457 = vpack.c.b16 %v1389, %v1385
        %v1458 = vpack.c.b16 %v1390, %v1386
        %v1459 = vpack.c.b16 %v1391, %v1387
        %v1460 = vpack.c.b16 %v1396, %v1392
        %v1461 = vpack.c.b16 %v1397, %v1393
        %v1462 = vpack.c.b16 %v1398, %v1394
        %v1463 = vpack.c.b16 %v1399, %v1395
        %1528 = vmatprep.subr.bf16.mxu0 %v1401
        %1529 = vmatpush1.bf16.msra.mxu0 %v1400
        %1530 = vmatprep.subr.bf16.mxu0 %v1405
        %1531 = vmatpush1.bf16.msra.mxu0 %v1404
        %1532 = vmatprep.subr.bf16.mxu0 %v1409
        %1533 = vmatpush1.bf16.msra.mxu0 %v1408
        %1534 = vmatprep.subr.bf16.mxu0 %v1413
        %1535 = vmatpush1.bf16.msra.mxu0 %v1412
        %1536 = vmatprep.subr.bf16.mxu0 %v1417
        %1537 = vmatpush1.bf16.msra.mxu0 %v1416
        %1538 = vmatprep.subr.bf16.mxu0 %v1421
        %1539 = vmatpush1.bf16.msra.mxu0 %v1420
        %1540 = vmatprep.subr.bf16.mxu0 %v1425
        %1541 = vmatpush1.bf16.msra.mxu0 %v1424
        %1542 = vmatprep.subr.bf16.mxu0 %v1429
        %1543 = vmatpush1.bf16.msra.mxu0 %v1428
        %1544 = vmatprep.subr.bf16.mxu0 %v1433
        %1545 = vmatpush1.bf16.msra.mxu0 %v1432
        %1546 = vmatprep.subr.bf16.mxu0 %v1437
        %1547 = vmatpush1.bf16.msra.mxu0 %v1436
        %1548 = vmatprep.subr.bf16.mxu0 %v1441
        %1549 = vmatpush1.bf16.msra.mxu0 %v1440
        %1550 = vmatprep.subr.bf16.mxu0 %v1445
        %1551 = vmatpush1.bf16.msra.mxu0 %v1444
        %1552 = vmatprep.subr.bf16.mxu0 %v1449
        %1553 = vmatpush1.bf16.msra.mxu0 %v1448
        %1554 = vmatprep.subr.bf16.mxu0 %v1453
        %1555 = vmatpush1.bf16.msra.mxu0 %v1452
        %1556 = vmatprep.subr.bf16.mxu0 %v1457
        %1557 = vmatpush1.bf16.msra.mxu0 %v1456
        %1558 = vmatprep.subr.bf16.mxu0 %v1461
        %1559 = vmatpush1.bf16.msra.mxu0 %v1460
        %1560 = vmatprep.mubr.bf16.mxu0 %v1113
        %1561 = vmatmul.mubr.bf16.gmra.mrb[0].mxu0 %v1112
        %v1562 = vpop.f32.mrb[0].mxu0
        %v1563 = vadd.f32 0.0, %v1562
        %v1564 = vpop.f32.mrb[0].mxu0
        %v1565 = vadd.f32 0.0, %v1564
        %v1566 = vpop.f32.mrb[0].mxu0
        %v1567 = vadd.f32 0.0, %v1566
        %v1568 = vpop.f32.mrb[0].mxu0
        %v1569 = vadd.f32 0.0, %v1568
        %1570 = vmatprep.mubr.bf16.mxu0 %v1115
        %1571 = vmatmul.mubr.bf16.gmra.mrb[0].mxu0 %v1114
        %v1572 = vpop.f32.mrb[0].mxu0
        %v1573 = vadd.f32 0.0, %v1572
        %v1574 = vpop.f32.mrb[0].mxu0
        %v1575 = vadd.f32 0.0, %v1574
        %v1576 = vpop.f32.mrb[0].mxu0
        %v1577 = vadd.f32 0.0, %v1576
        %v1578 = vpop.f32.mrb[0].mxu0
        %v1579 = vadd.f32 0.0, %v1578
        %1580 = vmatprep.mubr.bf16.mxu0 %v1117
        %1581 = vmatmul.mubr.bf16.gmra.mrb[0].mxu0 %v1116
        %v1582 = vpop.f32.mrb[0].mxu0
        %v1583 = vadd.f32 0.0, %v1582
        %v1584 = vpop.f32.mrb[0].mxu0
        %v1585 = vadd.f32 0.0, %v1584
        %v1586 = vpop.f32.mrb[0].mxu0
        %v1587 = vadd.f32 0.0, %v1586
        %v1588 = vpop.f32.mrb[0].mxu0
        %v1589 = vadd.f32 0.0, %v1588
        %1590 = vmatprep.mubr.bf16.mxu0 %v1119
        %1591 = vmatmul.mubr.bf16.gmra.mrb[0].mxu0 %v1118
        %v1592 = vpop.f32.mrb[0].mxu0
        %v1593 = vadd.f32 0.0, %v1592
        %v1594 = vpop.f32.mrb[0].mxu0
        %v1595 = vadd.f32 0.0, %v1594
        %v1596 = vpop.f32.mrb[0].mxu0
        %v1597 = vadd.f32 0.0, %v1596
        %v1598 = vpop.f32.mrb[0].mxu0
        %v1599 = vadd.f32 0.0, %v1598
        %1600 = vmatprep.mubr.bf16.mxu0 %v1121
        %1601 = vmatmul.mubr.bf16.gmra.mrb[0].mxu0 %v1120
        %v1602 = vpop.f32.mrb[0].mxu0
        %v1603 = vadd.f32 0.0, %v1602
        %v1604 = vpop.f32.mrb[0].mxu0
        %v1605 = vadd.f32 0.0, %v1604
        %v1606 = vpop.f32.mrb[0].mxu0
        %v1607 = vadd.f32 0.0, %v1606
        %v1608 = vpop.f32.mrb[0].mxu0
        %v1609 = vadd.f32 0.0, %v1608
        %1610 = vmatprep.mubr.bf16.mxu0 %v1123
        %1611 = vmatmul.mubr.bf16.gmra.mrb[0].mxu0 %v1122
        %v1612 = vpop.f32.mrb[0].mxu0
        %v1613 = vadd.f32 0.0, %v1612
        %v1614 = vpop.f32.mrb[0].mxu0
        %v1615 = vadd.f32 0.0, %v1614
        %v1616 = vpop.f32.mrb[0].mxu0
        %v1617 = vadd.f32 0.0, %v1616
        %v1618 = vpop.f32.mrb[0].mxu0
        %v1619 = vadd.f32 0.0, %v1618
        %1620 = vmatprep.mubr.bf16.mxu0 %v1125
        %1621 = vmatmul.mubr.bf16.gmra.mrb[0].mxu0 %v1124
        %v1622 = vpop.f32.mrb[0].mxu0
        %v1623 = vadd.f32 0.0, %v1622
        %v1624 = vpop.f32.mrb[0].mxu0
        %v1625 = vadd.f32 0.0, %v1624
        %v1626 = vpop.f32.mrb[0].mxu0
        %v1627 = vadd.f32 0.0, %v1626
        %v1628 = vpop.f32.mrb[0].mxu0
        %v1629 = vadd.f32 0.0, %v1628
        %1630 = vmatprep.mubr.bf16.mxu0 %v1127
        %1631 = vmatmul.mubr.bf16.gmra.mrb[0].mxu0 %v1126
        %v1632 = vpop.f32.mrb[0].mxu0
        %v1633 = vadd.f32 0.0, %v1632
        %v1634 = vpop.f32.mrb[0].mxu0
        %v1635 = vadd.f32 0.0, %v1634
        %v1636 = vpop.f32.mrb[0].mxu0
        %v1637 = vadd.f32 0.0, %v1636
        %v1638 = vpop.f32.mrb[0].mxu0
        %v1639 = vadd.f32 0.0, %v1638
        %1640 = vmatprep.mubr.bf16.mxu0 %v1129
        %1641 = vmatmul.mubr.bf16.gmra.mrb[0].mxu0 %v1128
        %v1642 = vpop.f32.mrb[0].mxu0
        %v1643 = vadd.f32 0.0, %v1642
        %v1644 = vpop.f32.mrb[0].mxu0
        %v1645 = vadd.f32 0.0, %v1644
        %v1646 = vpop.f32.mrb[0].mxu0
        %v1647 = vadd.f32 0.0, %v1646
        %v1648 = vpop.f32.mrb[0].mxu0
        %v1649 = vadd.f32 0.0, %v1648
        %1650 = vmatprep.mubr.bf16.mxu0 %v1131
        %1651 = vmatmul.mubr.bf16.gmra.mrb[0].mxu0 %v1130
        %v1652 = vpop.f32.mrb[0].mxu0
        %v1653 = vadd.f32 0.0, %v1652
        %v1654 = vpop.f32.mrb[0].mxu0
        %v1655 = vadd.f32 0.0, %v1654
        %v1656 = vpop.f32.mrb[0].mxu0
        %v1657 = vadd.f32 0.0, %v1656
        %v1658 = vpop.f32.mrb[0].mxu0
        %v1659 = vadd.f32 0.0, %v1658
        %1660 = vmatprep.mubr.bf16.mxu0 %v1133
        %1661 = vmatmul.mubr.bf16.gmra.mrb[0].mxu0 %v1132
        %v1662 = vpop.f32.mrb[0].mxu0
        %v1663 = vadd.f32 0.0, %v1662
        %v1664 = vpop.f32.mrb[0].mxu0
        %v1665 = vadd.f32 0.0, %v1664
        %v1666 = vpop.f32.mrb[0].mxu0
        %v1667 = vadd.f32 0.0, %v1666
        %v1668 = vpop.f32.mrb[0].mxu0
        %v1669 = vadd.f32 0.0, %v1668
        %1670 = vmatprep.mubr.bf16.mxu0 %v1135
        %1671 = vmatmul.mubr.bf16.gmra.mrb[0].mxu0 %v1134
        %v1672 = vpop.f32.mrb[0].mxu0
        %v1673 = vadd.f32 0.0, %v1672
        %v1674 = vpop.f32.mrb[0].mxu0
        %v1675 = vadd.f32 0.0, %v1674
        %v1676 = vpop.f32.mrb[0].mxu0
        %v1677 = vadd.f32 0.0, %v1676
        %v1678 = vpop.f32.mrb[0].mxu0
        %v1679 = vadd.f32 0.0, %v1678
        %1680 = vmatprep.mubr.bf16.mxu0 %v1137
        %1681 = vmatmul.mubr.bf16.gmra.mrb[0].mxu0 %v1136
        %v1682 = vpop.f32.mrb[0].mxu0
        %v1683 = vadd.f32 0.0, %v1682
        %v1684 = vpop.f32.mrb[0].mxu0
        %v1685 = vadd.f32 0.0, %v1684
        %v1686 = vpop.f32.mrb[0].mxu0
        %v1687 = vadd.f32 0.0, %v1686
        %v1688 = vpop.f32.mrb[0].mxu0
        %v1689 = vadd.f32 0.0, %v1688
        %1690 = vmatprep.mubr.bf16.mxu0 %v1139
        %1691 = vmatmul.mubr.bf16.gmra.mrb[0].mxu0 %v1138
        %v1692 = vpop.f32.mrb[0].mxu0
        %v1693 = vadd.f32 0.0, %v1692
        %v1694 = vpop.f32.mrb[0].mxu0
        %v1695 = vadd.f32 0.0, %v1694
        %v1696 = vpop.f32.mrb[0].mxu0
        %v1697 = vadd.f32 0.0, %v1696
        %v1698 = vpop.f32.mrb[0].mxu0
        %v1699 = vadd.f32 0.0, %v1698
        %1700 = vmatprep.mubr.bf16.mxu0 %v1141
        %1701 = vmatmul.mubr.bf16.gmra.mrb[0].mxu0 %v1140
        %v1702 = vpop.f32.mrb[0].mxu0
        %v1703 = vadd.f32 0.0, %v1702
        %v1704 = vpop.f32.mrb[0].mxu0
        %v1705 = vadd.f32 0.0, %v1704
        %v1706 = vpop.f32.mrb[0].mxu0
        %v1707 = vadd.f32 0.0, %v1706
        %v1708 = vpop.f32.mrb[0].mxu0
        %v1709 = vadd.f32 0.0, %v1708
        %1710 = vmatprep.mubr.bf16.mxu0 %v1143
        %1711 = vmatmul.mubr.bf16.gmra.mrb[0].mxu0 %v1142
        %v1712 = vpop.f32.mrb[0].mxu0
        %v1713 = vadd.f32 0.0, %v1712
        %v1714 = vpop.f32.mrb[0].mxu0
        %v1715 = vadd.f32 0.0, %v1714
        %v1716 = vpop.f32.mrb[0].mxu0
        %v1717 = vadd.f32 0.0, %v1716
        %v1718 = vpop.f32.mrb[0].mxu0
        %v1719 = vadd.f32 0.0, %v1718
        %1720 = vdwg.mxu0
        %1721 = vmatprep.subr.bf16.mxu0 %v1403
        %1722 = vmatpush1.bf16.msra.mxu0 %v1402
        %1723 = vmatprep.subr.bf16.mxu0 %v1407
        %1724 = vmatpush1.bf16.msra.mxu0 %v1406
        %1725 = vmatprep.subr.bf16.mxu0 %v1411
        %1726 = vmatpush1.bf16.msra.mxu0 %v1410
        %1727 = vmatprep.subr.bf16.mxu0 %v1415
        %1728 = vmatpush1.bf16.msra.mxu0 %v1414
        %1729 = vmatprep.subr.bf16.mxu0 %v1419
        %1730 = vmatpush1.bf16.msra.mxu0 %v1418
        %1731 = vmatprep.subr.bf16.mxu0 %v1423
        %1732 = vmatpush1.bf16.msra.mxu0 %v1422
        %1733 = vmatprep.subr.bf16.mxu0 %v1427
        %1734 = vmatpush1.bf16.msra.mxu0 %v1426
        %1735 = vmatprep.subr.bf16.mxu0 %v1431
        %1736 = vmatpush1.bf16.msra.mxu0 %v1430
        %1737 = vmatprep.subr.bf16.mxu0 %v1435
        %1738 = vmatpush1.bf16.msra.mxu0 %v1434
        %1739 = vmatprep.subr.bf16.mxu0 %v1439
        %1740 = vmatpush1.bf16.msra.mxu0 %v1438
        %1741 = vmatprep.subr.bf16.mxu0 %v1443
        %1742 = vmatpush1.bf16.msra.mxu0 %v1442
        %1743 = vmatprep.subr.bf16.mxu0 %v1447
        %1744 = vmatpush1.bf16.msra.mxu0 %v1446
        %1745 = vmatprep.subr.bf16.mxu0 %v1451
        %1746 = vmatpush1.bf16.msra.mxu0 %v1450
        %1747 = vmatprep.subr.bf16.mxu0 %v1455
        %1748 = vmatpush1.bf16.msra.mxu0 %v1454
        %1749 = vmatprep.subr.bf16.mxu0 %v1459
        %1750 = vmatpush1.bf16.msra.mxu0 %v1458
        %1751 = vmatprep.subr.bf16.mxu0 %v1463
        %1752 = vmatpush1.bf16.msra.mxu0 %v1462
        %1753 = vmatprep.mubr.bf16.mxu0 %v1113
        %1754 = vmatmul.mubr.bf16.gmra.mrb[0].mxu0 %v1112
        %v1755 = vpop.f32.mrb[0].mxu0
        %v1756 = vadd.f32 0.0, %v1755
        %v1757 = vpop.f32.mrb[0].mxu0
        %v1758 = vadd.f32 0.0, %v1757
        %v1759 = vpop.f32.mrb[0].mxu0
        %v1760 = vadd.f32 0.0, %v1759
        %v1761 = vpop.f32.mrb[0].mxu0
        %v1762 = vadd.f32 0.0, %v1761
        %1763 = vmatprep.mubr.bf16.mxu0 %v1115
        %1764 = vmatmul.mubr.bf16.gmra.mrb[0].mxu0 %v1114
        %v1765 = vpop.f32.mrb[0].mxu0
        %v1766 = vadd.f32 0.0, %v1765
        %v1767 = vpop.f32.mrb[0].mxu0
        %v1768 = vadd.f32 0.0, %v1767
        %v1769 = vpop.f32.mrb[0].mxu0
        %v1770 = vadd.f32 0.0, %v1769
        %v1771 = vpop.f32.mrb[0].mxu0
        %v1772 = vadd.f32 0.0, %v1771
        %1773 = vmatprep.mubr.bf16.mxu0 %v1117
        %1774 = vmatmul.mubr.bf16.gmra.mrb[0].mxu0 %v1116
        %v1775 = vpop.f32.mrb[0].mxu0
        %v1776 = vadd.f32 0.0, %v1775
        %v1777 = vpop.f32.mrb[0].mxu0
        %v1778 = vadd.f32 0.0, %v1777
        %v1779 = vpop.f32.mrb[0].mxu0
        %v1780 = vadd.f32 0.0, %v1779
        %v1781 = vpop.f32.mrb[0].mxu0
        %v1782 = vadd.f32 0.0, %v1781
        %1783 = vmatprep.mubr.bf16.mxu0 %v1119
        %1784 = vmatmul.mubr.bf16.gmra.mrb[0].mxu0 %v1118
        %v1785 = vpop.f32.mrb[0].mxu0
        %v1786 = vadd.f32 0.0, %v1785
        %v1787 = vpop.f32.mrb[0].mxu0
        %v1788 = vadd.f32 0.0, %v1787
        %v1789 = vpop.f32.mrb[0].mxu0
        %v1790 = vadd.f32 0.0, %v1789
        %v1791 = vpop.f32.mrb[0].mxu0
        %v1792 = vadd.f32 0.0, %v1791
        %1793 = vmatprep.mubr.bf16.mxu0 %v1121
        %1794 = vmatmul.mubr.bf16.gmra.mrb[0].mxu0 %v1120
        %v1795 = vpop.f32.mrb[0].mxu0
        %v1796 = vadd.f32 0.0, %v1795
        %v1797 = vpop.f32.mrb[0].mxu0
        %v1798 = vadd.f32 0.0, %v1797
        %v1799 = vpop.f32.mrb[0].mxu0
        %v1800 = vadd.f32 0.0, %v1799
        %v1801 = vpop.f32.mrb[0].mxu0
        %v1802 = vadd.f32 0.0, %v1801
        %1803 = vmatprep.mubr.bf16.mxu0 %v1123
        %1804 = vmatmul.mubr.bf16.gmra.mrb[0].mxu0 %v1122
        %v1805 = vpop.f32.mrb[0].mxu0
        %v1806 = vadd.f32 0.0, %v1805
        %v1807 = vpop.f32.mrb[0].mxu0
        %v1808 = vadd.f32 0.0, %v1807
        %v1809 = vpop.f32.mrb[0].mxu0
        %v1810 = vadd.f32 0.0, %v1809
        %v1811 = vpop.f32.mrb[0].mxu0
        %v1812 = vadd.f32 0.0, %v1811
        %1813 = vmatprep.mubr.bf16.mxu0 %v1125
        %1814 = vmatmul.mubr.bf16.gmra.mrb[0].mxu0 %v1124
        %v1815 = vpop.f32.mrb[0].mxu0
        %v1816 = vadd.f32 0.0, %v1815
        %v1817 = vpop.f32.mrb[0].mxu0
        %v1818 = vadd.f32 0.0, %v1817
        %v1819 = vpop.f32.mrb[0].mxu0
        %v1820 = vadd.f32 0.0, %v1819
        %v1821 = vpop.f32.mrb[0].mxu0
        %v1822 = vadd.f32 0.0, %v1821
        %1823 = vmatprep.mubr.bf16.mxu0 %v1127
        %1824 = vmatmul.mubr.bf16.gmra.mrb[0].mxu0 %v1126
        %v1825 = vpop.f32.mrb[0].mxu0
        %v1826 = vadd.f32 0.0, %v1825
        %v1827 = vpop.f32.mrb[0].mxu0
        %v1828 = vadd.f32 0.0, %v1827
        %v1829 = vpop.f32.mrb[0].mxu0
        %v1830 = vadd.f32 0.0, %v1829
        %v1831 = vpop.f32.mrb[0].mxu0
        %v1832 = vadd.f32 0.0, %v1831
        %1833 = vmatprep.mubr.bf16.mxu0 %v1129
        %1834 = vmatmul.mubr.bf16.gmra.mrb[0].mxu0 %v1128
        %v1835 = vpop.f32.mrb[0].mxu0
        %v1836 = vadd.f32 0.0, %v1835
        %v1837 = vpop.f32.mrb[0].mxu0
        %v1838 = vadd.f32 0.0, %v1837
        %v1839 = vpop.f32.mrb[0].mxu0
        %v1840 = vadd.f32 0.0, %v1839
        %v1841 = vpop.f32.mrb[0].mxu0
        %v1842 = vadd.f32 0.0, %v1841
        %1843 = vmatprep.mubr.bf16.mxu0 %v1131
        %1844 = vmatmul.mubr.bf16.gmra.mrb[0].mxu0 %v1130
        %v1845 = vpop.f32.mrb[0].mxu0
        %v1846 = vadd.f32 0.0, %v1845
        %v1847 = vpop.f32.mrb[0].mxu0
        %v1848 = vadd.f32 0.0, %v1847
        %v1849 = vpop.f32.mrb[0].mxu0
        %v1850 = vadd.f32 0.0, %v1849
        %v1851 = vpop.f32.mrb[0].mxu0
        %v1852 = vadd.f32 0.0, %v1851
        %1853 = vmatprep.mubr.bf16.mxu0 %v1133
        %1854 = vmatmul.mubr.bf16.gmra.mrb[0].mxu0 %v1132
        %v1855 = vpop.f32.mrb[0].mxu0
        %v1856 = vadd.f32 0.0, %v1855
        %v1857 = vpop.f32.mrb[0].mxu0
        %v1858 = vadd.f32 0.0, %v1857
        %v1859 = vpop.f32.mrb[0].mxu0
        %v1860 = vadd.f32 0.0, %v1859
        %v1861 = vpop.f32.mrb[0].mxu0
        %v1862 = vadd.f32 0.0, %v1861
        %1863 = vmatprep.mubr.bf16.mxu0 %v1135
        %1864 = vmatmul.mubr.bf16.gmra.mrb[0].mxu0 %v1134
        %v1865 = vpop.f32.mrb[0].mxu0
        %v1866 = vadd.f32 0.0, %v1865
        %v1867 = vpop.f32.mrb[0].mxu0
        %v1868 = vadd.f32 0.0, %v1867
        %v1869 = vpop.f32.mrb[0].mxu0
        %v1870 = vadd.f32 0.0, %v1869
        %v1871 = vpop.f32.mrb[0].mxu0
        %v1872 = vadd.f32 0.0, %v1871
        %1873 = vmatprep.mubr.bf16.mxu0 %v1137
        %1874 = vmatmul.mubr.bf16.gmra.mrb[0].mxu0 %v1136
        %v1875 = vpop.f32.mrb[0].mxu0
        %v1876 = vadd.f32 0.0, %v1875
        %v1877 = vpop.f32.mrb[0].mxu0
        %v1878 = vadd.f32 0.0, %v1877
        %v1879 = vpop.f32.mrb[0].mxu0
        %v1880 = vadd.f32 0.0, %v1879
        %v1881 = vpop.f32.mrb[0].mxu0
        %v1882 = vadd.f32 0.0, %v1881
        %1883 = vmatprep.mubr.bf16.mxu0 %v1139
        %1884 = vmatmul.mubr.bf16.gmra.mrb[0].mxu0 %v1138
        %v1885 = vpop.f32.mrb[0].mxu0
        %v1886 = vadd.f32 0.0, %v1885
        %v1887 = vpop.f32.mrb[0].mxu0
        %v1888 = vadd.f32 0.0, %v1887
        %v1889 = vpop.f32.mrb[0].mxu0
        %v1890 = vadd.f32 0.0, %v1889
        %v1891 = vpop.f32.mrb[0].mxu0
        %v1892 = vadd.f32 0.0, %v1891
        %1893 = vmatprep.mubr.bf16.mxu0 %v1141
        %1894 = vmatmul.mubr.bf16.gmra.mrb[0].mxu0 %v1140
        %v1895 = vpop.f32.mrb[0].mxu0
        %v1896 = vadd.f32 0.0, %v1895
        %v1897 = vpop.f32.mrb[0].mxu0
        %v1898 = vadd.f32 0.0, %v1897
        %v1899 = vpop.f32.mrb[0].mxu0
        %v1900 = vadd.f32 0.0, %v1899
        %v1901 = vpop.f32.mrb[0].mxu0
        %v1902 = vadd.f32 0.0, %v1901
        %1903 = vmatprep.mubr.bf16.mxu0 %v1143
        %1904 = vmatmul.mubr.bf16.gmra.mrb[0].mxu0 %v1142
        %v1905 = vpop.f32.mrb[0].mxu0
        %v1906 = vadd.f32 0.0, %v1905
        %v1907 = vpop.f32.mrb[0].mxu0
        %v1908 = vadd.f32 0.0, %v1907
        %v1909 = vpop.f32.mrb[0].mxu0
        %v1910 = vadd.f32 0.0, %v1909
        %v1911 = vpop.f32.mrb[0].mxu0
        %v1912 = vadd.f32 0.0, %v1911
        %1913 = vdwg.mxu0
        %v1914 = vld [vmem:[#allocation8] sm:$0xff]
        %v1915 = vld [vmem:[#allocation8 + $0x8] sm:$0xff]
        %v1916 = vld [vmem:[#allocation8 + $0x10] sm:$0xff]
        %v1917 = vld [vmem:[#allocation8 + $0x18] sm:$0xff]
        %v1918 = vld [vmem:[#allocation8 + $0x20] sm:$0xff]
        %v1919 = vld [vmem:[#allocation8 + $0x28] sm:$0xff]
        %v1920 = vld [vmem:[#allocation8 + $0x30] sm:$0xff]
        %v1921 = vld [vmem:[#allocation8 + $0x38] sm:$0xff]
        %v1922 = vld [vmem:[#allocation8 + $0x40] sm:$0xff]
        %v1923 = vld [vmem:[#allocation8 + $0x48] sm:$0xff]
        %v1924 = vld [vmem:[#allocation8 + $0x50] sm:$0xff]
        %v1925 = vld [vmem:[#allocation8 + $0x58] sm:$0xff]
        %v1926 = vld [vmem:[#allocation8 + $0x60] sm:$0xff]
        %v1927 = vld [vmem:[#allocation8 + $0x68] sm:$0xff]
        %v1928 = vld [vmem:[#allocation8 + $0x70] sm:$0xff]
        %v1929 = vld [vmem:[#allocation8 + $0x78] sm:$0xff]
        %v1930 = vld [vmem:[#allocation8 + $0x80] sm:$0xff]
        %v1931 = vld [vmem:[#allocation8 + $0x88] sm:$0xff]
        %v1932 = vld [vmem:[#allocation8 + $0x90] sm:$0xff]
        %v1933 = vld [vmem:[#allocation8 + $0x98] sm:$0xff]
        %v1934 = vld [vmem:[#allocation8 + $0xa0] sm:$0xff]
        %v1935 = vld [vmem:[#allocation8 + $0xa8] sm:$0xff]
        %v1936 = vld [vmem:[#allocation8 + $0xb0] sm:$0xff]
        %v1937 = vld [vmem:[#allocation8 + $0xb8] sm:$0xff]
        %v1938 = vld [vmem:[#allocation8 + $0xc0] sm:$0xff]
        %v1939 = vld [vmem:[#allocation8 + $0xc8] sm:$0xff]
        %v1940 = vld [vmem:[#allocation8 + $0xd0] sm:$0xff]
        %v1941 = vld [vmem:[#allocation8 + $0xd8] sm:$0xff]
        %v1942 = vld [vmem:[#allocation8 + $0xe0] sm:$0xff]
        %v1943 = vld [vmem:[#allocation8 + $0xe8] sm:$0xff]
        %v1944 = vld [vmem:[#allocation8 + $0xf0] sm:$0xff]
        %v1945 = vld [vmem:[#allocation8 + $0xf8] sm:$0xff]
        %v1946 = vld [vmem:[#allocation8 + $0x100] sm:$0xff]
        %v1947 = vld [vmem:[#allocation8 + $0x108] sm:$0xff]
        %v1948 = vld [vmem:[#allocation8 + $0x110] sm:$0xff]
        %v1949 = vld [vmem:[#allocation8 + $0x118] sm:$0xff]
        %v1950 = vld [vmem:[#allocation8 + $0x120] sm:$0xff]
        %v1951 = vld [vmem:[#allocation8 + $0x128] sm:$0xff]
        %v1952 = vld [vmem:[#allocation8 + $0x130] sm:$0xff]
        %v1953 = vld [vmem:[#allocation8 + $0x138] sm:$0xff]
        %v1954 = vld [vmem:[#allocation8 + $0x140] sm:$0xff]
        %v1955 = vld [vmem:[#allocation8 + $0x148] sm:$0xff]
        %v1956 = vld [vmem:[#allocation8 + $0x150] sm:$0xff]
        %v1957 = vld [vmem:[#allocation8 + $0x158] sm:$0xff]
        %v1958 = vld [vmem:[#allocation8 + $0x160] sm:$0xff]
        %v1959 = vld [vmem:[#allocation8 + $0x168] sm:$0xff]
        %v1960 = vld [vmem:[#allocation8 + $0x170] sm:$0xff]
        %v1961 = vld [vmem:[#allocation8 + $0x178] sm:$0xff]
        %v1962 = vld [vmem:[#allocation8 + $0x180] sm:$0xff]
        %v1963 = vld [vmem:[#allocation8 + $0x188] sm:$0xff]
        %v1964 = vld [vmem:[#allocation8 + $0x190] sm:$0xff]
        %v1965 = vld [vmem:[#allocation8 + $0x198] sm:$0xff]
        %v1966 = vld [vmem:[#allocation8 + $0x1a0] sm:$0xff]
        %v1967 = vld [vmem:[#allocation8 + $0x1a8] sm:$0xff]
        %v1968 = vld [vmem:[#allocation8 + $0x1b0] sm:$0xff]
        %v1969 = vld [vmem:[#allocation8 + $0x1b8] sm:$0xff]
        %v1970 = vld [vmem:[#allocation8 + $0x1c0] sm:$0xff]
        %v1971 = vld [vmem:[#allocation8 + $0x1c8] sm:$0xff]
        %v1972 = vld [vmem:[#allocation8 + $0x1d0] sm:$0xff]
        %v1973 = vld [vmem:[#allocation8 + $0x1d8] sm:$0xff]
        %v1974 = vld [vmem:[#allocation8 + $0x1e0] sm:$0xff]
        %v1975 = vld [vmem:[#allocation8 + $0x1e8] sm:$0xff]
        %v1976 = vld [vmem:[#allocation8 + $0x1f0] sm:$0xff]
        %v1977 = vld [vmem:[#allocation8 + $0x1f8] sm:$0xff]
        %v2042 = vunpack.c.l.b16 %v1914
        %v2043 = vunpack.c.h.b16 %v1914
        %v2044 = vunpack.c.l.b16 %v1915
        %v2045 = vunpack.c.h.b16 %v1915
        %v2046 = vunpack.c.l.b16 %v1916
        %v2047 = vunpack.c.h.b16 %v1916
        %v2048 = vunpack.c.l.b16 %v1917
        %v2049 = vunpack.c.h.b16 %v1917
        %v2050 = vunpack.c.l.b16 %v1918
        %v2051 = vunpack.c.h.b16 %v1918
        %v2052 = vunpack.c.l.b16 %v1919
        %v2053 = vunpack.c.h.b16 %v1919
        %v2054 = vunpack.c.l.b16 %v1920
        %v2055 = vunpack.c.h.b16 %v1920
        %v2056 = vunpack.c.l.b16 %v1921
        %v2057 = vunpack.c.h.b16 %v1921
        %v2058 = vunpack.c.l.b16 %v1922
        %v2059 = vunpack.c.h.b16 %v1922
        %v2060 = vunpack.c.l.b16 %v1923
        %v2061 = vunpack.c.h.b16 %v1923
        %v2062 = vunpack.c.l.b16 %v1924
        %v2063 = vunpack.c.h.b16 %v1924
        %v2064 = vunpack.c.l.b16 %v1925
        %v2065 = vunpack.c.h.b16 %v1925
        %v2066 = vunpack.c.l.b16 %v1926
        %v2067 = vunpack.c.h.b16 %v1926
        %v2068 = vunpack.c.l.b16 %v1927
        %v2069 = vunpack.c.h.b16 %v1927
        %v2070 = vunpack.c.l.b16 %v1928
        %v2071 = vunpack.c.h.b16 %v1928
        %v2072 = vunpack.c.l.b16 %v1929
        %v2073 = vunpack.c.h.b16 %v1929
        %v2074 = vunpack.c.l.b16 %v1930
        %v2075 = vunpack.c.h.b16 %v1930
        %v2076 = vunpack.c.l.b16 %v1931
        %v2077 = vunpack.c.h.b16 %v1931
        %v2078 = vunpack.c.l.b16 %v1932
        %v2079 = vunpack.c.h.b16 %v1932
        %v2080 = vunpack.c.l.b16 %v1933
        %v2081 = vunpack.c.h.b16 %v1933
        %v2082 = vunpack.c.l.b16 %v1934
        %v2083 = vunpack.c.h.b16 %v1934
        %v2084 = vunpack.c.l.b16 %v1935
        %v2085 = vunpack.c.h.b16 %v1935
        %v2086 = vunpack.c.l.b16 %v1936
        %v2087 = vunpack.c.h.b16 %v1936
        %v2088 = vunpack.c.l.b16 %v1937
        %v2089 = vunpack.c.h.b16 %v1937
        %v2090 = vunpack.c.l.b16 %v1938
        %v2091 = vunpack.c.h.b16 %v1938
        %v2092 = vunpack.c.l.b16 %v1939
        %v2093 = vunpack.c.h.b16 %v1939
        %v2094 = vunpack.c.l.b16 %v1940
        %v2095 = vunpack.c.h.b16 %v1940
        %v2096 = vunpack.c.l.b16 %v1941
        %v2097 = vunpack.c.h.b16 %v1941
        %v2098 = vunpack.c.l.b16 %v1942
        %v2099 = vunpack.c.h.b16 %v1942
        %v2100 = vunpack.c.l.b16 %v1943
        %v2101 = vunpack.c.h.b16 %v1943
        %v2102 = vunpack.c.l.b16 %v1944
        %v2103 = vunpack.c.h.b16 %v1944
        %v2104 = vunpack.c.l.b16 %v1945
        %v2105 = vunpack.c.h.b16 %v1945
        %v2106 = vunpack.c.l.b16 %v1946
        %v2107 = vunpack.c.h.b16 %v1946
        %v2108 = vunpack.c.l.b16 %v1947
        %v2109 = vunpack.c.h.b16 %v1947
        %v2110 = vunpack.c.l.b16 %v1948
        %v2111 = vunpack.c.h.b16 %v1948
        %v2112 = vunpack.c.l.b16 %v1949
        %v2113 = vunpack.c.h.b16 %v1949
        %v2114 = vunpack.c.l.b16 %v1950
        %v2115 = vunpack.c.h.b16 %v1950
        %v2116 = vunpack.c.l.b16 %v1951
        %v2117 = vunpack.c.h.b16 %v1951
        %v2118 = vunpack.c.l.b16 %v1952
        %v2119 = vunpack.c.h.b16 %v1952
        %v2120 = vunpack.c.l.b16 %v1953
        %v2121 = vunpack.c.h.b16 %v1953
        %v2122 = vunpack.c.l.b16 %v1954
        %v2123 = vunpack.c.h.b16 %v1954
        %v2124 = vunpack.c.l.b16 %v1955
        %v2125 = vunpack.c.h.b16 %v1955
        %v2126 = vunpack.c.l.b16 %v1956
        %v2127 = vunpack.c.h.b16 %v1956
        %v2128 = vunpack.c.l.b16 %v1957
        %v2129 = vunpack.c.h.b16 %v1957
        %v2130 = vunpack.c.l.b16 %v1958
        %v2131 = vunpack.c.h.b16 %v1958
        %v2132 = vunpack.c.l.b16 %v1959
        %v2133 = vunpack.c.h.b16 %v1959
        %v2134 = vunpack.c.l.b16 %v1960
        %v2135 = vunpack.c.h.b16 %v1960
        %v2136 = vunpack.c.l.b16 %v1961
        %v2137 = vunpack.c.h.b16 %v1961
        %v2138 = vunpack.c.l.b16 %v1962
        %v2139 = vunpack.c.h.b16 %v1962
        %v2140 = vunpack.c.l.b16 %v1963
        %v2141 = vunpack.c.h.b16 %v1963
        %v2142 = vunpack.c.l.b16 %v1964
        %v2143 = vunpack.c.h.b16 %v1964
        %v2144 = vunpack.c.l.b16 %v1965
        %v2145 = vunpack.c.h.b16 %v1965
        %v2146 = vunpack.c.l.b16 %v1966
        %v2147 = vunpack.c.h.b16 %v1966
        %v2148 = vunpack.c.l.b16 %v1967
        %v2149 = vunpack.c.h.b16 %v1967
        %v2150 = vunpack.c.l.b16 %v1968
        %v2151 = vunpack.c.h.b16 %v1968
        %v2152 = vunpack.c.l.b16 %v1969
        %v2153 = vunpack.c.h.b16 %v1969
        %v2154 = vunpack.c.l.b16 %v1970
        %v2155 = vunpack.c.h.b16 %v1970
        %v2156 = vunpack.c.l.b16 %v1971
        %v2157 = vunpack.c.h.b16 %v1971
        %v2158 = vunpack.c.l.b16 %v1972
        %v2159 = vunpack.c.h.b16 %v1972
        %v2160 = vunpack.c.l.b16 %v1973
        %v2161 = vunpack.c.h.b16 %v1973
        %v2162 = vunpack.c.l.b16 %v1974
        %v2163 = vunpack.c.h.b16 %v1974
        %v2164 = vunpack.c.l.b16 %v1975
        %v2165 = vunpack.c.h.b16 %v1975
        %v2166 = vunpack.c.l.b16 %v1976
        %v2167 = vunpack.c.h.b16 %v1976
        %v2168 = vunpack.c.l.b16 %v1977
        %v2169 = vunpack.c.h.b16 %v1977
        %v2170 = vpack.c.b16 %v2046, %v2042
        %v2171 = vpack.c.b16 %v2047, %v2043
        %v2172 = vpack.c.b16 %v2048, %v2044
        %v2173 = vpack.c.b16 %v2049, %v2045
        %v2174 = vpack.c.b16 %v2054, %v2050
        %v2175 = vpack.c.b16 %v2055, %v2051
        %v2176 = vpack.c.b16 %v2056, %v2052
        %v2177 = vpack.c.b16 %v2057, %v2053
        %v2178 = vpack.c.b16 %v2062, %v2058
        %v2179 = vpack.c.b16 %v2063, %v2059
        %v2180 = vpack.c.b16 %v2064, %v2060
        %v2181 = vpack.c.b16 %v2065, %v2061
        %v2182 = vpack.c.b16 %v2070, %v2066
        %v2183 = vpack.c.b16 %v2071, %v2067
        %v2184 = vpack.c.b16 %v2072, %v2068
        %v2185 = vpack.c.b16 %v2073, %v2069
        %v2186 = vpack.c.b16 %v2078, %v2074
        %v2187 = vpack.c.b16 %v2079, %v2075
        %v2188 = vpack.c.b16 %v2080, %v2076
        %v2189 = vpack.c.b16 %v2081, %v2077
        %v2190 = vpack.c.b16 %v2086, %v2082
        %v2191 = vpack.c.b16 %v2087, %v2083
        %v2192 = vpack.c.b16 %v2088, %v2084
        %v2193 = vpack.c.b16 %v2089, %v2085
        %v2194 = vpack.c.b16 %v2094, %v2090
        %v2195 = vpack.c.b16 %v2095, %v2091
        %v2196 = vpack.c.b16 %v2096, %v2092
        %v2197 = vpack.c.b16 %v2097, %v2093
        %v2198 = vpack.c.b16 %v2102, %v2098
        %v2199 = vpack.c.b16 %v2103, %v2099
        %v2200 = vpack.c.b16 %v2104, %v2100
        %v2201 = vpack.c.b16 %v2105, %v2101
        %v2202 = vpack.c.b16 %v2110, %v2106
        %v2203 = vpack.c.b16 %v2111, %v2107
        %v2204 = vpack.c.b16 %v2112, %v2108
        %v2205 = vpack.c.b16 %v2113, %v2109
        %v2206 = vpack.c.b16 %v2118, %v2114
        %v2207 = vpack.c.b16 %v2119, %v2115
        %v2208 = vpack.c.b16 %v2120, %v2116
        %v2209 = vpack.c.b16 %v2121, %v2117
        %v2210 = vpack.c.b16 %v2126, %v2122
        %v2211 = vpack.c.b16 %v2127, %v2123
        %v2212 = vpack.c.b16 %v2128, %v2124
        %v2213 = vpack.c.b16 %v2129, %v2125
        %v2214 = vpack.c.b16 %v2134, %v2130
        %v2215 = vpack.c.b16 %v2135, %v2131
        %v2216 = vpack.c.b16 %v2136, %v2132
        %v2217 = vpack.c.b16 %v2137, %v2133
        %v2218 = vpack.c.b16 %v2142, %v2138
        %v2219 = vpack.c.b16 %v2143, %v2139
        %v2220 = vpack.c.b16 %v2144, %v2140
        %v2221 = vpack.c.b16 %v2145, %v2141
        %v2222 = vpack.c.b16 %v2150, %v2146
        %v2223 = vpack.c.b16 %v2151, %v2147
        %v2224 = vpack.c.b16 %v2152, %v2148
        %v2225 = vpack.c.b16 %v2153, %v2149
        %v2226 = vpack.c.b16 %v2158, %v2154
        %v2227 = vpack.c.b16 %v2159, %v2155
        %v2228 = vpack.c.b16 %v2160, %v2156
        %v2229 = vpack.c.b16 %v2161, %v2157
        %v2230 = vpack.c.b16 %v2166, %v2162
        %v2231 = vpack.c.b16 %v2167, %v2163
        %v2232 = vpack.c.b16 %v2168, %v2164
        %v2233 = vpack.c.b16 %v2169, %v2165
        %2298 = vmatprep.subr.bf16.mxu0 %v2171
        %2299 = vmatpush1.bf16.msra.mxu0 %v2170
        %2300 = vmatprep.subr.bf16.mxu0 %v2175
        %2301 = vmatpush1.bf16.msra.mxu0 %v2174
        %2302 = vmatprep.subr.bf16.mxu0 %v2179
        %2303 = vmatpush1.bf16.msra.mxu0 %v2178
        %2304 = vmatprep.subr.bf16.mxu0 %v2183
        %2305 = vmatpush1.bf16.msra.mxu0 %v2182
        %2306 = vmatprep.subr.bf16.mxu0 %v2187
        %2307 = vmatpush1.bf16.msra.mxu0 %v2186
        %2308 = vmatprep.subr.bf16.mxu0 %v2191
        %2309 = vmatpush1.bf16.msra.mxu0 %v2190
        %2310 = vmatprep.subr.bf16.mxu0 %v2195
        %2311 = vmatpush1.bf16.msra.mxu0 %v2194
        %2312 = vmatprep.subr.bf16.mxu0 %v2199
        %2313 = vmatpush1.bf16.msra.mxu0 %v2198
        %2314 = vmatprep.subr.bf16.mxu0 %v2203
        %2315 = vmatpush1.bf16.msra.mxu0 %v2202
        %2316 = vmatprep.subr.bf16.mxu0 %v2207
        %2317 = vmatpush1.bf16.msra.mxu0 %v2206
        %2318 = vmatprep.subr.bf16.mxu0 %v2211
        %2319 = vmatpush1.bf16.msra.mxu0 %v2210
        %2320 = vmatprep.subr.bf16.mxu0 %v2215
        %2321 = vmatpush1.bf16.msra.mxu0 %v2214
        %2322 = vmatprep.subr.bf16.mxu0 %v2219
        %2323 = vmatpush1.bf16.msra.mxu0 %v2218
        %2324 = vmatprep.subr.bf16.mxu0 %v2223
        %2325 = vmatpush1.bf16.msra.mxu0 %v2222
        %2326 = vmatprep.subr.bf16.mxu0 %v2227
        %2327 = vmatpush1.bf16.msra.mxu0 %v2226
        %2328 = vmatprep.subr.bf16.mxu0 %v2231
        %2329 = vmatpush1.bf16.msra.mxu0 %v2230
        %2330 = vmatprep.mubr.bf16.mxu0 %v1113
        %2331 = vmatmul.mubr.bf16.gmra.mrb[0].mxu0 %v1112
        %v2332 = vpop.f32.mrb[0].mxu0
        %v2333 = vadd.f32 0.0, %v2332
        %v2334 = vpop.f32.mrb[0].mxu0
        %v2335 = vadd.f32 0.0, %v2334
        %v2336 = vpop.f32.mrb[0].mxu0
        %v2337 = vadd.f32 0.0, %v2336
        %v2338 = vpop.f32.mrb[0].mxu0
        %v2339 = vadd.f32 0.0, %v2338
        %2340 = vmatprep.mubr.bf16.mxu0 %v1115
        %2341 = vmatmul.mubr.bf16.gmra.mrb[0].mxu0 %v1114
        %v2342 = vpop.f32.mrb[0].mxu0
        %v2343 = vadd.f32 0.0, %v2342
        %v2344 = vpop.f32.mrb[0].mxu0
        %v2345 = vadd.f32 0.0, %v2344
        %v2346 = vpop.f32.mrb[0].mxu0
        %v2347 = vadd.f32 0.0, %v2346
        %v2348 = vpop.f32.mrb[0].mxu0
        %v2349 = vadd.f32 0.0, %v2348
        %2350 = vmatprep.mubr.bf16.mxu0 %v1117
        %2351 = vmatmul.mubr.bf16.gmra.mrb[0].mxu0 %v1116
        %v2352 = vpop.f32.mrb[0].mxu0
        %v2353 = vadd.f32 0.0, %v2352
        %v2354 = vpop.f32.mrb[0].mxu0
        %v2355 = vadd.f32 0.0, %v2354
        %v2356 = vpop.f32.mrb[0].mxu0
        %v2357 = vadd.f32 0.0, %v2356
        %v2358 = vpop.f32.mrb[0].mxu0
        %v2359 = vadd.f32 0.0, %v2358
        %2360 = vmatprep.mubr.bf16.mxu0 %v1119
        %2361 = vmatmul.mubr.bf16.gmra.mrb[0].mxu0 %v1118
        %v2362 = vpop.f32.mrb[0].mxu0
        %v2363 = vadd.f32 0.0, %v2362
        %v2364 = vpop.f32.mrb[0].mxu0
        %v2365 = vadd.f32 0.0, %v2364
        %v2366 = vpop.f32.mrb[0].mxu0
        %v2367 = vadd.f32 0.0, %v2366
        %v2368 = vpop.f32.mrb[0].mxu0
        %v2369 = vadd.f32 0.0, %v2368
        %2370 = vmatprep.mubr.bf16.mxu0 %v1121
        %2371 = vmatmul.mubr.bf16.gmra.mrb[0].mxu0 %v1120
        %v2372 = vpop.f32.mrb[0].mxu0
        %v2373 = vadd.f32 0.0, %v2372
        %v2374 = vpop.f32.mrb[0].mxu0
        %v2375 = vadd.f32 0.0, %v2374
        %v2376 = vpop.f32.mrb[0].mxu0
        %v2377 = vadd.f32 0.0, %v2376
        %v2378 = vpop.f32.mrb[0].mxu0
        %v2379 = vadd.f32 0.0, %v2378
        %2380 = vmatprep.mubr.bf16.mxu0 %v1123
        %2381 = vmatmul.mubr.bf16.gmra.mrb[0].mxu0 %v1122
        %v2382 = vpop.f32.mrb[0].mxu0
        %v2383 = vadd.f32 0.0, %v2382
        %v2384 = vpop.f32.mrb[0].mxu0
        %v2385 = vadd.f32 0.0, %v2384
        %v2386 = vpop.f32.mrb[0].mxu0
        %v2387 = vadd.f32 0.0, %v2386
        %v2388 = vpop.f32.mrb[0].mxu0
        %v2389 = vadd.f32 0.0, %v2388
        %2390 = vmatprep.mubr.bf16.mxu0 %v1125
        %2391 = vmatmul.mubr.bf16.gmra.mrb[0].mxu0 %v1124
        %v2392 = vpop.f32.mrb[0].mxu0
        %v2393 = vadd.f32 0.0, %v2392
        %v2394 = vpop.f32.mrb[0].mxu0
        %v2395 = vadd.f32 0.0, %v2394
        %v2396 = vpop.f32.mrb[0].mxu0
        %v2397 = vadd.f32 0.0, %v2396
        %v2398 = vpop.f32.mrb[0].mxu0
        %v2399 = vadd.f32 0.0, %v2398
        %2400 = vmatprep.mubr.bf16.mxu0 %v1127
        %2401 = vmatmul.mubr.bf16.gmra.mrb[0].mxu0 %v1126
        %v2402 = vpop.f32.mrb[0].mxu0
        %v2403 = vadd.f32 0.0, %v2402
        %v2404 = vpop.f32.mrb[0].mxu0
        %v2405 = vadd.f32 0.0, %v2404
        %v2406 = vpop.f32.mrb[0].mxu0
        %v2407 = vadd.f32 0.0, %v2406
        %v2408 = vpop.f32.mrb[0].mxu0
        %v2409 = vadd.f32 0.0, %v2408
        %2410 = vmatprep.mubr.bf16.mxu0 %v1129
        %2411 = vmatmul.mubr.bf16.gmra.mrb[0].mxu0 %v1128
        %v2412 = vpop.f32.mrb[0].mxu0
        %v2413 = vadd.f32 0.0, %v2412
        %v2414 = vpop.f32.mrb[0].mxu0
        %v2415 = vadd.f32 0.0, %v2414
        %v2416 = vpop.f32.mrb[0].mxu0
        %v2417 = vadd.f32 0.0, %v2416
        %v2418 = vpop.f32.mrb[0].mxu0
        %v2419 = vadd.f32 0.0, %v2418
        %2420 = vmatprep.mubr.bf16.mxu0 %v1131
        %2421 = vmatmul.mubr.bf16.gmra.mrb[0].mxu0 %v1130
        %v2422 = vpop.f32.mrb[0].mxu0
        %v2423 = vadd.f32 0.0, %v2422
        %v2424 = vpop.f32.mrb[0].mxu0
        %v2425 = vadd.f32 0.0, %v2424
        %v2426 = vpop.f32.mrb[0].mxu0
        %v2427 = vadd.f32 0.0, %v2426
        %v2428 = vpop.f32.mrb[0].mxu0
        %v2429 = vadd.f32 0.0, %v2428
        %2430 = vmatprep.mubr.bf16.mxu0 %v1133
        %2431 = vmatmul.mubr.bf16.gmra.mrb[0].mxu0 %v1132
        %v2432 = vpop.f32.mrb[0].mxu0
        %v2433 = vadd.f32 0.0, %v2432
        %v2434 = vpop.f32.mrb[0].mxu0
        %v2435 = vadd.f32 0.0, %v2434
        %v2436 = vpop.f32.mrb[0].mxu0
        %v2437 = vadd.f32 0.0, %v2436
        %v2438 = vpop.f32.mrb[0].mxu0
        %v2439 = vadd.f32 0.0, %v2438
        %2440 = vmatprep.mubr.bf16.mxu0 %v1135
        %2441 = vmatmul.mubr.bf16.gmra.mrb[0].mxu0 %v1134
        %v2442 = vpop.f32.mrb[0].mxu0
        %v2443 = vadd.f32 0.0, %v2442
        %v2444 = vpop.f32.mrb[0].mxu0
        %v2445 = vadd.f32 0.0, %v2444
        %v2446 = vpop.f32.mrb[0].mxu0
        %v2447 = vadd.f32 0.0, %v2446
        %v2448 = vpop.f32.mrb[0].mxu0
        %v2449 = vadd.f32 0.0, %v2448
        %2450 = vmatprep.mubr.bf16.mxu0 %v1137
        %2451 = vmatmul.mubr.bf16.gmra.mrb[0].mxu0 %v1136
        %v2452 = vpop.f32.mrb[0].mxu0
        %v2453 = vadd.f32 0.0, %v2452
        %v2454 = vpop.f32.mrb[0].mxu0
        %v2455 = vadd.f32 0.0, %v2454
        %v2456 = vpop.f32.mrb[0].mxu0
        %v2457 = vadd.f32 0.0, %v2456
        %v2458 = vpop.f32.mrb[0].mxu0
        %v2459 = vadd.f32 0.0, %v2458
        %2460 = vmatprep.mubr.bf16.mxu0 %v1139
        %2461 = vmatmul.mubr.bf16.gmra.mrb[0].mxu0 %v1138
        %v2462 = vpop.f32.mrb[0].mxu0
        %v2463 = vadd.f32 0.0, %v2462
        %v2464 = vpop.f32.mrb[0].mxu0
        %v2465 = vadd.f32 0.0, %v2464
        %v2466 = vpop.f32.mrb[0].mxu0
        %v2467 = vadd.f32 0.0, %v2466
        %v2468 = vpop.f32.mrb[0].mxu0
        %v2469 = vadd.f32 0.0, %v2468
        %2470 = vmatprep.mubr.bf16.mxu0 %v1141
        %2471 = vmatmul.mubr.bf16.gmra.mrb[0].mxu0 %v1140
        %v2472 = vpop.f32.mrb[0].mxu0
        %v2473 = vadd.f32 0.0, %v2472
        %v2474 = vpop.f32.mrb[0].mxu0
        %v2475 = vadd.f32 0.0, %v2474
        %v2476 = vpop.f32.mrb[0].mxu0
        %v2477 = vadd.f32 0.0, %v2476
        %v2478 = vpop.f32.mrb[0].mxu0
        %v2479 = vadd.f32 0.0, %v2478
        %2480 = vmatprep.mubr.bf16.mxu0 %v1143
        %2481 = vmatmul.mubr.bf16.gmra.mrb[0].mxu0 %v1142
        %v2482 = vpop.f32.mrb[0].mxu0
        %v2483 = vadd.f32 0.0, %v2482
        %v2484 = vpop.f32.mrb[0].mxu0
        %v2485 = vadd.f32 0.0, %v2484
        %v2486 = vpop.f32.mrb[0].mxu0
        %v2487 = vadd.f32 0.0, %v2486
        %v2488 = vpop.f32.mrb[0].mxu0
        %v2489 = vadd.f32 0.0, %v2488
        %2490 = vdwg.mxu0
        %2491 = vmatprep.subr.bf16.mxu0 %v2173
        %2492 = vmatpush1.bf16.msra.mxu0 %v2172
        %2493 = vmatprep.subr.bf16.mxu0 %v2177
        %2494 = vmatpush1.bf16.msra.mxu0 %v2176
        %2495 = vmatprep.subr.bf16.mxu0 %v2181
        %2496 = vmatpush1.bf16.msra.mxu0 %v2180
        %2497 = vmatprep.subr.bf16.mxu0 %v2185
        %2498 = vmatpush1.bf16.msra.mxu0 %v2184
        %2499 = vmatprep.subr.bf16.mxu0 %v2189
        %2500 = vmatpush1.bf16.msra.mxu0 %v2188
        %2501 = vmatprep.subr.bf16.mxu0 %v2193
        %2502 = vmatpush1.bf16.msra.mxu0 %v2192
        %2503 = vmatprep.subr.bf16.mxu0 %v2197
        %2504 = vmatpush1.bf16.msra.mxu0 %v2196
        %2505 = vmatprep.subr.bf16.mxu0 %v2201
        %2506 = vmatpush1.bf16.msra.mxu0 %v2200
        %2507 = vmatprep.subr.bf16.mxu0 %v2205
        %2508 = vmatpush1.bf16.msra.mxu0 %v2204
        %2509 = vmatprep.subr.bf16.mxu0 %v2209
        %2510 = vmatpush1.bf16.msra.mxu0 %v2208
        %2511 = vmatprep.subr.bf16.mxu0 %v2213
        %2512 = vmatpush1.bf16.msra.mxu0 %v2212
        %2513 = vmatprep.subr.bf16.mxu0 %v2217
        %2514 = vmatpush1.bf16.msra.mxu0 %v2216
        %2515 = vmatprep.subr.bf16.mxu0 %v2221
        %2516 = vmatpush1.bf16.msra.mxu0 %v2220
        %2517 = vmatprep.subr.bf16.mxu0 %v2225
        %2518 = vmatpush1.bf16.msra.mxu0 %v2224
        %2519 = vmatprep.subr.bf16.mxu0 %v2229
        %2520 = vmatpush1.bf16.msra.mxu0 %v2228
        %2521 = vmatprep.subr.bf16.mxu0 %v2233
        %2522 = vmatpush1.bf16.msra.mxu0 %v2232
        %2523 = vmatprep.mubr.bf16.mxu0 %v1113
        %2524 = vmatmul.mubr.bf16.gmra.mrb[0].mxu0 %v1112
        %v2525 = vpop.f32.mrb[0].mxu0
        %v2526 = vadd.f32 0.0, %v2525
        %v2527 = vpop.f32.mrb[0].mxu0
        %v2528 = vadd.f32 0.0, %v2527
        %v2529 = vpop.f32.mrb[0].mxu0
        %v2530 = vadd.f32 0.0, %v2529
        %v2531 = vpop.f32.mrb[0].mxu0
        %v2532 = vadd.f32 0.0, %v2531
        %2533 = vmatprep.mubr.bf16.mxu0 %v1115
        %2534 = vmatmul.mubr.bf16.gmra.mrb[0].mxu0 %v1114
        %v2535 = vpop.f32.mrb[0].mxu0
        %v2536 = vadd.f32 0.0, %v2535
        %v2537 = vpop.f32.mrb[0].mxu0
        %v2538 = vadd.f32 0.0, %v2537
        %v2539 = vpop.f32.mrb[0].mxu0
        %v2540 = vadd.f32 0.0, %v2539
        %v2541 = vpop.f32.mrb[0].mxu0
        %v2542 = vadd.f32 0.0, %v2541
        %2543 = vmatprep.mubr.bf16.mxu0 %v1117
        %2544 = vmatmul.mubr.bf16.gmra.mrb[0].mxu0 %v1116
        %v2545 = vpop.f32.mrb[0].mxu0
        %v2546 = vadd.f32 0.0, %v2545
        %v2547 = vpop.f32.mrb[0].mxu0
        %v2548 = vadd.f32 0.0, %v2547
        %v2549 = vpop.f32.mrb[0].mxu0
        %v2550 = vadd.f32 0.0, %v2549
        %v2551 = vpop.f32.mrb[0].mxu0
        %v2552 = vadd.f32 0.0, %v2551
        %2553 = vmatprep.mubr.bf16.mxu0 %v1119
        %2554 = vmatmul.mubr.bf16.gmra.mrb[0].mxu0 %v1118
        %v2555 = vpop.f32.mrb[0].mxu0
        %v2556 = vadd.f32 0.0, %v2555
        %v2557 = vpop.f32.mrb[0].mxu0
        %v2558 = vadd.f32 0.0, %v2557
        %v2559 = vpop.f32.mrb[0].mxu0
        %v2560 = vadd.f32 0.0, %v2559
        %v2561 = vpop.f32.mrb[0].mxu0
        %v2562 = vadd.f32 0.0, %v2561
        %2563 = vmatprep.mubr.bf16.mxu0 %v1121
        %2564 = vmatmul.mubr.bf16.gmra.mrb[0].mxu0 %v1120
        %v2565 = vpop.f32.mrb[0].mxu0
        %v2566 = vadd.f32 0.0, %v2565
        %v2567 = vpop.f32.mrb[0].mxu0
        %v2568 = vadd.f32 0.0, %v2567
        %v2569 = vpop.f32.mrb[0].mxu0
        %v2570 = vadd.f32 0.0, %v2569
        %v2571 = vpop.f32.mrb[0].mxu0
        %v2572 = vadd.f32 0.0, %v2571
        %2573 = vmatprep.mubr.bf16.mxu0 %v1123
        %2574 = vmatmul.mubr.bf16.gmra.mrb[0].mxu0 %v1122
        %v2575 = vpop.f32.mrb[0].mxu0
        %v2576 = vadd.f32 0.0, %v2575
        %v2577 = vpop.f32.mrb[0].mxu0
        %v2578 = vadd.f32 0.0, %v2577
        %v2579 = vpop.f32.mrb[0].mxu0
        %v2580 = vadd.f32 0.0, %v2579
        %v2581 = vpop.f32.mrb[0].mxu0
        %v2582 = vadd.f32 0.0, %v2581
        %2583 = vmatprep.mubr.bf16.mxu0 %v1125
        %2584 = vmatmul.mubr.bf16.gmra.mrb[0].mxu0 %v1124
        %v2585 = vpop.f32.mrb[0].mxu0
        %v2586 = vadd.f32 0.0, %v2585
        %v2587 = vpop.f32.mrb[0].mxu0
        %v2588 = vadd.f32 0.0, %v2587
        %v2589 = vpop.f32.mrb[0].mxu0
        %v2590 = vadd.f32 0.0, %v2589
        %v2591 = vpop.f32.mrb[0].mxu0
        %v2592 = vadd.f32 0.0, %v2591
        %2593 = vmatprep.mubr.bf16.mxu0 %v1127
        %2594 = vmatmul.mubr.bf16.gmra.mrb[0].mxu0 %v1126
        %v2595 = vpop.f32.mrb[0].mxu0
        %v2596 = vadd.f32 0.0, %v2595
        %v2597 = vpop.f32.mrb[0].mxu0
        %v2598 = vadd.f32 0.0, %v2597
        %v2599 = vpop.f32.mrb[0].mxu0
        %v2600 = vadd.f32 0.0, %v2599
        %v2601 = vpop.f32.mrb[0].mxu0
        %v2602 = vadd.f32 0.0, %v2601
        %2603 = vmatprep.mubr.bf16.mxu0 %v1129
        %2604 = vmatmul.mubr.bf16.gmra.mrb[0].mxu0 %v1128
        %v2605 = vpop.f32.mrb[0].mxu0
        %v2606 = vadd.f32 0.0, %v2605
        %v2607 = vpop.f32.mrb[0].mxu0
        %v2608 = vadd.f32 0.0, %v2607
        %v2609 = vpop.f32.mrb[0].mxu0
        %v2610 = vadd.f32 0.0, %v2609
        %v2611 = vpop.f32.mrb[0].mxu0
        %v2612 = vadd.f32 0.0, %v2611
        %2613 = vmatprep.mubr.bf16.mxu0 %v1131
        %2614 = vmatmul.mubr.bf16.gmra.mrb[0].mxu0 %v1130
        %v2615 = vpop.f32.mrb[0].mxu0
        %v2616 = vadd.f32 0.0, %v2615
        %v2617 = vpop.f32.mrb[0].mxu0
        %v2618 = vadd.f32 0.0, %v2617
        %v2619 = vpop.f32.mrb[0].mxu0
        %v2620 = vadd.f32 0.0, %v2619
        %v2621 = vpop.f32.mrb[0].mxu0
        %v2622 = vadd.f32 0.0, %v2621
        %2623 = vmatprep.mubr.bf16.mxu0 %v1133
        %2624 = vmatmul.mubr.bf16.gmra.mrb[0].mxu0 %v1132
        %v2625 = vpop.f32.mrb[0].mxu0
        %v2626 = vadd.f32 0.0, %v2625
        %v2627 = vpop.f32.mrb[0].mxu0
        %v2628 = vadd.f32 0.0, %v2627
        %v2629 = vpop.f32.mrb[0].mxu0
        %v2630 = vadd.f32 0.0, %v2629
        %v2631 = vpop.f32.mrb[0].mxu0
        %v2632 = vadd.f32 0.0, %v2631
        %2633 = vmatprep.mubr.bf16.mxu0 %v1135
        %2634 = vmatmul.mubr.bf16.gmra.mrb[0].mxu0 %v1134
        %v2635 = vpop.f32.mrb[0].mxu0
        %v2636 = vadd.f32 0.0, %v2635
        %v2637 = vpop.f32.mrb[0].mxu0
        %v2638 = vadd.f32 0.0, %v2637
        %v2639 = vpop.f32.mrb[0].mxu0
        %v2640 = vadd.f32 0.0, %v2639
        %v2641 = vpop.f32.mrb[0].mxu0
        %v2642 = vadd.f32 0.0, %v2641
        %2643 = vmatprep.mubr.bf16.mxu0 %v1137
        %2644 = vmatmul.mubr.bf16.gmra.mrb[0].mxu0 %v1136
        %v2645 = vpop.f32.mrb[0].mxu0
        %v2646 = vadd.f32 0.0, %v2645
        %v2647 = vpop.f32.mrb[0].mxu0
        %v2648 = vadd.f32 0.0, %v2647
        %v2649 = vpop.f32.mrb[0].mxu0
        %v2650 = vadd.f32 0.0, %v2649
        %v2651 = vpop.f32.mrb[0].mxu0
        %v2652 = vadd.f32 0.0, %v2651
        %2653 = vmatprep.mubr.bf16.mxu0 %v1139
        %2654 = vmatmul.mubr.bf16.gmra.mrb[0].mxu0 %v1138
        %v2655 = vpop.f32.mrb[0].mxu0
        %v2656 = vadd.f32 0.0, %v2655
        %v2657 = vpop.f32.mrb[0].mxu0
        %v2658 = vadd.f32 0.0, %v2657
        %v2659 = vpop.f32.mrb[0].mxu0
        %v2660 = vadd.f32 0.0, %v2659
        %v2661 = vpop.f32.mrb[0].mxu0
        %v2662 = vadd.f32 0.0, %v2661
        %2663 = vmatprep.mubr.bf16.mxu0 %v1141
        %2664 = vmatmul.mubr.bf16.gmra.mrb[0].mxu0 %v1140
        %v2665 = vpop.f32.mrb[0].mxu0
        %v2666 = vadd.f32 0.0, %v2665
        %v2667 = vpop.f32.mrb[0].mxu0
        %v2668 = vadd.f32 0.0, %v2667
        %v2669 = vpop.f32.mrb[0].mxu0
        %v2670 = vadd.f32 0.0, %v2669
        %v2671 = vpop.f32.mrb[0].mxu0
        %v2672 = vadd.f32 0.0, %v2671
        %2673 = vmatprep.mubr.bf16.mxu0 %v1143
        %2674 = vmatmul.mubr.bf16.gmra.mrb[0].mxu0 %v1142
        %v2675 = vpop.f32.mrb[0].mxu0
        %v2676 = vadd.f32 0.0, %v2675
        %v2677 = vpop.f32.mrb[0].mxu0
        %v2678 = vadd.f32 0.0, %v2677
        %v2679 = vpop.f32.mrb[0].mxu0
        %v2680 = vadd.f32 0.0, %v2679
        %v2681 = vpop.f32.mrb[0].mxu0
        %v2682 = vadd.f32 0.0, %v2681
        %2683 = vdwg.mxu0
        %v2684 = vmul.f32 %v2333, 0.5
        %v2685 = vmul.f32 %v2335, 0.5
        %v2686 = vmul.f32 %v2526, 0.5
        %v2687 = vmul.f32 %v2528, 0.5
        %v2688 = vmul.f32 %v2337, 0.5
        %v2689 = vmul.f32 %v2339, 0.5
        %v2690 = vmul.f32 %v2530, 0.5
        %v2691 = vmul.f32 %v2532, 0.5
        %v2692 = vmul.f32 %v2343, 0.5
        %v2693 = vmul.f32 %v2345, 0.5
        %v2694 = vmul.f32 %v2536, 0.5
        %v2695 = vmul.f32 %v2538, 0.5
        %v2696 = vmul.f32 %v2347, 0.5
        %v2697 = vmul.f32 %v2349, 0.5
        %v2698 = vmul.f32 %v2540, 0.5
        %v2699 = vmul.f32 %v2542, 0.5
        %v2700 = vmul.f32 %v2353, 0.5
        %v2701 = vmul.f32 %v2355, 0.5
        %v2702 = vmul.f32 %v2546, 0.5
        %v2703 = vmul.f32 %v2548, 0.5
        %v2704 = vmul.f32 %v2357, 0.5
        %v2705 = vmul.f32 %v2359, 0.5
        %v2706 = vmul.f32 %v2550, 0.5
        %v2707 = vmul.f32 %v2552, 0.5
        %v2708 = vmul.f32 %v2363, 0.5
        %v2709 = vmul.f32 %v2365, 0.5
        %v2710 = vmul.f32 %v2556, 0.5
        %v2711 = vmul.f32 %v2558, 0.5
        %v2712 = vmul.f32 %v2367, 0.5
        %v2713 = vmul.f32 %v2369, 0.5
        %v2714 = vmul.f32 %v2560, 0.5
        %v2715 = vmul.f32 %v2562, 0.5
        %v2716 = vmul.f32 %v2373, 0.5
        %v2717 = vmul.f32 %v2375, 0.5
        %v2718 = vmul.f32 %v2566, 0.5
        %v2719 = vmul.f32 %v2568, 0.5
        %v2720 = vmul.f32 %v2377, 0.5
        %v2721 = vmul.f32 %v2379, 0.5
        %v2722 = vmul.f32 %v2570, 0.5
        %v2723 = vmul.f32 %v2572, 0.5
        %v2724 = vmul.f32 %v2383, 0.5
        %v2725 = vmul.f32 %v2385, 0.5
        %v2726 = vmul.f32 %v2576, 0.5
        %v2727 = vmul.f32 %v2578, 0.5
        %v2728 = vmul.f32 %v2387, 0.5
        %v2729 = vmul.f32 %v2389, 0.5
        %v2730 = vmul.f32 %v2580, 0.5
        %v2731 = vmul.f32 %v2582, 0.5
        %v2732 = vmul.f32 %v2393, 0.5
        %v2733 = vmul.f32 %v2395, 0.5
        %v2734 = vmul.f32 %v2586, 0.5
        %v2735 = vmul.f32 %v2588, 0.5
        %v2736 = vmul.f32 %v2397, 0.5
        %v2737 = vmul.f32 %v2399, 0.5
        %v2738 = vmul.f32 %v2590, 0.5
        %v2739 = vmul.f32 %v2592, 0.5
        %v2740 = vmul.f32 %v2403, 0.5
        %v2741 = vmul.f32 %v2405, 0.5
        %v2742 = vmul.f32 %v2596, 0.5
        %v2743 = vmul.f32 %v2598, 0.5
        %v2744 = vmul.f32 %v2407, 0.5
        %v2745 = vmul.f32 %v2409, 0.5
        %v2746 = vmul.f32 %v2600, 0.5
        %v2747 = vmul.f32 %v2602, 0.5
        %v2748 = vmul.f32 %v2413, 0.5
        %v2749 = vmul.f32 %v2415, 0.5
        %v2750 = vmul.f32 %v2606, 0.5
        %v2751 = vmul.f32 %v2608, 0.5
        %v2752 = vmul.f32 %v2417, 0.5
        %v2753 = vmul.f32 %v2419, 0.5
        %v2754 = vmul.f32 %v2610, 0.5
        %v2755 = vmul.f32 %v2612, 0.5
        %v2756 = vmul.f32 %v2423, 0.5
        %v2757 = vmul.f32 %v2425, 0.5
        %v2758 = vmul.f32 %v2616, 0.5
        %v2759 = vmul.f32 %v2618, 0.5
        %v2760 = vmul.f32 %v2427, 0.5
        %v2761 = vmul.f32 %v2429, 0.5
        %v2762 = vmul.f32 %v2620, 0.5
        %v2763 = vmul.f32 %v2622, 0.5
        %v2764 = vmul.f32 %v2433, 0.5
        %v2765 = vmul.f32 %v2435, 0.5
        %v2766 = vmul.f32 %v2626, 0.5
        %v2767 = vmul.f32 %v2628, 0.5
        %v2768 = vmul.f32 %v2437, 0.5
        %v2769 = vmul.f32 %v2439, 0.5
        %v2770 = vmul.f32 %v2630, 0.5
        %v2771 = vmul.f32 %v2632, 0.5
        %v2772 = vmul.f32 %v2443, 0.5
        %v2773 = vmul.f32 %v2445, 0.5
        %v2774 = vmul.f32 %v2636, 0.5
        %v2775 = vmul.f32 %v2638, 0.5
        %v2776 = vmul.f32 %v2447, 0.5
        %v2777 = vmul.f32 %v2449, 0.5
        %v2778 = vmul.f32 %v2640, 0.5
        %v2779 = vmul.f32 %v2642, 0.5
        %v2780 = vmul.f32 %v2453, 0.5
        %v2781 = vmul.f32 %v2455, 0.5
        %v2782 = vmul.f32 %v2646, 0.5
        %v2783 = vmul.f32 %v2648, 0.5
        %v2784 = vmul.f32 %v2457, 0.5
        %v2785 = vmul.f32 %v2459, 0.5
        %v2786 = vmul.f32 %v2650, 0.5
        %v2787 = vmul.f32 %v2652, 0.5
        %v2788 = vmul.f32 %v2463, 0.5
        %v2789 = vmul.f32 %v2465, 0.5
        %v2790 = vmul.f32 %v2656, 0.5
        %v2791 = vmul.f32 %v2658, 0.5
        %v2792 = vmul.f32 %v2467, 0.5
        %v2793 = vmul.f32 %v2469, 0.5
        %v2794 = vmul.f32 %v2660, 0.5
        %v2795 = vmul.f32 %v2662, 0.5
        %v2796 = vmul.f32 %v2473, 0.5
        %v2797 = vmul.f32 %v2475, 0.5
        %v2798 = vmul.f32 %v2666, 0.5
        %v2799 = vmul.f32 %v2668, 0.5
        %v2800 = vmul.f32 %v2477, 0.5
        %v2801 = vmul.f32 %v2479, 0.5
        %v2802 = vmul.f32 %v2670, 0.5
        %v2803 = vmul.f32 %v2672, 0.5
        %v2804 = vmul.f32 %v2483, 0.5
        %v2805 = vmul.f32 %v2485, 0.5
        %v2806 = vmul.f32 %v2676, 0.5
        %v2807 = vmul.f32 %v2678, 0.5
        %v2808 = vmul.f32 %v2487, 0.5
        %v2809 = vmul.f32 %v2489, 0.5
        %v2810 = vmul.f32 %v2680, 0.5
        %v2811 = vmul.f32 %v2682, 0.5
        %v2812 = vmul.f32 %v2333, 0.70710677
        %v2813 = vmul.f32 %v2335, 0.70710677
        %v2814 = vmul.f32 %v2526, 0.70710677
        %v2815 = vmul.f32 %v2528, 0.70710677
        %v2816 = vmul.f32 %v2337, 0.70710677
        %v2817 = vmul.f32 %v2339, 0.70710677
        %v2818 = vmul.f32 %v2530, 0.70710677
        %v2819 = vmul.f32 %v2532, 0.70710677
        %v2820 = vmul.f32 %v2343, 0.70710677
        %v2821 = vmul.f32 %v2345, 0.70710677
        %v2822 = vmul.f32 %v2536, 0.70710677
        %v2823 = vmul.f32 %v2538, 0.70710677
        %v2824 = vmul.f32 %v2347, 0.70710677
        %v2825 = vmul.f32 %v2349, 0.70710677
        %v2826 = vmul.f32 %v2540, 0.70710677
        %v2827 = vmul.f32 %v2542, 0.70710677
        %v2828 = vmul.f32 %v2353, 0.70710677
        %v2829 = vmul.f32 %v2355, 0.70710677
        %v2830 = vmul.f32 %v2546, 0.70710677
        %v2831 = vmul.f32 %v2548, 0.70710677
        %v2832 = vmul.f32 %v2357, 0.70710677
        %v2833 = vmul.f32 %v2359, 0.70710677
        %v2834 = vmul.f32 %v2550, 0.70710677
        %v2835 = vmul.f32 %v2552, 0.70710677
        %v2836 = vmul.f32 %v2363, 0.70710677
        %v2837 = vmul.f32 %v2365, 0.70710677
        %v2838 = vmul.f32 %v2556, 0.70710677
        %v2839 = vmul.f32 %v2558, 0.70710677
        %v2840 = vmul.f32 %v2367, 0.70710677
        %v2841 = vmul.f32 %v2369, 0.70710677
        %v2842 = vmul.f32 %v2560, 0.70710677
        %v2843 = vmul.f32 %v2562, 0.70710677
        %v2844 = vmul.f32 %v2373, 0.70710677
        %v2845 = vmul.f32 %v2375, 0.70710677
        %v2846 = vmul.f32 %v2566, 0.70710677
        %v2847 = vmul.f32 %v2568, 0.70710677
        %v2848 = vmul.f32 %v2377, 0.70710677
        %v2849 = vmul.f32 %v2379, 0.70710677
        %v2850 = vmul.f32 %v2570, 0.70710677
        %v2851 = vmul.f32 %v2572, 0.70710677
        %v2852 = vmul.f32 %v2383, 0.70710677
        %v2853 = vmul.f32 %v2385, 0.70710677
        %v2854 = vmul.f32 %v2576, 0.70710677
        %v2855 = vmul.f32 %v2578, 0.70710677
        %v2856 = vmul.f32 %v2387, 0.70710677
        %v2857 = vmul.f32 %v2389, 0.70710677
        %v2858 = vmul.f32 %v2580, 0.70710677
        %v2859 = vmul.f32 %v2582, 0.70710677
        %v2860 = vmul.f32 %v2393, 0.70710677
        %v2861 = vmul.f32 %v2395, 0.70710677
        %v2862 = vmul.f32 %v2586, 0.70710677
        %v2863 = vmul.f32 %v2588, 0.70710677
        %v2864 = vmul.f32 %v2397, 0.70710677
        %v2865 = vmul.f32 %v2399, 0.70710677
        %v2866 = vmul.f32 %v2590, 0.70710677
        %v2867 = vmul.f32 %v2592, 0.70710677
        %v2868 = vmul.f32 %v2403, 0.70710677
        %v2869 = vmul.f32 %v2405, 0.70710677
        %v2870 = vmul.f32 %v2596, 0.70710677
        %v2871 = vmul.f32 %v2598, 0.70710677
        %v2872 = vmul.f32 %v2407, 0.70710677
        %v2873 = vmul.f32 %v2409, 0.70710677
        %v2874 = vmul.f32 %v2600, 0.70710677
        %v2875 = vmul.f32 %v2602, 0.70710677
        %v2876 = vmul.f32 %v2413, 0.70710677
        %v2877 = vmul.f32 %v2415, 0.70710677
        %v2878 = vmul.f32 %v2606, 0.70710677
        %v2879 = vmul.f32 %v2608, 0.70710677
        %v2880 = vmul.f32 %v2417, 0.70710677
        %v2881 = vmul.f32 %v2419, 0.70710677
        %v2882 = vmul.f32 %v2610, 0.70710677
        %v2883 = vmul.f32 %v2612, 0.70710677
        %v2884 = vmul.f32 %v2423, 0.70710677
        %v2885 = vmul.f32 %v2425, 0.70710677
        %v2886 = vmul.f32 %v2616, 0.70710677
        %v2887 = vmul.f32 %v2618, 0.70710677
        %v2888 = vmul.f32 %v2427, 0.70710677
        %v2889 = vmul.f32 %v2429, 0.70710677
        %v2890 = vmul.f32 %v2620, 0.70710677
        %v2891 = vmul.f32 %v2622, 0.70710677
        %v2892 = vmul.f32 %v2433, 0.70710677
        %v2893 = vmul.f32 %v2435, 0.70710677
        %v2894 = vmul.f32 %v2626, 0.70710677
        %v2895 = vmul.f32 %v2628, 0.70710677
        %v2896 = vmul.f32 %v2437, 0.70710677
        %v2897 = vmul.f32 %v2439, 0.70710677
        %v2898 = vmul.f32 %v2630, 0.70710677
        %v2899 = vmul.f32 %v2632, 0.70710677
        %v2900 = vmul.f32 %v2443, 0.70710677
        %v2901 = vmul.f32 %v2445, 0.70710677
        %v2902 = vmul.f32 %v2636, 0.70710677
        %v2903 = vmul.f32 %v2638, 0.70710677
        %v2904 = vmul.f32 %v2447, 0.70710677
        %v2905 = vmul.f32 %v2449, 0.70710677
        %v2906 = vmul.f32 %v2640, 0.70710677
        %v2907 = vmul.f32 %v2642, 0.70710677
        %v2908 = vmul.f32 %v2453, 0.70710677
        %v2909 = vmul.f32 %v2455, 0.70710677
        %v2910 = vmul.f32 %v2646, 0.70710677
        %v2911 = vmul.f32 %v2648, 0.70710677
        %v2912 = vmul.f32 %v2457, 0.70710677
        %v2913 = vmul.f32 %v2459, 0.70710677
        %v2914 = vmul.f32 %v2650, 0.70710677
        %v2915 = vmul.f32 %v2652, 0.70710677
        %v2916 = vmul.f32 %v2463, 0.70710677
        %v2917 = vmul.f32 %v2465, 0.70710677
        %v2918 = vmul.f32 %v2656, 0.70710677
        %v2919 = vmul.f32 %v2658, 0.70710677
        %v2920 = vmul.f32 %v2467, 0.70710677
        %v2921 = vmul.f32 %v2469, 0.70710677
        %v2922 = vmul.f32 %v2660, 0.70710677
        %v2923 = vmul.f32 %v2662, 0.70710677
        %v2924 = vmul.f32 %v2473, 0.70710677
        %v2925 = vmul.f32 %v2475, 0.70710677
        %v2926 = vmul.f32 %v2666, 0.70710677
        %v2927 = vmul.f32 %v2668, 0.70710677
        %v2928 = vmul.f32 %v2477, 0.70710677
        %v2929 = vmul.f32 %v2479, 0.70710677
        %v2930 = vmul.f32 %v2670, 0.70710677
        %v2931 = vmul.f32 %v2672, 0.70710677
        %v2932 = vmul.f32 %v2483, 0.70710677
        %v2933 = vmul.f32 %v2485, 0.70710677
        %v2934 = vmul.f32 %v2676, 0.70710677
        %v2935 = vmul.f32 %v2678, 0.70710677
        %v2936 = vmul.f32 %v2487, 0.70710677
        %v2937 = vmul.f32 %v2489, 0.70710677
        %v2938 = vmul.f32 %v2680, 0.70710677
        %v2939 = vmul.f32 %v2682, 0.70710677
        %v2940 = verf.f32.pop %v2812
        %v2941 = verf.f32.pop %v2813
        %v2942 = verf.f32.pop %v2814
        %v2943 = verf.f32.pop %v2815
        %v2944 = verf.f32.pop %v2816
        %v2945 = verf.f32.pop %v2817
        %v2946 = verf.f32.pop %v2818
        %v2947 = verf.f32.pop %v2819
        %v2948 = verf.f32.pop %v2820
        %v2949 = verf.f32.pop %v2821
        %v2950 = verf.f32.pop %v2822
        %v2951 = verf.f32.pop %v2823
        %v2952 = verf.f32.pop %v2824
        %v2953 = verf.f32.pop %v2825
        %v2954 = verf.f32.pop %v2826
        %v2955 = verf.f32.pop %v2827
        %v2956 = verf.f32.pop %v2828
        %v2957 = verf.f32.pop %v2829
        %v2958 = verf.f32.pop %v2830
        %v2959 = verf.f32.pop %v2831
        %v2960 = verf.f32.pop %v2832
        %v2961 = verf.f32.pop %v2833
        %v2962 = verf.f32.pop %v2834
        %v2963 = verf.f32.pop %v2835
        %v2964 = verf.f32.pop %v2836
        %v2965 = verf.f32.pop %v2837
        %v2966 = verf.f32.pop %v2838
        %v2967 = verf.f32.pop %v2839
        %v2968 = verf.f32.pop %v2840
        %v2969 = verf.f32.pop %v2841
        %v2970 = verf.f32.pop %v2842
        %v2971 = verf.f32.pop %v2843
        %v2972 = verf.f32.pop %v2844
        %v2973 = verf.f32.pop %v2845
        %v2974 = verf.f32.pop %v2846
        %v2975 = verf.f32.pop %v2847
        %v2976 = verf.f32.pop %v2848
        %v2977 = verf.f32.pop %v2849
        %v2978 = verf.f32.pop %v2850
        %v2979 = verf.f32.pop %v2851
        %v2980 = verf.f32.pop %v2852
        %v2981 = verf.f32.pop %v2853
        %v2982 = verf.f32.pop %v2854
        %v2983 = verf.f32.pop %v2855
        %v2984 = verf.f32.pop %v2856
        %v2985 = verf.f32.pop %v2857
        %v2986 = verf.f32.pop %v2858
        %v2987 = verf.f32.pop %v2859
        %v2988 = verf.f32.pop %v2860
        %v2989 = verf.f32.pop %v2861
        %v2990 = verf.f32.pop %v2862
        %v2991 = verf.f32.pop %v2863
        %v2992 = verf.f32.pop %v2864
        %v2993 = verf.f32.pop %v2865
        %v2994 = verf.f32.pop %v2866
        %v2995 = verf.f32.pop %v2867
        %v2996 = verf.f32.pop %v2868
        %v2997 = verf.f32.pop %v2869
        %v2998 = verf.f32.pop %v2870
        %v2999 = verf.f32.pop %v2871
        %v3000 = verf.f32.pop %v2872
        %v3001 = verf.f32.pop %v2873
        %v3002 = verf.f32.pop %v2874
        %v3003 = verf.f32.pop %v2875
        %v3004 = verf.f32.pop %v2876
        %v3005 = verf.f32.pop %v2877
        %v3006 = verf.f32.pop %v2878
        %v3007 = verf.f32.pop %v2879
        %v3008 = verf.f32.pop %v2880
        %v3009 = verf.f32.pop %v2881
        %v3010 = verf.f32.pop %v2882
        %v3011 = verf.f32.pop %v2883
        %v3012 = verf.f32.pop %v2884
        %v3013 = verf.f32.pop %v2885
        %v3014 = verf.f32.pop %v2886
        %v3015 = verf.f32.pop %v2887
        %v3016 = verf.f32.pop %v2888
        %v3017 = verf.f32.pop %v2889
        %v3018 = verf.f32.pop %v2890
        %v3019 = verf.f32.pop %v2891
        %v3020 = verf.f32.pop %v2892
        %v3021 = verf.f32.pop %v2893
        %v3022 = verf.f32.pop %v2894
        %v3023 = verf.f32.pop %v2895
        %v3024 = verf.f32.pop %v2896
        %v3025 = verf.f32.pop %v2897
        %v3026 = verf.f32.pop %v2898
        %v3027 = verf.f32.pop %v2899
        %v3028 = verf.f32.pop %v2900
        %v3029 = verf.f32.pop %v2901
        %v3030 = verf.f32.pop %v2902
        %v3031 = verf.f32.pop %v2903
        %v3032 = verf.f32.pop %v2904
        %v3033 = verf.f32.pop %v2905
        %v3034 = verf.f32.pop %v2906
        %v3035 = verf.f32.pop %v2907
        %v3036 = verf.f32.pop %v2908
        %v3037 = verf.f32.pop %v2909
        %v3038 = verf.f32.pop %v2910
        %v3039 = verf.f32.pop %v2911
        %v3040 = verf.f32.pop %v2912
        %v3041 = verf.f32.pop %v2913
        %v3042 = verf.f32.pop %v2914
        %v3043 = verf.f32.pop %v2915
        %v3044 = verf.f32.pop %v2916
        %v3045 = verf.f32.pop %v2917
        %v3046 = verf.f32.pop %v2918
        %v3047 = verf.f32.pop %v2919
        %v3048 = verf.f32.pop %v2920
        %v3049 = verf.f32.pop %v2921
        %v3050 = verf.f32.pop %v2922
        %v3051 = verf.f32.pop %v2923
        %v3052 = verf.f32.pop %v2924
        %v3053 = verf.f32.pop %v2925
        %v3054 = verf.f32.pop %v2926
        %v3055 = verf.f32.pop %v2927
        %v3056 = verf.f32.pop %v2928
        %v3057 = verf.f32.pop %v2929
        %v3058 = verf.f32.pop %v2930
        %v3059 = verf.f32.pop %v2931
        %v3060 = verf.f32.pop %v2932
        %v3061 = verf.f32.pop %v2933
        %v3062 = verf.f32.pop %v2934
        %v3063 = verf.f32.pop %v2935
        %v3064 = verf.f32.pop %v2936
        %v3065 = verf.f32.pop %v2937
        %v3066 = verf.f32.pop %v2938
        %v3067 = verf.f32.pop %v2939
        %v3068 = vadd.f32 %v2940, 1.0
        %v3069 = vadd.f32 %v2941, 1.0
        %v3070 = vadd.f32 %v2942, 1.0
        %v3071 = vadd.f32 %v2943, 1.0
        %v3072 = vadd.f32 %v2944, 1.0
        %v3073 = vadd.f32 %v2945, 1.0
        %v3074 = vadd.f32 %v2946, 1.0
        %v3075 = vadd.f32 %v2947, 1.0
        %v3076 = vadd.f32 %v2948, 1.0
        %v3077 = vadd.f32 %v2949, 1.0
        %v3078 = vadd.f32 %v2950, 1.0
        %v3079 = vadd.f32 %v2951, 1.0
        %v3080 = vadd.f32 %v2952, 1.0
        %v3081 = vadd.f32 %v2953, 1.0
        %v3082 = vadd.f32 %v2954, 1.0
        %v3083 = vadd.f32 %v2955, 1.0
        %v3084 = vadd.f32 %v2956, 1.0
        %v3085 = vadd.f32 %v2957, 1.0
        %v3086 = vadd.f32 %v2958, 1.0
        %v3087 = vadd.f32 %v2959, 1.0
        %v3088 = vadd.f32 %v2960, 1.0
        %v3089 = vadd.f32 %v2961, 1.0
        %v3090 = vadd.f32 %v2962, 1.0
        %v3091 = vadd.f32 %v2963, 1.0
        %v3092 = vadd.f32 %v2964, 1.0
        %v3093 = vadd.f32 %v2965, 1.0
        %v3094 = vadd.f32 %v2966, 1.0
        %v3095 = vadd.f32 %v2967, 1.0
        %v3096 = vadd.f32 %v2968, 1.0
        %v3097 = vadd.f32 %v2969, 1.0
        %v3098 = vadd.f32 %v2970, 1.0
        %v3099 = vadd.f32 %v2971, 1.0
        %v3100 = vadd.f32 %v2972, 1.0
        %v3101 = vadd.f32 %v2973, 1.0
        %v3102 = vadd.f32 %v2974, 1.0
        %v3103 = vadd.f32 %v2975, 1.0
        %v3104 = vadd.f32 %v2976, 1.0
        %v3105 = vadd.f32 %v2977, 1.0
        %v3106 = vadd.f32 %v2978, 1.0
        %v3107 = vadd.f32 %v2979, 1.0
        %v3108 = vadd.f32 %v2980, 1.0
        %v3109 = vadd.f32 %v2981, 1.0
        %v3110 = vadd.f32 %v2982, 1.0
        %v3111 = vadd.f32 %v2983, 1.0
        %v3112 = vadd.f32 %v2984, 1.0
        %v3113 = vadd.f32 %v2985, 1.0
        %v3114 = vadd.f32 %v2986, 1.0
        %v3115 = vadd.f32 %v2987, 1.0
        %v3116 = vadd.f32 %v2988, 1.0
        %v3117 = vadd.f32 %v2989, 1.0
        %v3118 = vadd.f32 %v2990, 1.0
        %v3119 = vadd.f32 %v2991, 1.0
        %v3120 = vadd.f32 %v2992, 1.0
        %v3121 = vadd.f32 %v2993, 1.0
        %v3122 = vadd.f32 %v2994, 1.0
        %v3123 = vadd.f32 %v2995, 1.0
        %v3124 = vadd.f32 %v2996, 1.0
        %v3125 = vadd.f32 %v2997, 1.0
        %v3126 = vadd.f32 %v2998, 1.0
        %v3127 = vadd.f32 %v2999, 1.0
        %v3128 = vadd.f32 %v3000, 1.0
        %v3129 = vadd.f32 %v3001, 1.0
        %v3130 = vadd.f32 %v3002, 1.0
        %v3131 = vadd.f32 %v3003, 1.0
        %v3132 = vadd.f32 %v3004, 1.0
        %v3133 = vadd.f32 %v3005, 1.0
        %v3134 = vadd.f32 %v3006, 1.0
        %v3135 = vadd.f32 %v3007, 1.0
        %v3136 = vadd.f32 %v3008, 1.0
        %v3137 = vadd.f32 %v3009, 1.0
        %v3138 = vadd.f32 %v3010, 1.0
        %v3139 = vadd.f32 %v3011, 1.0
        %v3140 = vadd.f32 %v3012, 1.0
        %v3141 = vadd.f32 %v3013, 1.0
        %v3142 = vadd.f32 %v3014, 1.0
        %v3143 = vadd.f32 %v3015, 1.0
        %v3144 = vadd.f32 %v3016, 1.0
        %v3145 = vadd.f32 %v3017, 1.0
        %v3146 = vadd.f32 %v3018, 1.0
        %v3147 = vadd.f32 %v3019, 1.0
        %v3148 = vadd.f32 %v3020, 1.0
        %v3149 = vadd.f32 %v3021, 1.0
        %v3150 = vadd.f32 %v3022, 1.0
        %v3151 = vadd.f32 %v3023, 1.0
        %v3152 = vadd.f32 %v3024, 1.0
        %v3153 = vadd.f32 %v3025, 1.0
        %v3154 = vadd.f32 %v3026, 1.0
        %v3155 = vadd.f32 %v3027, 1.0
        %v3156 = vadd.f32 %v3028, 1.0
        %v3157 = vadd.f32 %v3029, 1.0
        %v3158 = vadd.f32 %v3030, 1.0
        %v3159 = vadd.f32 %v3031, 1.0
        %v3160 = vadd.f32 %v3032, 1.0
        %v3161 = vadd.f32 %v3033, 1.0
        %v3162 = vadd.f32 %v3034, 1.0
        %v3163 = vadd.f32 %v3035, 1.0
        %v3164 = vadd.f32 %v3036, 1.0
        %v3165 = vadd.f32 %v3037, 1.0
        %v3166 = vadd.f32 %v3038, 1.0
        %v3167 = vadd.f32 %v3039, 1.0
        %v3168 = vadd.f32 %v3040, 1.0
        %v3169 = vadd.f32 %v3041, 1.0
        %v3170 = vadd.f32 %v3042, 1.0
        %v3171 = vadd.f32 %v3043, 1.0
        %v3172 = vadd.f32 %v3044, 1.0
        %v3173 = vadd.f32 %v3045, 1.0
        %v3174 = vadd.f32 %v3046, 1.0
        %v3175 = vadd.f32 %v3047, 1.0
        %v3176 = vadd.f32 %v3048, 1.0
        %v3177 = vadd.f32 %v3049, 1.0
        %v3178 = vadd.f32 %v3050, 1.0
        %v3179 = vadd.f32 %v3051, 1.0
        %v3180 = vadd.f32 %v3052, 1.0
        %v3181 = vadd.f32 %v3053, 1.0
        %v3182 = vadd.f32 %v3054, 1.0
        %v3183 = vadd.f32 %v3055, 1.0
        %v3184 = vadd.f32 %v3056, 1.0
        %v3185 = vadd.f32 %v3057, 1.0
        %v3186 = vadd.f32 %v3058, 1.0
        %v3187 = vadd.f32 %v3059, 1.0
        %v3188 = vadd.f32 %v3060, 1.0
        %v3189 = vadd.f32 %v3061, 1.0
        %v3190 = vadd.f32 %v3062, 1.0
        %v3191 = vadd.f32 %v3063, 1.0
        %v3192 = vadd.f32 %v3064, 1.0
        %v3193 = vadd.f32 %v3065, 1.0
        %v3194 = vadd.f32 %v3066, 1.0
        %v3195 = vadd.f32 %v3067, 1.0
        %v3196 = vmul.f32 %v2684, %v3068
        %v3197 = vmul.f32 %v2685, %v3069
        %v3198 = vmul.f32 %v2686, %v3070
        %v3199 = vmul.f32 %v2687, %v3071
        %v3200 = vmul.f32 %v2688, %v3072
        %v3201 = vmul.f32 %v2689, %v3073
        %v3202 = vmul.f32 %v2690, %v3074
        %v3203 = vmul.f32 %v2691, %v3075
        %v3204 = vmul.f32 %v2692, %v3076
        %v3205 = vmul.f32 %v2693, %v3077
        %v3206 = vmul.f32 %v2694, %v3078
        %v3207 = vmul.f32 %v2695, %v3079
        %v3208 = vmul.f32 %v2696, %v3080
        %v3209 = vmul.f32 %v2697, %v3081
        %v3210 = vmul.f32 %v2698, %v3082
        %v3211 = vmul.f32 %v2699, %v3083
        %v3212 = vmul.f32 %v2700, %v3084
        %v3213 = vmul.f32 %v2701, %v3085
        %v3214 = vmul.f32 %v2702, %v3086
        %v3215 = vmul.f32 %v2703, %v3087
        %v3216 = vmul.f32 %v2704, %v3088
        %v3217 = vmul.f32 %v2705, %v3089
        %v3218 = vmul.f32 %v2706, %v3090
        %v3219 = vmul.f32 %v2707, %v3091
        %v3220 = vmul.f32 %v2708, %v3092
        %v3221 = vmul.f32 %v2709, %v3093
        %v3222 = vmul.f32 %v2710, %v3094
        %v3223 = vmul.f32 %v2711, %v3095
        %v3224 = vmul.f32 %v2712, %v3096
        %v3225 = vmul.f32 %v2713, %v3097
        %v3226 = vmul.f32 %v2714, %v3098
        %v3227 = vmul.f32 %v2715, %v3099
        %v3228 = vmul.f32 %v2716, %v3100
        %v3229 = vmul.f32 %v2717, %v3101
        %v3230 = vmul.f32 %v2718, %v3102
        %v3231 = vmul.f32 %v2719, %v3103
        %v3232 = vmul.f32 %v2720, %v3104
        %v3233 = vmul.f32 %v2721, %v3105
        %v3234 = vmul.f32 %v2722, %v3106
        %v3235 = vmul.f32 %v2723, %v3107
        %v3236 = vmul.f32 %v2724, %v3108
        %v3237 = vmul.f32 %v2725, %v3109
        %v3238 = vmul.f32 %v2726, %v3110
        %v3239 = vmul.f32 %v2727, %v3111
        %v3240 = vmul.f32 %v2728, %v3112
        %v3241 = vmul.f32 %v2729, %v3113
        %v3242 = vmul.f32 %v2730, %v3114
        %v3243 = vmul.f32 %v2731, %v3115
        %v3244 = vmul.f32 %v2732, %v3116
        %v3245 = vmul.f32 %v2733, %v3117
        %v3246 = vmul.f32 %v2734, %v3118
        %v3247 = vmul.f32 %v2735, %v3119
        %v3248 = vmul.f32 %v2736, %v3120
        %v3249 = vmul.f32 %v2737, %v3121
        %v3250 = vmul.f32 %v2738, %v3122
        %v3251 = vmul.f32 %v2739, %v3123
        %v3252 = vmul.f32 %v2740, %v3124
        %v3253 = vmul.f32 %v2741, %v3125
        %v3254 = vmul.f32 %v2742, %v3126
        %v3255 = vmul.f32 %v2743, %v3127
        %v3256 = vmul.f32 %v2744, %v3128
        %v3257 = vmul.f32 %v2745, %v3129
        %v3258 = vmul.f32 %v2746, %v3130
        %v3259 = vmul.f32 %v2747, %v3131
        %v3260 = vmul.f32 %v2748, %v3132
        %v3261 = vmul.f32 %v2749, %v3133
        %v3262 = vmul.f32 %v2750, %v3134
        %v3263 = vmul.f32 %v2751, %v3135
        %v3264 = vmul.f32 %v2752, %v3136
        %v3265 = vmul.f32 %v2753, %v3137
        %v3266 = vmul.f32 %v2754, %v3138
        %v3267 = vmul.f32 %v2755, %v3139
        %v3268 = vmul.f32 %v2756, %v3140
        %v3269 = vmul.f32 %v2757, %v3141
        %v3270 = vmul.f32 %v2758, %v3142
        %v3271 = vmul.f32 %v2759, %v3143
        %v3272 = vmul.f32 %v2760, %v3144
        %v3273 = vmul.f32 %v2761, %v3145
        %v3274 = vmul.f32 %v2762, %v3146
        %v3275 = vmul.f32 %v2763, %v3147
        %v3276 = vmul.f32 %v2764, %v3148
        %v3277 = vmul.f32 %v2765, %v3149
        %v3278 = vmul.f32 %v2766, %v3150
        %v3279 = vmul.f32 %v2767, %v3151
        %v3280 = vmul.f32 %v2768, %v3152
        %v3281 = vmul.f32 %v2769, %v3153
        %v3282 = vmul.f32 %v2770, %v3154
        %v3283 = vmul.f32 %v2771, %v3155
        %v3284 = vmul.f32 %v2772, %v3156
        %v3285 = vmul.f32 %v2773, %v3157
        %v3286 = vmul.f32 %v2774, %v3158
        %v3287 = vmul.f32 %v2775, %v3159
        %v3288 = vmul.f32 %v2776, %v3160
        %v3289 = vmul.f32 %v2777, %v3161
        %v3290 = vmul.f32 %v2778, %v3162
        %v3291 = vmul.f32 %v2779, %v3163
        %v3292 = vmul.f32 %v2780, %v3164
        %v3293 = vmul.f32 %v2781, %v3165
        %v3294 = vmul.f32 %v2782, %v3166
        %v3295 = vmul.f32 %v2783, %v3167
        %v3296 = vmul.f32 %v2784, %v3168
        %v3297 = vmul.f32 %v2785, %v3169
        %v3298 = vmul.f32 %v2786, %v3170
        %v3299 = vmul.f32 %v2787, %v3171
        %v3300 = vmul.f32 %v2788, %v3172
        %v3301 = vmul.f32 %v2789, %v3173
        %v3302 = vmul.f32 %v2790, %v3174
        %v3303 = vmul.f32 %v2791, %v3175
        %v3304 = vmul.f32 %v2792, %v3176
        %v3305 = vmul.f32 %v2793, %v3177
        %v3306 = vmul.f32 %v2794, %v3178
        %v3307 = vmul.f32 %v2795, %v3179
        %v3308 = vmul.f32 %v2796, %v3180
        %v3309 = vmul.f32 %v2797, %v3181
        %v3310 = vmul.f32 %v2798, %v3182
        %v3311 = vmul.f32 %v2799, %v3183
        %v3312 = vmul.f32 %v2800, %v3184
        %v3313 = vmul.f32 %v2801, %v3185
        %v3314 = vmul.f32 %v2802, %v3186
        %v3315 = vmul.f32 %v2803, %v3187
        %v3316 = vmul.f32 %v2804, %v3188
        %v3317 = vmul.f32 %v2805, %v3189
        %v3318 = vmul.f32 %v2806, %v3190
        %v3319 = vmul.f32 %v2807, %v3191
        %v3320 = vmul.f32 %v2808, %v3192
        %v3321 = vmul.f32 %v2809, %v3193
        %v3322 = vmul.f32 %v2810, %v3194
        %v3323 = vmul.f32 %v2811, %v3195
        %v3324 = vmul.f32 %v1563, %v3196
        %v3325 = vmul.f32 %v1565, %v3197
        %v3326 = vmul.f32 %v1756, %v3198
        %v3327 = vmul.f32 %v1758, %v3199
        %v3328 = vmul.f32 %v1567, %v3200
        %v3329 = vmul.f32 %v1569, %v3201
        %v3330 = vmul.f32 %v1760, %v3202
        %v3331 = vmul.f32 %v1762, %v3203
        %v3332 = vmul.f32 %v1573, %v3204
        %v3333 = vmul.f32 %v1575, %v3205
        %v3334 = vmul.f32 %v1766, %v3206
        %v3335 = vmul.f32 %v1768, %v3207
        %v3336 = vmul.f32 %v1577, %v3208
        %v3337 = vmul.f32 %v1579, %v3209
        %v3338 = vmul.f32 %v1770, %v3210
        %v3339 = vmul.f32 %v1772, %v3211
        %v3340 = vmul.f32 %v1583, %v3212
        %v3341 = vmul.f32 %v1585, %v3213
        %v3342 = vmul.f32 %v1776, %v3214
        %v3343 = vmul.f32 %v1778, %v3215
        %v3344 = vmul.f32 %v1587, %v3216
        %v3345 = vmul.f32 %v1589, %v3217
        %v3346 = vmul.f32 %v1780, %v3218
        %v3347 = vmul.f32 %v1782, %v3219
        %v3348 = vmul.f32 %v1593, %v3220
        %v3349 = vmul.f32 %v1595, %v3221
        %v3350 = vmul.f32 %v1786, %v3222
        %v3351 = vmul.f32 %v1788, %v3223
        %v3352 = vmul.f32 %v1597, %v3224
        %v3353 = vmul.f32 %v1599, %v3225
        %v3354 = vmul.f32 %v1790, %v3226
        %v3355 = vmul.f32 %v1792, %v3227
        %v3356 = vmul.f32 %v1603, %v3228
        %v3357 = vmul.f32 %v1605, %v3229
        %v3358 = vmul.f32 %v1796, %v3230
        %v3359 = vmul.f32 %v1798, %v3231
        %v3360 = vmul.f32 %v1607, %v3232
        %v3361 = vmul.f32 %v1609, %v3233
        %v3362 = vmul.f32 %v1800, %v3234
        %v3363 = vmul.f32 %v1802, %v3235
        %v3364 = vmul.f32 %v1613, %v3236
        %v3365 = vmul.f32 %v1615, %v3237
        %v3366 = vmul.f32 %v1806, %v3238
        %v3367 = vmul.f32 %v1808, %v3239
        %v3368 = vmul.f32 %v1617, %v3240
        %v3369 = vmul.f32 %v1619, %v3241
        %v3370 = vmul.f32 %v1810, %v3242
        %v3371 = vmul.f32 %v1812, %v3243
        %v3372 = vmul.f32 %v1623, %v3244
        %v3373 = vmul.f32 %v1625, %v3245
        %v3374 = vmul.f32 %v1816, %v3246
        %v3375 = vmul.f32 %v1818, %v3247
        %v3376 = vmul.f32 %v1627, %v3248
        %v3377 = vmul.f32 %v1629, %v3249
        %v3378 = vmul.f32 %v1820, %v3250
        %v3379 = vmul.f32 %v1822, %v3251
        %v3380 = vmul.f32 %v1633, %v3252
        %v3381 = vmul.f32 %v1635, %v3253
        %v3382 = vmul.f32 %v1826, %v3254
        %v3383 = vmul.f32 %v1828, %v3255
        %v3384 = vmul.f32 %v1637, %v3256
        %v3385 = vmul.f32 %v1639, %v3257
        %v3386 = vmul.f32 %v1830, %v3258
        %v3387 = vmul.f32 %v1832, %v3259
        %v3388 = vmul.f32 %v1643, %v3260
        %v3389 = vmul.f32 %v1645, %v3261
        %v3390 = vmul.f32 %v1836, %v3262
        %v3391 = vmul.f32 %v1838, %v3263
        %v3392 = vmul.f32 %v1647, %v3264
        %v3393 = vmul.f32 %v1649, %v3265
        %v3394 = vmul.f32 %v1840, %v3266
        %v3395 = vmul.f32 %v1842, %v3267
        %v3396 = vmul.f32 %v1653, %v3268
        %v3397 = vmul.f32 %v1655, %v3269
        %v3398 = vmul.f32 %v1846, %v3270
        %v3399 = vmul.f32 %v1848, %v3271
        %v3400 = vmul.f32 %v1657, %v3272
        %v3401 = vmul.f32 %v1659, %v3273
        %v3402 = vmul.f32 %v1850, %v3274
        %v3403 = vmul.f32 %v1852, %v3275
        %v3404 = vmul.f32 %v1663, %v3276
        %v3405 = vmul.f32 %v1665, %v3277
        %v3406 = vmul.f32 %v1856, %v3278
        %v3407 = vmul.f32 %v1858, %v3279
        %v3408 = vmul.f32 %v1667, %v3280
        %v3409 = vmul.f32 %v1669, %v3281
        %v3410 = vmul.f32 %v1860, %v3282
        %v3411 = vmul.f32 %v1862, %v3283
        %v3412 = vmul.f32 %v1673, %v3284
        %v3413 = vmul.f32 %v1675, %v3285
        %v3414 = vmul.f32 %v1866, %v3286
        %v3415 = vmul.f32 %v1868, %v3287
        %v3416 = vmul.f32 %v1677, %v3288
        %v3417 = vmul.f32 %v1679, %v3289
        %v3418 = vmul.f32 %v1870, %v3290
        %v3419 = vmul.f32 %v1872, %v3291
        %v3420 = vmul.f32 %v1683, %v3292
        %v3421 = vmul.f32 %v1685, %v3293
        %v3422 = vmul.f32 %v1876, %v3294
        %v3423 = vmul.f32 %v1878, %v3295
        %v3424 = vmul.f32 %v1687, %v3296
        %v3425 = vmul.f32 %v1689, %v3297
        %v3426 = vmul.f32 %v1880, %v3298
        %v3427 = vmul.f32 %v1882, %v3299
        %v3428 = vmul.f32 %v1693, %v3300
        %v3429 = vmul.f32 %v1695, %v3301
        %v3430 = vmul.f32 %v1886, %v3302
        %v3431 = vmul.f32 %v1888, %v3303
        %v3432 = vmul.f32 %v1697, %v3304
        %v3433 = vmul.f32 %v1699, %v3305
        %v3434 = vmul.f32 %v1890, %v3306
        %v3435 = vmul.f32 %v1892, %v3307
        %v3436 = vmul.f32 %v1703, %v3308
        %v3437 = vmul.f32 %v1705, %v3309
        %v3438 = vmul.f32 %v1896, %v3310
        %v3439 = vmul.f32 %v1898, %v3311
        %v3440 = vmul.f32 %v1707, %v3312
        %v3441 = vmul.f32 %v1709, %v3313
        %v3442 = vmul.f32 %v1900, %v3314
        %v3443 = vmul.f32 %v1902, %v3315
        %v3444 = vmul.f32 %v1713, %v3316
        %v3445 = vmul.f32 %v1715, %v3317
        %v3446 = vmul.f32 %v1906, %v3318
        %v3447 = vmul.f32 %v1908, %v3319
        %v3448 = vmul.f32 %v1717, %v3320
        %v3449 = vmul.f32 %v1719, %v3321
        %v3450 = vmul.f32 %v1910, %v3322
        %v3451 = vmul.f32 %v1912, %v3323
        %v3452 = vld [vmem:[%s5] sm:$0xf]
        %v3453 = vld [vmem:[%s6] sm:$0xf]
        %v3454 = vadd.f32 %v3324, %v3325
        %v3455 = vadd.f32 %v3454, %v3326
        %v3456 = vadd.f32 %v3455, %v3327
        %3457 = vadd.xlane.f32.xlu0 %v3456
        %v3458 = vpop.xlane.xlu0 %3457
        %v3459 = vadd.f32 %v3328, %v3329
        %v3460 = vadd.f32 %v3459, %v3330
        %v3461 = vadd.f32 %v3460, %v3331
        %3462 = vadd.xlane.f32.xlu0 %v3461
        %v3463 = vpop.xlane.xlu0 %3462
        %v3464 = vadd.f32 %v3332, %v3333
        %v3465 = vadd.f32 %v3464, %v3334
        %v3466 = vadd.f32 %v3465, %v3335
        %3467 = vadd.xlane.f32.xlu0 %v3466
        %v3468 = vpop.xlane.xlu0 %3467
        %v3469 = vadd.f32 %v3336, %v3337
        %v3470 = vadd.f32 %v3469, %v3338
        %v3471 = vadd.f32 %v3470, %v3339
        %3472 = vadd.xlane.f32.xlu0 %v3471
        %v3473 = vpop.xlane.xlu0 %3472
        %v3474 = vadd.f32 %v3340, %v3341
        %v3475 = vadd.f32 %v3474, %v3342
        %v3476 = vadd.f32 %v3475, %v3343
        %3477 = vadd.xlane.f32.xlu0 %v3476
        %v3478 = vpop.xlane.xlu0 %3477
        %v3479 = vadd.f32 %v3344, %v3345
        %v3480 = vadd.f32 %v3479, %v3346
        %v3481 = vadd.f32 %v3480, %v3347
        %3482 = vadd.xlane.f32.xlu0 %v3481
        %v3483 = vpop.xlane.xlu0 %3482
        %v3484 = vadd.f32 %v3348, %v3349
        %v3485 = vadd.f32 %v3484, %v3350
        %v3486 = vadd.f32 %v3485, %v3351
        %3487 = vadd.xlane.f32.xlu0 %v3486
        %v3488 = vpop.xlane.xlu0 %3487
        %v3489 = vadd.f32 %v3352, %v3353
        %v3490 = vadd.f32 %v3489, %v3354
        %v3491 = vadd.f32 %v3490, %v3355
        %3492 = vadd.xlane.f32.xlu0 %v3491
        %v3493 = vpop.xlane.xlu0 %3492
        %v3494 = vadd.f32 %v3356, %v3357
        %v3495 = vadd.f32 %v3494, %v3358
        %v3496 = vadd.f32 %v3495, %v3359
        %3497 = vadd.xlane.f32.xlu0 %v3496
        %v3498 = vpop.xlane.xlu0 %3497
        %v3499 = vadd.f32 %v3360, %v3361
        %v3500 = vadd.f32 %v3499, %v3362
        %v3501 = vadd.f32 %v3500, %v3363
        %3502 = vadd.xlane.f32.xlu0 %v3501
        %v3503 = vpop.xlane.xlu0 %3502
        %v3504 = vadd.f32 %v3364, %v3365
        %v3505 = vadd.f32 %v3504, %v3366
        %v3506 = vadd.f32 %v3505, %v3367
        %3507 = vadd.xlane.f32.xlu0 %v3506
        %v3508 = vpop.xlane.xlu0 %3507
        %v3509 = vadd.f32 %v3368, %v3369
        %v3510 = vadd.f32 %v3509, %v3370
        %v3511 = vadd.f32 %v3510, %v3371
        %3512 = vadd.xlane.f32.xlu0 %v3511
        %v3513 = vpop.xlane.xlu0 %3512
        %v3514 = vadd.f32 %v3372, %v3373
        %v3515 = vadd.f32 %v3514, %v3374
        %v3516 = vadd.f32 %v3515, %v3375
        %3517 = vadd.xlane.f32.xlu0 %v3516
        %v3518 = vpop.xlane.xlu0 %3517
        %v3519 = vadd.f32 %v3376, %v3377
        %v3520 = vadd.f32 %v3519, %v3378
        %v3521 = vadd.f32 %v3520, %v3379
        %3522 = vadd.xlane.f32.xlu0 %v3521
        %v3523 = vpop.xlane.xlu0 %3522
        %v3524 = vadd.f32 %v3380, %v3381
        %v3525 = vadd.f32 %v3524, %v3382
        %v3526 = vadd.f32 %v3525, %v3383
        %3527 = vadd.xlane.f32.xlu0 %v3526
        %v3528 = vpop.xlane.xlu0 %3527
        %v3529 = vadd.f32 %v3384, %v3385
        %v3530 = vadd.f32 %v3529, %v3386
        %v3531 = vadd.f32 %v3530, %v3387
        %3532 = vadd.xlane.f32.xlu0 %v3531
        %v3533 = vpop.xlane.xlu0 %3532
        %v3534 = vadd.f32 %v3388, %v3389
        %v3535 = vadd.f32 %v3534, %v3390
        %v3536 = vadd.f32 %v3535, %v3391
        %3537 = vadd.xlane.f32.xlu0 %v3536
        %v3538 = vpop.xlane.xlu0 %3537
        %v3539 = vadd.f32 %v3392, %v3393
        %v3540 = vadd.f32 %v3539, %v3394
        %v3541 = vadd.f32 %v3540, %v3395
        %3542 = vadd.xlane.f32.xlu0 %v3541
        %v3543 = vpop.xlane.xlu0 %3542
        %v3544 = vadd.f32 %v3396, %v3397
        %v3545 = vadd.f32 %v3544, %v3398
        %v3546 = vadd.f32 %v3545, %v3399
        %3547 = vadd.xlane.f32.xlu0 %v3546
        %v3548 = vpop.xlane.xlu0 %3547
        %v3549 = vadd.f32 %v3400, %v3401
        %v3550 = vadd.f32 %v3549, %v3402
        %v3551 = vadd.f32 %v3550, %v3403
        %3552 = vadd.xlane.f32.xlu0 %v3551
        %v3553 = vpop.xlane.xlu0 %3552
        %v3554 = vadd.f32 %v3404, %v3405
        %v3555 = vadd.f32 %v3554, %v3406
        %v3556 = vadd.f32 %v3555, %v3407
        %3557 = vadd.xlane.f32.xlu0 %v3556
        %v3558 = vpop.xlane.xlu0 %3557
        %v3559 = vadd.f32 %v3408, %v3409
        %v3560 = vadd.f32 %v3559, %v3410
        %v3561 = vadd.f32 %v3560, %v3411
        %3562 = vadd.xlane.f32.xlu0 %v3561
        %v3563 = vpop.xlane.xlu0 %3562
        %v3564 = vadd.f32 %v3412, %v3413
        %v3565 = vadd.f32 %v3564, %v3414
        %v3566 = vadd.f32 %v3565, %v3415
        %3567 = vadd.xlane.f32.xlu0 %v3566
        %v3568 = vpop.xlane.xlu0 %3567
        %v3569 = vadd.f32 %v3416, %v3417
        %v3570 = vadd.f32 %v3569, %v3418
        %v3571 = vadd.f32 %v3570, %v3419
        %3572 = vadd.xlane.f32.xlu0 %v3571
        %v3573 = vpop.xlane.xlu0 %3572
        %v3574 = vadd.f32 %v3420, %v3421
        %v3575 = vadd.f32 %v3574, %v3422
        %v3576 = vadd.f32 %v3575, %v3423
        %3577 = vadd.xlane.f32.xlu0 %v3576
        %v3578 = vpop.xlane.xlu0 %3577
        %v3579 = vadd.f32 %v3424, %v3425
        %v3580 = vadd.f32 %v3579, %v3426
        %v3581 = vadd.f32 %v3580, %v3427
        %3582 = vadd.xlane.f32.xlu0 %v3581
        %v3583 = vpop.xlane.xlu0 %3582
        %v3584 = vadd.f32 %v3428, %v3429
        %v3585 = vadd.f32 %v3584, %v3430
        %v3586 = vadd.f32 %v3585, %v3431
        %3587 = vadd.xlane.f32.xlu0 %v3586
        %v3588 = vpop.xlane.xlu0 %3587
        %v3589 = vadd.f32 %v3432, %v3433
        %v3590 = vadd.f32 %v3589, %v3434
        %v3591 = vadd.f32 %v3590, %v3435
        %3592 = vadd.xlane.f32.xlu0 %v3591
        %v3593 = vpop.xlane.xlu0 %3592
        %v3594 = vadd.f32 %v3436, %v3437
        %v3595 = vadd.f32 %v3594, %v3438
        %v3596 = vadd.f32 %v3595, %v3439
        %3597 = vadd.xlane.f32.xlu0 %v3596
        %v3598 = vpop.xlane.xlu0 %3597
        %v3599 = vadd.f32 %v3440, %v3441
        %v3600 = vadd.f32 %v3599, %v3442
        %v3601 = vadd.f32 %v3600, %v3443
        %3602 = vadd.xlane.f32.xlu0 %v3601
        %v3603 = vpop.xlane.xlu0 %3602
        %v3604 = vadd.f32 %v3444, %v3445
        %v3605 = vadd.f32 %v3604, %v3446
        %v3606 = vadd.f32 %v3605, %v3447
        %3607 = vadd.xlane.f32.xlu0 %v3606
        %v3608 = vpop.xlane.xlu0 %3607
        %v3609 = vadd.f32 %v3448, %v3449
        %v3610 = vadd.f32 %v3609, %v3450
        %v3611 = vadd.f32 %v3610, %v3451
        %3612 = vadd.xlane.f32.xlu0 %v3611
        %v3613 = vpop.xlane.xlu0 %3612
        %v3614 = vrcp.pop 512.0
        %v3615 = vmul.f32 %v3458, %v3614
        %v3616 = vmul.f32 %v3463, %v3614
        %v3617 = vmul.f32 %v3468, %v3614
        %v3618 = vmul.f32 %v3473, %v3614
        %v3619 = vmul.f32 %v3478, %v3614
        %v3620 = vmul.f32 %v3483, %v3614
        %v3621 = vmul.f32 %v3488, %v3614
        %v3622 = vmul.f32 %v3493, %v3614
        %v3623 = vmul.f32 %v3498, %v3614
        %v3624 = vmul.f32 %v3503, %v3614
        %v3625 = vmul.f32 %v3508, %v3614
        %v3626 = vmul.f32 %v3513, %v3614
        %v3627 = vmul.f32 %v3518, %v3614
        %v3628 = vmul.f32 %v3523, %v3614
        %v3629 = vmul.f32 %v3528, %v3614
        %v3630 = vmul.f32 %v3533, %v3614
        %v3631 = vmul.f32 %v3538, %v3614
        %v3632 = vmul.f32 %v3543, %v3614
        %v3633 = vmul.f32 %v3548, %v3614
        %v3634 = vmul.f32 %v3553, %v3614
        %v3635 = vmul.f32 %v3558, %v3614
        %v3636 = vmul.f32 %v3563, %v3614
        %v3637 = vmul.f32 %v3568, %v3614
        %v3638 = vmul.f32 %v3573, %v3614
        %v3639 = vmul.f32 %v3578, %v3614
        %v3640 = vmul.f32 %v3583, %v3614
        %v3641 = vmul.f32 %v3588, %v3614
        %v3642 = vmul.f32 %v3593, %v3614
        %v3643 = vmul.f32 %v3598, %v3614
        %v3644 = vmul.f32 %v3603, %v3614
        %v3645 = vmul.f32 %v3608, %v3614
        %v3646 = vmul.f32 %v3613, %v3614
        %v3647 = vsub.f32 %v3324, %v3615
        %v3648 = vsub.f32 %v3325, %v3615
        %v3649 = vsub.f32 %v3326, %v3615
        %v3650 = vsub.f32 %v3327, %v3615
        %v3651 = vsub.f32 %v3328, %v3616
        %v3652 = vsub.f32 %v3329, %v3616
        %v3653 = vsub.f32 %v3330, %v3616
        %v3654 = vsub.f32 %v3331, %v3616
        %v3655 = vsub.f32 %v3332, %v3617
        %v3656 = vsub.f32 %v3333, %v3617
        %v3657 = vsub.f32 %v3334, %v3617
        %v3658 = vsub.f32 %v3335, %v3617
        %v3659 = vsub.f32 %v3336, %v3618
        %v3660 = vsub.f32 %v3337, %v3618
        %v3661 = vsub.f32 %v3338, %v3618
        %v3662 = vsub.f32 %v3339, %v3618
        %v3663 = vsub.f32 %v3340, %v3619
        %v3664 = vsub.f32 %v3341, %v3619
        %v3665 = vsub.f32 %v3342, %v3619
        %v3666 = vsub.f32 %v3343, %v3619
        %v3667 = vsub.f32 %v3344, %v3620
        %v3668 = vsub.f32 %v3345, %v3620
        %v3669 = vsub.f32 %v3346, %v3620
        %v3670 = vsub.f32 %v3347, %v3620
        %v3671 = vsub.f32 %v3348, %v3621
        %v3672 = vsub.f32 %v3349, %v3621
        %v3673 = vsub.f32 %v3350, %v3621
        %v3674 = vsub.f32 %v3351, %v3621
        %v3675 = vsub.f32 %v3352, %v3622
        %v3676 = vsub.f32 %v3353, %v3622
        %v3677 = vsub.f32 %v3354, %v3622
        %v3678 = vsub.f32 %v3355, %v3622
        %v3679 = vsub.f32 %v3356, %v3623
        %v3680 = vsub.f32 %v3357, %v3623
        %v3681 = vsub.f32 %v3358, %v3623
        %v3682 = vsub.f32 %v3359, %v3623
        %v3683 = vsub.f32 %v3360, %v3624
        %v3684 = vsub.f32 %v3361, %v3624
        %v3685 = vsub.f32 %v3362, %v3624
        %v3686 = vsub.f32 %v3363, %v3624
        %v3687 = vsub.f32 %v3364, %v3625
        %v3688 = vsub.f32 %v3365, %v3625
        %v3689 = vsub.f32 %v3366, %v3625
        %v3690 = vsub.f32 %v3367, %v3625
        %v3691 = vsub.f32 %v3368, %v3626
        %v3692 = vsub.f32 %v3369, %v3626
        %v3693 = vsub.f32 %v3370, %v3626
        %v3694 = vsub.f32 %v3371, %v3626
        %v3695 = vsub.f32 %v3372, %v3627
        %v3696 = vsub.f32 %v3373, %v3627
        %v3697 = vsub.f32 %v3374, %v3627
        %v3698 = vsub.f32 %v3375, %v3627
        %v3699 = vsub.f32 %v3376, %v3628
        %v3700 = vsub.f32 %v3377, %v3628
        %v3701 = vsub.f32 %v3378, %v3628
        %v3702 = vsub.f32 %v3379, %v3628
        %v3703 = vsub.f32 %v3380, %v3629
        %v3704 = vsub.f32 %v3381, %v3629
        %v3705 = vsub.f32 %v3382, %v3629
        %v3706 = vsub.f32 %v3383, %v3629
        %v3707 = vsub.f32 %v3384, %v3630
        %v3708 = vsub.f32 %v3385, %v3630
        %v3709 = vsub.f32 %v3386, %v3630
        %v3710 = vsub.f32 %v3387, %v3630
        %v3711 = vsub.f32 %v3388, %v3631
        %v3712 = vsub.f32 %v3389, %v3631
        %v3713 = vsub.f32 %v3390, %v3631
        %v3714 = vsub.f32 %v3391, %v3631
        %v3715 = vsub.f32 %v3392, %v3632
        %v3716 = vsub.f32 %v3393, %v3632
        %v3717 = vsub.f32 %v3394, %v3632
        %v3718 = vsub.f32 %v3395, %v3632
        %v3719 = vsub.f32 %v3396, %v3633
        %v3720 = vsub.f32 %v3397, %v3633
        %v3721 = vsub.f32 %v3398, %v3633
        %v3722 = vsub.f32 %v3399, %v3633
        %v3723 = vsub.f32 %v3400, %v3634
        %v3724 = vsub.f32 %v3401, %v3634
        %v3725 = vsub.f32 %v3402, %v3634
        %v3726 = vsub.f32 %v3403, %v3634
        %v3727 = vsub.f32 %v3404, %v3635
        %v3728 = vsub.f32 %v3405, %v3635
        %v3729 = vsub.f32 %v3406, %v3635
        %v3730 = vsub.f32 %v3407, %v3635
        %v3731 = vsub.f32 %v3408, %v3636
        %v3732 = vsub.f32 %v3409, %v3636
        %v3733 = vsub.f32 %v3410, %v3636
        %v3734 = vsub.f32 %v3411, %v3636
        %v3735 = vsub.f32 %v3412, %v3637
        %v3736 = vsub.f32 %v3413, %v3637
        %v3737 = vsub.f32 %v3414, %v3637
        %v3738 = vsub.f32 %v3415, %v3637
        %v3739 = vsub.f32 %v3416, %v3638
        %v3740 = vsub.f32 %v3417, %v3638
        %v3741 = vsub.f32 %v3418, %v3638
        %v3742 = vsub.f32 %v3419, %v3638
        %v3743 = vsub.f32 %v3420, %v3639
        %v3744 = vsub.f32 %v3421, %v3639
        %v3745 = vsub.f32 %v3422, %v3639
        %v3746 = vsub.f32 %v3423, %v3639
        %v3747 = vsub.f32 %v3424, %v3640
        %v3748 = vsub.f32 %v3425, %v3640
        %v3749 = vsub.f32 %v3426, %v3640
        %v3750 = vsub.f32 %v3427, %v3640
        %v3751 = vsub.f32 %v3428, %v3641
        %v3752 = vsub.f32 %v3429, %v3641
        %v3753 = vsub.f32 %v3430, %v3641
        %v3754 = vsub.f32 %v3431, %v3641
        %v3755 = vsub.f32 %v3432, %v3642
        %v3756 = vsub.f32 %v3433, %v3642
        %v3757 = vsub.f32 %v3434, %v3642
        %v3758 = vsub.f32 %v3435, %v3642
        %v3759 = vsub.f32 %v3436, %v3643
        %v3760 = vsub.f32 %v3437, %v3643
        %v3761 = vsub.f32 %v3438, %v3643
        %v3762 = vsub.f32 %v3439, %v3643
        %v3763 = vsub.f32 %v3440, %v3644
        %v3764 = vsub.f32 %v3441, %v3644
        %v3765 = vsub.f32 %v3442, %v3644
        %v3766 = vsub.f32 %v3443, %v3644
        %v3767 = vsub.f32 %v3444, %v3645
        %v3768 = vsub.f32 %v3445, %v3645
        %v3769 = vsub.f32 %v3446, %v3645
        %v3770 = vsub.f32 %v3447, %v3645
        %v3771 = vsub.f32 %v3448, %v3646
        %v3772 = vsub.f32 %v3449, %v3646
        %v3773 = vsub.f32 %v3450, %v3646
        %v3774 = vsub.f32 %v3451, %v3646
        %v3775 = vmul.f32 %v3647, %v3647
        %v3776 = vmul.f32 %v3648, %v3648
        %v3777 = vmul.f32 %v3649, %v3649
        %v3778 = vmul.f32 %v3650, %v3650
        %v3779 = vmul.f32 %v3651, %v3651
        %v3780 = vmul.f32 %v3652, %v3652
        %v3781 = vmul.f32 %v3653, %v3653
        %v3782 = vmul.f32 %v3654, %v3654
        %v3783 = vmul.f32 %v3655, %v3655
        %v3784 = vmul.f32 %v3656, %v3656
        %v3785 = vmul.f32 %v3657, %v3657
        %v3786 = vmul.f32 %v3658, %v3658
        %v3787 = vmul.f32 %v3659, %v3659
        %v3788 = vmul.f32 %v3660, %v3660
        %v3789 = vmul.f32 %v3661, %v3661
        %v3790 = vmul.f32 %v3662, %v3662
        %v3791 = vmul.f32 %v3663, %v3663
        %v3792 = vmul.f32 %v3664, %v3664
        %v3793 = vmul.f32 %v3665, %v3665
        %v3794 = vmul.f32 %v3666, %v3666
        %v3795 = vmul.f32 %v3667, %v3667
        %v3796 = vmul.f32 %v3668, %v3668
        %v3797 = vmul.f32 %v3669, %v3669
        %v3798 = vmul.f32 %v3670, %v3670
        %v3799 = vmul.f32 %v3671, %v3671
        %v3800 = vmul.f32 %v3672, %v3672
        %v3801 = vmul.f32 %v3673, %v3673
        %v3802 = vmul.f32 %v3674, %v3674
        %v3803 = vmul.f32 %v3675, %v3675
        %v3804 = vmul.f32 %v3676, %v3676
        %v3805 = vmul.f32 %v3677, %v3677
        %v3806 = vmul.f32 %v3678, %v3678
        %v3807 = vmul.f32 %v3679, %v3679
        %v3808 = vmul.f32 %v3680, %v3680
        %v3809 = vmul.f32 %v3681, %v3681
        %v3810 = vmul.f32 %v3682, %v3682
        %v3811 = vmul.f32 %v3683, %v3683
        %v3812 = vmul.f32 %v3684, %v3684
        %v3813 = vmul.f32 %v3685, %v3685
        %v3814 = vmul.f32 %v3686, %v3686
        %v3815 = vmul.f32 %v3687, %v3687
        %v3816 = vmul.f32 %v3688, %v3688
        %v3817 = vmul.f32 %v3689, %v3689
        %v3818 = vmul.f32 %v3690, %v3690
        %v3819 = vmul.f32 %v3691, %v3691
        %v3820 = vmul.f32 %v3692, %v3692
        %v3821 = vmul.f32 %v3693, %v3693
        %v3822 = vmul.f32 %v3694, %v3694
        %v3823 = vmul.f32 %v3695, %v3695
        %v3824 = vmul.f32 %v3696, %v3696
        %v3825 = vmul.f32 %v3697, %v3697
        %v3826 = vmul.f32 %v3698, %v3698
        %v3827 = vmul.f32 %v3699, %v3699
        %v3828 = vmul.f32 %v3700, %v3700
        %v3829 = vmul.f32 %v3701, %v3701
        %v3830 = vmul.f32 %v3702, %v3702
        %v3831 = vmul.f32 %v3703, %v3703
        %v3832 = vmul.f32 %v3704, %v3704
        %v3833 = vmul.f32 %v3705, %v3705
        %v3834 = vmul.f32 %v3706, %v3706
        %v3835 = vmul.f32 %v3707, %v3707
        %v3836 = vmul.f32 %v3708, %v3708
        %v3837 = vmul.f32 %v3709, %v3709
        %v3838 = vmul.f32 %v3710, %v3710
        %v3839 = vmul.f32 %v3711, %v3711
        %v3840 = vmul.f32 %v3712, %v3712
        %v3841 = vmul.f32 %v3713, %v3713
        %v3842 = vmul.f32 %v3714, %v3714
        %v3843 = vmul.f32 %v3715, %v3715
        %v3844 = vmul.f32 %v3716, %v3716
        %v3845 = vmul.f32 %v3717, %v3717
        %v3846 = vmul.f32 %v3718, %v3718
        %v3847 = vmul.f32 %v3719, %v3719
        %v3848 = vmul.f32 %v3720, %v3720
        %v3849 = vmul.f32 %v3721, %v3721
        %v3850 = vmul.f32 %v3722, %v3722
        %v3851 = vmul.f32 %v3723, %v3723
        %v3852 = vmul.f32 %v3724, %v3724
        %v3853 = vmul.f32 %v3725, %v3725
        %v3854 = vmul.f32 %v3726, %v3726
        %v3855 = vmul.f32 %v3727, %v3727
        %v3856 = vmul.f32 %v3728, %v3728
        %v3857 = vmul.f32 %v3729, %v3729
        %v3858 = vmul.f32 %v3730, %v3730
        %v3859 = vmul.f32 %v3731, %v3731
        %v3860 = vmul.f32 %v3732, %v3732
        %v3861 = vmul.f32 %v3733, %v3733
        %v3862 = vmul.f32 %v3734, %v3734
        %v3863 = vmul.f32 %v3735, %v3735
        %v3864 = vmul.f32 %v3736, %v3736
        %v3865 = vmul.f32 %v3737, %v3737
        %v3866 = vmul.f32 %v3738, %v3738
        %v3867 = vmul.f32 %v3739, %v3739
        %v3868 = vmul.f32 %v3740, %v3740
        %v3869 = vmul.f32 %v3741, %v3741
        %v3870 = vmul.f32 %v3742, %v3742
        %v3871 = vmul.f32 %v3743, %v3743
        %v3872 = vmul.f32 %v3744, %v3744
        %v3873 = vmul.f32 %v3745, %v3745
        %v3874 = vmul.f32 %v3746, %v3746
        %v3875 = vmul.f32 %v3747, %v3747
        %v3876 = vmul.f32 %v3748, %v3748
        %v3877 = vmul.f32 %v3749, %v3749
        %v3878 = vmul.f32 %v3750, %v3750
        %v3879 = vmul.f32 %v3751, %v3751
        %v3880 = vmul.f32 %v3752, %v3752
        %v3881 = vmul.f32 %v3753, %v3753
        %v3882 = vmul.f32 %v3754, %v3754
        %v3883 = vmul.f32 %v3755, %v3755
        %v3884 = vmul.f32 %v3756, %v3756
        %v3885 = vmul.f32 %v3757, %v3757
        %v3886 = vmul.f32 %v3758, %v3758
        %v3887 = vmul.f32 %v3759, %v3759
        %v3888 = vmul.f32 %v3760, %v3760
        %v3889 = vmul.f32 %v3761, %v3761
        %v3890 = vmul.f32 %v3762, %v3762
        %v3891 = vmul.f32 %v3763, %v3763
        %v3892 = vmul.f32 %v3764, %v3764
        %v3893 = vmul.f32 %v3765, %v3765
        %v3894 = vmul.f32 %v3766, %v3766
        %v3895 = vmul.f32 %v3767, %v3767
        %v3896 = vmul.f32 %v3768, %v3768
        %v3897 = vmul.f32 %v3769, %v3769
        %v3898 = vmul.f32 %v3770, %v3770
        %v3899 = vmul.f32 %v3771, %v3771
        %v3900 = vmul.f32 %v3772, %v3772
        %v3901 = vmul.f32 %v3773, %v3773
        %v3902 = vmul.f32 %v3774, %v3774
        %v3903 = vadd.f32 %v3775, %v3776
        %v3904 = vadd.f32 %v3903, %v3777
        %v3905 = vadd.f32 %v3904, %v3778
        %3906 = vadd.xlane.f32.xlu0 %v3905
        %v3907 = vpop.xlane.xlu0 %3906
        %v3908 = vadd.f32 %v3779, %v3780
        %v3909 = vadd.f32 %v3908, %v3781
        %v3910 = vadd.f32 %v3909, %v3782
        %3911 = vadd.xlane.f32.xlu0 %v3910
        %v3912 = vpop.xlane.xlu0 %3911
        %v3913 = vadd.f32 %v3783, %v3784
        %v3914 = vadd.f32 %v3913, %v3785
        %v3915 = vadd.f32 %v3914, %v3786
        %3916 = vadd.xlane.f32.xlu0 %v3915
        %v3917 = vpop.xlane.xlu0 %3916
        %v3918 = vadd.f32 %v3787, %v3788
        %v3919 = vadd.f32 %v3918, %v3789
        %v3920 = vadd.f32 %v3919, %v3790
        %3921 = vadd.xlane.f32.xlu0 %v3920
        %v3922 = vpop.xlane.xlu0 %3921
        %v3923 = vadd.f32 %v3791, %v3792
        %v3924 = vadd.f32 %v3923, %v3793
        %v3925 = vadd.f32 %v3924, %v3794
        %3926 = vadd.xlane.f32.xlu0 %v3925
        %v3927 = vpop.xlane.xlu0 %3926
        %v3928 = vadd.f32 %v3795, %v3796
        %v3929 = vadd.f32 %v3928, %v3797
        %v3930 = vadd.f32 %v3929, %v3798
        %3931 = vadd.xlane.f32.xlu0 %v3930
        %v3932 = vpop.xlane.xlu0 %3931
        %v3933 = vadd.f32 %v3799, %v3800
        %v3934 = vadd.f32 %v3933, %v3801
        %v3935 = vadd.f32 %v3934, %v3802
        %3936 = vadd.xlane.f32.xlu0 %v3935
        %v3937 = vpop.xlane.xlu0 %3936
        %v3938 = vadd.f32 %v3803, %v3804
        %v3939 = vadd.f32 %v3938, %v3805
        %v3940 = vadd.f32 %v3939, %v3806
        %3941 = vadd.xlane.f32.xlu0 %v3940
        %v3942 = vpop.xlane.xlu0 %3941
        %v3943 = vadd.f32 %v3807, %v3808
        %v3944 = vadd.f32 %v3943, %v3809
        %v3945 = vadd.f32 %v3944, %v3810
        %3946 = vadd.xlane.f32.xlu0 %v3945
        %v3947 = vpop.xlane.xlu0 %3946
        %v3948 = vadd.f32 %v3811, %v3812
        %v3949 = vadd.f32 %v3948, %v3813
        %v3950 = vadd.f32 %v3949, %v3814
        %3951 = vadd.xlane.f32.xlu0 %v3950
        %v3952 = vpop.xlane.xlu0 %3951
        %v3953 = vadd.f32 %v3815, %v3816
        %v3954 = vadd.f32 %v3953, %v3817
        %v3955 = vadd.f32 %v3954, %v3818
        %3956 = vadd.xlane.f32.xlu0 %v3955
        %v3957 = vpop.xlane.xlu0 %3956
        %v3958 = vadd.f32 %v3819, %v3820
        %v3959 = vadd.f32 %v3958, %v3821
        %v3960 = vadd.f32 %v3959, %v3822
        %3961 = vadd.xlane.f32.xlu0 %v3960
        %v3962 = vpop.xlane.xlu0 %3961
        %v3963 = vadd.f32 %v3823, %v3824
        %v3964 = vadd.f32 %v3963, %v3825
        %v3965 = vadd.f32 %v3964, %v3826
        %3966 = vadd.xlane.f32.xlu0 %v3965
        %v3967 = vpop.xlane.xlu0 %3966
        %v3968 = vadd.f32 %v3827, %v3828
        %v3969 = vadd.f32 %v3968, %v3829
        %v3970 = vadd.f32 %v3969, %v3830
        %3971 = vadd.xlane.f32.xlu0 %v3970
        %v3972 = vpop.xlane.xlu0 %3971
        %v3973 = vadd.f32 %v3831, %v3832
        %v3974 = vadd.f32 %v3973, %v3833
        %v3975 = vadd.f32 %v3974, %v3834
        %3976 = vadd.xlane.f32.xlu0 %v3975
        %v3977 = vpop.xlane.xlu0 %3976
        %v3978 = vadd.f32 %v3835, %v3836
        %v3979 = vadd.f32 %v3978, %v3837
        %v3980 = vadd.f32 %v3979, %v3838
        %3981 = vadd.xlane.f32.xlu0 %v3980
        %v3982 = vpop.xlane.xlu0 %3981
        %v3983 = vadd.f32 %v3839, %v3840
        %v3984 = vadd.f32 %v3983, %v3841
        %v3985 = vadd.f32 %v3984, %v3842
        %3986 = vadd.xlane.f32.xlu0 %v3985
        %v3987 = vpop.xlane.xlu0 %3986
        %v3988 = vadd.f32 %v3843, %v3844
        %v3989 = vadd.f32 %v3988, %v3845
        %v3990 = vadd.f32 %v3989, %v3846
        %3991 = vadd.xlane.f32.xlu0 %v3990
        %v3992 = vpop.xlane.xlu0 %3991
        %v3993 = vadd.f32 %v3847, %v3848
        %v3994 = vadd.f32 %v3993, %v3849
        %v3995 = vadd.f32 %v3994, %v3850
        %3996 = vadd.xlane.f32.xlu0 %v3995
        %v3997 = vpop.xlane.xlu0 %3996
        %v3998 = vadd.f32 %v3851, %v3852
        %v3999 = vadd.f32 %v3998, %v3853
        %v4000 = vadd.f32 %v3999, %v3854
        %4001 = vadd.xlane.f32.xlu0 %v4000
        %v4002 = vpop.xlane.xlu0 %4001
        %v4003 = vadd.f32 %v3855, %v3856
        %v4004 = vadd.f32 %v4003, %v3857
        %v4005 = vadd.f32 %v4004, %v3858
        %4006 = vadd.xlane.f32.xlu0 %v4005
        %v4007 = vpop.xlane.xlu0 %4006
        %v4008 = vadd.f32 %v3859, %v3860
        %v4009 = vadd.f32 %v4008, %v3861
        %v4010 = vadd.f32 %v4009, %v3862
        %4011 = vadd.xlane.f32.xlu0 %v4010
        %v4012 = vpop.xlane.xlu0 %4011
        %v4013 = vadd.f32 %v3863, %v3864
        %v4014 = vadd.f32 %v4013, %v3865
        %v4015 = vadd.f32 %v4014, %v3866
        %4016 = vadd.xlane.f32.xlu0 %v4015
        %v4017 = vpop.xlane.xlu0 %4016
        %v4018 = vadd.f32 %v3867, %v3868
        %v4019 = vadd.f32 %v4018, %v3869
        %v4020 = vadd.f32 %v4019, %v3870
        %4021 = vadd.xlane.f32.xlu0 %v4020
        %v4022 = vpop.xlane.xlu0 %4021
        %v4023 = vadd.f32 %v3871, %v3872
        %v4024 = vadd.f32 %v4023, %v3873
        %v4025 = vadd.f32 %v4024, %v3874
        %4026 = vadd.xlane.f32.xlu0 %v4025
        %v4027 = vpop.xlane.xlu0 %4026
        %v4028 = vadd.f32 %v3875, %v3876
        %v4029 = vadd.f32 %v4028, %v3877
        %v4030 = vadd.f32 %v4029, %v3878
        %4031 = vadd.xlane.f32.xlu0 %v4030
        %v4032 = vpop.xlane.xlu0 %4031
        %v4033 = vadd.f32 %v3879, %v3880
        %v4034 = vadd.f32 %v4033, %v3881
        %v4035 = vadd.f32 %v4034, %v3882
        %4036 = vadd.xlane.f32.xlu0 %v4035
        %v4037 = vpop.xlane.xlu0 %4036
        %v4038 = vadd.f32 %v3883, %v3884
        %v4039 = vadd.f32 %v4038, %v3885
        %v4040 = vadd.f32 %v4039, %v3886
        %4041 = vadd.xlane.f32.xlu0 %v4040
        %v4042 = vpop.xlane.xlu0 %4041
        %v4043 = vadd.f32 %v3887, %v3888
        %v4044 = vadd.f32 %v4043, %v3889
        %v4045 = vadd.f32 %v4044, %v3890
        %4046 = vadd.xlane.f32.xlu0 %v4045
        %v4047 = vpop.xlane.xlu0 %4046
        %v4048 = vadd.f32 %v3891, %v3892
        %v4049 = vadd.f32 %v4048, %v3893
        %v4050 = vadd.f32 %v4049, %v3894
        %4051 = vadd.xlane.f32.xlu0 %v4050
        %v4052 = vpop.xlane.xlu0 %4051
        %v4053 = vadd.f32 %v3895, %v3896
        %v4054 = vadd.f32 %v4053, %v3897
        %v4055 = vadd.f32 %v4054, %v3898
        %4056 = vadd.xlane.f32.xlu0 %v4055
        %v4057 = vpop.xlane.xlu0 %4056
        %v4058 = vadd.f32 %v3899, %v3900
        %v4059 = vadd.f32 %v4058, %v3901
        %v4060 = vadd.f32 %v4059, %v3902
        %4061 = vadd.xlane.f32.xlu0 %v4060
        %v4062 = vpop.xlane.xlu0 %4061
        %v4063 = vmul.f32 %v3907, %v3614
        %v4064 = vmul.f32 %v3912, %v3614
        %v4065 = vmul.f32 %v3917, %v3614
        %v4066 = vmul.f32 %v3922, %v3614
        %v4067 = vmul.f32 %v3927, %v3614
        %v4068 = vmul.f32 %v3932, %v3614
        %v4069 = vmul.f32 %v3937, %v3614
        %v4070 = vmul.f32 %v3942, %v3614
        %v4071 = vmul.f32 %v3947, %v3614
        %v4072 = vmul.f32 %v3952, %v3614
        %v4073 = vmul.f32 %v3957, %v3614
        %v4074 = vmul.f32 %v3962, %v3614
        %v4075 = vmul.f32 %v3967, %v3614
        %v4076 = vmul.f32 %v3972, %v3614
        %v4077 = vmul.f32 %v3977, %v3614
        %v4078 = vmul.f32 %v3982, %v3614
        %v4079 = vmul.f32 %v3987, %v3614
        %v4080 = vmul.f32 %v3992, %v3614
        %v4081 = vmul.f32 %v3997, %v3614
        %v4082 = vmul.f32 %v4002, %v3614
        %v4083 = vmul.f32 %v4007, %v3614
        %v4084 = vmul.f32 %v4012, %v3614
        %v4085 = vmul.f32 %v4017, %v3614
        %v4086 = vmul.f32 %v4022, %v3614
        %v4087 = vmul.f32 %v4027, %v3614
        %v4088 = vmul.f32 %v4032, %v3614
        %v4089 = vmul.f32 %v4037, %v3614
        %v4090 = vmul.f32 %v4042, %v3614
        %v4091 = vmul.f32 %v4047, %v3614
        %v4092 = vmul.f32 %v4052, %v3614
        %v4093 = vmul.f32 %v4057, %v3614
        %v4094 = vmul.f32 %v4062, %v3614
        %v4095 = vadd.f32 %v4063, 1e-05
        %v4096 = vadd.f32 %v4064, 1e-05
        %v4097 = vadd.f32 %v4065, 1e-05
        %v4098 = vadd.f32 %v4066, 1e-05
        %v4099 = vadd.f32 %v4067, 1e-05
        %v4100 = vadd.f32 %v4068, 1e-05
        %v4101 = vadd.f32 %v4069, 1e-05
        %v4102 = vadd.f32 %v4070, 1e-05
        %v4103 = vadd.f32 %v4071, 1e-05
        %v4104 = vadd.f32 %v4072, 1e-05
        %v4105 = vadd.f32 %v4073, 1e-05
        %v4106 = vadd.f32 %v4074, 1e-05
        %v4107 = vadd.f32 %v4075, 1e-05
        %v4108 = vadd.f32 %v4076, 1e-05
        %v4109 = vadd.f32 %v4077, 1e-05
        %v4110 = vadd.f32 %v4078, 1e-05
        %v4111 = vadd.f32 %v4079, 1e-05
        %v4112 = vadd.f32 %v4080, 1e-05
        %v4113 = vadd.f32 %v4081, 1e-05
        %v4114 = vadd.f32 %v4082, 1e-05
        %v4115 = vadd.f32 %v4083, 1e-05
        %v4116 = vadd.f32 %v4084, 1e-05
        %v4117 = vadd.f32 %v4085, 1e-05
        %v4118 = vadd.f32 %v4086, 1e-05
        %v4119 = vadd.f32 %v4087, 1e-05
        %v4120 = vadd.f32 %v4088, 1e-05
        %v4121 = vadd.f32 %v4089, 1e-05
        %v4122 = vadd.f32 %v4090, 1e-05
        %v4123 = vadd.f32 %v4091, 1e-05
        %v4124 = vadd.f32 %v4092, 1e-05
        %v4125 = vadd.f32 %v4093, 1e-05
        %v4126 = vadd.f32 %v4094, 1e-05
        %v4127 = vrsqrt.pop %v4095
        %v4128 = vrsqrt.pop %v4096
        %v4129 = vrsqrt.pop %v4097
        %v4130 = vrsqrt.pop %v4098
        %v4131 = vrsqrt.pop %v4099
        %v4132 = vrsqrt.pop %v4100
        %v4133 = vrsqrt.pop %v4101
        %v4134 = vrsqrt.pop %v4102
        %v4135 = vrsqrt.pop %v4103
        %v4136 = vrsqrt.pop %v4104
        %v4137 = vrsqrt.pop %v4105
        %v4138 = vrsqrt.pop %v4106
        %v4139 = vrsqrt.pop %v4107
        %v4140 = vrsqrt.pop %v4108
        %v4141 = vrsqrt.pop %v4109
        %v4142 = vrsqrt.pop %v4110
        %v4143 = vrsqrt.pop %v4111
        %v4144 = vrsqrt.pop %v4112
        %v4145 = vrsqrt.pop %v4113
        %v4146 = vrsqrt.pop %v4114
        %v4147 = vrsqrt.pop %v4115
        %v4148 = vrsqrt.pop %v4116
        %v4149 = vrsqrt.pop %v4117
        %v4150 = vrsqrt.pop %v4118
        %v4151 = vrsqrt.pop %v4119
        %v4152 = vrsqrt.pop %v4120
        %v4153 = vrsqrt.pop %v4121
        %v4154 = vrsqrt.pop %v4122
        %v4155 = vrsqrt.pop %v4123
        %v4156 = vrsqrt.pop %v4124
        %v4157 = vrsqrt.pop %v4125
        %v4158 = vrsqrt.pop %v4126
        %v4159 = vmul.f32 %v3647, %v4127
        %v4160 = vmul.f32 %v3648, %v4127
        %v4161 = vmul.f32 %v3649, %v4127
        %v4162 = vmul.f32 %v3650, %v4127
        %v4163 = vmul.f32 %v3651, %v4128
        %v4164 = vmul.f32 %v3652, %v4128
        %v4165 = vmul.f32 %v3653, %v4128
        %v4166 = vmul.f32 %v3654, %v4128
        %v4167 = vmul.f32 %v3655, %v4129
        %v4168 = vmul.f32 %v3656, %v4129
        %v4169 = vmul.f32 %v3657, %v4129
        %v4170 = vmul.f32 %v3658, %v4129
        %v4171 = vmul.f32 %v3659, %v4130
        %v4172 = vmul.f32 %v3660, %v4130
        %v4173 = vmul.f32 %v3661, %v4130
        %v4174 = vmul.f32 %v3662, %v4130
        %v4175 = vmul.f32 %v3663, %v4131
        %v4176 = vmul.f32 %v3664, %v4131
        %v4177 = vmul.f32 %v3665, %v4131
        %v4178 = vmul.f32 %v3666, %v4131
        %v4179 = vmul.f32 %v3667, %v4132
        %v4180 = vmul.f32 %v3668, %v4132
        %v4181 = vmul.f32 %v3669, %v4132
        %v4182 = vmul.f32 %v3670, %v4132
        %v4183 = vmul.f32 %v3671, %v4133
        %v4184 = vmul.f32 %v3672, %v4133
        %v4185 = vmul.f32 %v3673, %v4133
        %v4186 = vmul.f32 %v3674, %v4133
        %v4187 = vmul.f32 %v3675, %v4134
        %v4188 = vmul.f32 %v3676, %v4134
        %v4189 = vmul.f32 %v3677, %v4134
        %v4190 = vmul.f32 %v3678, %v4134
        %v4191 = vmul.f32 %v3679, %v4135
        %v4192 = vmul.f32 %v3680, %v4135
        %v4193 = vmul.f32 %v3681, %v4135
        %v4194 = vmul.f32 %v3682, %v4135
        %v4195 = vmul.f32 %v3683, %v4136
        %v4196 = vmul.f32 %v3684, %v4136
        %v4197 = vmul.f32 %v3685, %v4136
        %v4198 = vmul.f32 %v3686, %v4136
        %v4199 = vmul.f32 %v3687, %v4137
        %v4200 = vmul.f32 %v3688, %v4137
        %v4201 = vmul.f32 %v3689, %v4137
        %v4202 = vmul.f32 %v3690, %v4137
        %v4203 = vmul.f32 %v3691, %v4138
        %v4204 = vmul.f32 %v3692, %v4138
        %v4205 = vmul.f32 %v3693, %v4138
        %v4206 = vmul.f32 %v3694, %v4138
        %v4207 = vmul.f32 %v3695, %v4139
        %v4208 = vmul.f32 %v3696, %v4139
        %v4209 = vmul.f32 %v3697, %v4139
        %v4210 = vmul.f32 %v3698, %v4139
        %v4211 = vmul.f32 %v3699, %v4140
        %v4212 = vmul.f32 %v3700, %v4140
        %v4213 = vmul.f32 %v3701, %v4140
        %v4214 = vmul.f32 %v3702, %v4140
        %v4215 = vmul.f32 %v3703, %v4141
        %v4216 = vmul.f32 %v3704, %v4141
        %v4217 = vmul.f32 %v3705, %v4141
        %v4218 = vmul.f32 %v3706, %v4141
        %v4219 = vmul.f32 %v3707, %v4142
        %v4220 = vmul.f32 %v3708, %v4142
        %v4221 = vmul.f32 %v3709, %v4142
        %v4222 = vmul.f32 %v3710, %v4142
        %v4223 = vmul.f32 %v3711, %v4143
        %v4224 = vmul.f32 %v3712, %v4143
        %v4225 = vmul.f32 %v3713, %v4143
        %v4226 = vmul.f32 %v3714, %v4143
        %v4227 = vmul.f32 %v3715, %v4144
        %v4228 = vmul.f32 %v3716, %v4144
        %v4229 = vmul.f32 %v3717, %v4144
        %v4230 = vmul.f32 %v3718, %v4144
        %v4231 = vmul.f32 %v3719, %v4145
        %v4232 = vmul.f32 %v3720, %v4145
        %v4233 = vmul.f32 %v3721, %v4145
        %v4234 = vmul.f32 %v3722, %v4145
        %v4235 = vmul.f32 %v3723, %v4146
        %v4236 = vmul.f32 %v3724, %v4146
        %v4237 = vmul.f32 %v3725, %v4146
        %v4238 = vmul.f32 %v3726, %v4146
        %v4239 = vmul.f32 %v3727, %v4147
        %v4240 = vmul.f32 %v3728, %v4147
        %v4241 = vmul.f32 %v3729, %v4147
        %v4242 = vmul.f32 %v3730, %v4147
        %v4243 = vmul.f32 %v3731, %v4148
        %v4244 = vmul.f32 %v3732, %v4148
        %v4245 = vmul.f32 %v3733, %v4148
        %v4246 = vmul.f32 %v3734, %v4148
        %v4247 = vmul.f32 %v3735, %v4149
        %v4248 = vmul.f32 %v3736, %v4149
        %v4249 = vmul.f32 %v3737, %v4149
        %v4250 = vmul.f32 %v3738, %v4149
        %v4251 = vmul.f32 %v3739, %v4150
        %v4252 = vmul.f32 %v3740, %v4150
        %v4253 = vmul.f32 %v3741, %v4150
        %v4254 = vmul.f32 %v3742, %v4150
        %v4255 = vmul.f32 %v3743, %v4151
        %v4256 = vmul.f32 %v3744, %v4151
        %v4257 = vmul.f32 %v3745, %v4151
        %v4258 = vmul.f32 %v3746, %v4151
        %v4259 = vmul.f32 %v3747, %v4152
        %v4260 = vmul.f32 %v3748, %v4152
        %v4261 = vmul.f32 %v3749, %v4152
        %v4262 = vmul.f32 %v3750, %v4152
        %v4263 = vmul.f32 %v3751, %v4153
        %v4264 = vmul.f32 %v3752, %v4153
        %v4265 = vmul.f32 %v3753, %v4153
        %v4266 = vmul.f32 %v3754, %v4153
        %v4267 = vmul.f32 %v3755, %v4154
        %v4268 = vmul.f32 %v3756, %v4154
        %v4269 = vmul.f32 %v3757, %v4154
        %v4270 = vmul.f32 %v3758, %v4154
        %v4271 = vmul.f32 %v3759, %v4155
        %v4272 = vmul.f32 %v3760, %v4155
        %v4273 = vmul.f32 %v3761, %v4155
        %v4274 = vmul.f32 %v3762, %v4155
        %v4275 = vmul.f32 %v3763, %v4156
        %v4276 = vmul.f32 %v3764, %v4156
        %v4277 = vmul.f32 %v3765, %v4156
        %v4278 = vmul.f32 %v3766, %v4156
        %v4279 = vmul.f32 %v3767, %v4157
        %v4280 = vmul.f32 %v3768, %v4157
        %v4281 = vmul.f32 %v3769, %v4157
        %v4282 = vmul.f32 %v3770, %v4157
        %v4283 = vmul.f32 %v3771, %v4158
        %v4284 = vmul.f32 %v3772, %v4158
        %v4285 = vmul.f32 %v3773, %v4158
        %v4286 = vmul.f32 %v3774, %v4158
        %v4288 = vlaneseq
        %v4289 = vshrl.u32 %v4288, 7
        %v4290 = vsub.s32 0, %v4289
        %v4291 = vrot.slane %v3452, %v4290
        %v4292 = vlaneseq
        %v4293 = vshrl.u32 %v4292, 7
        %v4294 = vsub.s32 1, %v4293
        %v4295 = vrot.slane %v3452, %v4294
        %v4296 = vlaneseq
        %v4297 = vshrl.u32 %v4296, 7
        %v4298 = vsub.s32 2, %v4297
        %v4299 = vrot.slane %v3452, %v4298
        %v4300 = vlaneseq
        %v4301 = vshrl.u32 %v4300, 7
        %v4302 = vsub.s32 3, %v4301
        %v4303 = vrot.slane %v3452, %v4302
        %v4308 = vmul.f32 %v4159, %v4291
        %v4309 = vmul.f32 %v4160, %v4295
        %v4310 = vmul.f32 %v4161, %v4299
        %v4311 = vmul.f32 %v4162, %v4303
        %v4312 = vmul.f32 %v4163, %v4291
        %v4313 = vmul.f32 %v4164, %v4295
        %v4314 = vmul.f32 %v4165, %v4299
        %v4315 = vmul.f32 %v4166, %v4303
        %v4316 = vmul.f32 %v4167, %v4291
        %v4317 = vmul.f32 %v4168, %v4295
        %v4318 = vmul.f32 %v4169, %v4299
        %v4319 = vmul.f32 %v4170, %v4303
        %v4320 = vmul.f32 %v4171, %v4291
        %v4321 = vmul.f32 %v4172, %v4295
        %v4322 = vmul.f32 %v4173, %v4299
        %v4323 = vmul.f32 %v4174, %v4303
        %v4324 = vmul.f32 %v4175, %v4291
        %v4325 = vmul.f32 %v4176, %v4295
        %v4326 = vmul.f32 %v4177, %v4299
        %v4327 = vmul.f32 %v4178, %v4303
        %v4328 = vmul.f32 %v4179, %v4291
        %v4329 = vmul.f32 %v4180, %v4295
        %v4330 = vmul.f32 %v4181, %v4299
        %v4331 = vmul.f32 %v4182, %v4303
        %v4332 = vmul.f32 %v4183, %v4291
        %v4333 = vmul.f32 %v4184, %v4295
        %v4334 = vmul.f32 %v4185, %v4299
        %v4335 = vmul.f32 %v4186, %v4303
        %v4336 = vmul.f32 %v4187, %v4291
        %v4337 = vmul.f32 %v4188, %v4295
        %v4338 = vmul.f32 %v4189, %v4299
        %v4339 = vmul.f32 %v4190, %v4303
        %v4340 = vmul.f32 %v4191, %v4291
        %v4341 = vmul.f32 %v4192, %v4295
        %v4342 = vmul.f32 %v4193, %v4299
        %v4343 = vmul.f32 %v4194, %v4303
        %v4344 = vmul.f32 %v4195, %v4291
        %v4345 = vmul.f32 %v4196, %v4295
        %v4346 = vmul.f32 %v4197, %v4299
        %v4347 = vmul.f32 %v4198, %v4303
        %v4348 = vmul.f32 %v4199, %v4291
        %v4349 = vmul.f32 %v4200, %v4295
        %v4350 = vmul.f32 %v4201, %v4299
        %v4351 = vmul.f32 %v4202, %v4303
        %v4352 = vmul.f32 %v4203, %v4291
        %v4353 = vmul.f32 %v4204, %v4295
        %v4354 = vmul.f32 %v4205, %v4299
        %v4355 = vmul.f32 %v4206, %v4303
        %v4356 = vmul.f32 %v4207, %v4291
        %v4357 = vmul.f32 %v4208, %v4295
        %v4358 = vmul.f32 %v4209, %v4299
        %v4359 = vmul.f32 %v4210, %v4303
        %v4360 = vmul.f32 %v4211, %v4291
        %v4361 = vmul.f32 %v4212, %v4295
        %v4362 = vmul.f32 %v4213, %v4299
        %v4363 = vmul.f32 %v4214, %v4303
        %v4364 = vmul.f32 %v4215, %v4291
        %v4365 = vmul.f32 %v4216, %v4295
        %v4366 = vmul.f32 %v4217, %v4299
        %v4367 = vmul.f32 %v4218, %v4303
        %v4368 = vmul.f32 %v4219, %v4291
        %v4369 = vmul.f32 %v4220, %v4295
        %v4370 = vmul.f32 %v4221, %v4299
        %v4371 = vmul.f32 %v4222, %v4303
        %v4372 = vmul.f32 %v4223, %v4291
        %v4373 = vmul.f32 %v4224, %v4295
        %v4374 = vmul.f32 %v4225, %v4299
        %v4375 = vmul.f32 %v4226, %v4303
        %v4376 = vmul.f32 %v4227, %v4291
        %v4377 = vmul.f32 %v4228, %v4295
        %v4378 = vmul.f32 %v4229, %v4299
        %v4379 = vmul.f32 %v4230, %v4303
        %v4380 = vmul.f32 %v4231, %v4291
        %v4381 = vmul.f32 %v4232, %v4295
        %v4382 = vmul.f32 %v4233, %v4299
        %v4383 = vmul.f32 %v4234, %v4303
        %v4384 = vmul.f32 %v4235, %v4291
        %v4385 = vmul.f32 %v4236, %v4295
        %v4386 = vmul.f32 %v4237, %v4299
        %v4387 = vmul.f32 %v4238, %v4303
        %v4388 = vmul.f32 %v4239, %v4291
        %v4389 = vmul.f32 %v4240, %v4295
        %v4390 = vmul.f32 %v4241, %v4299
        %v4391 = vmul.f32 %v4242, %v4303
        %v4392 = vmul.f32 %v4243, %v4291
        %v4393 = vmul.f32 %v4244, %v4295
        %v4394 = vmul.f32 %v4245, %v4299
        %v4395 = vmul.f32 %v4246, %v4303
        %v4396 = vmul.f32 %v4247, %v4291
        %v4397 = vmul.f32 %v4248, %v4295
        %v4398 = vmul.f32 %v4249, %v4299
        %v4399 = vmul.f32 %v4250, %v4303
        %v4400 = vmul.f32 %v4251, %v4291
        %v4401 = vmul.f32 %v4252, %v4295
        %v4402 = vmul.f32 %v4253, %v4299
        %v4403 = vmul.f32 %v4254, %v4303
        %v4404 = vmul.f32 %v4255, %v4291
        %v4405 = vmul.f32 %v4256, %v4295
        %v4406 = vmul.f32 %v4257, %v4299
        %v4407 = vmul.f32 %v4258, %v4303
        %v4408 = vmul.f32 %v4259, %v4291
        %v4409 = vmul.f32 %v4260, %v4295
        %v4410 = vmul.f32 %v4261, %v4299
        %v4411 = vmul.f32 %v4262, %v4303
        %v4412 = vmul.f32 %v4263, %v4291
        %v4413 = vmul.f32 %v4264, %v4295
        %v4414 = vmul.f32 %v4265, %v4299
        %v4415 = vmul.f32 %v4266, %v4303
        %v4416 = vmul.f32 %v4267, %v4291
        %v4417 = vmul.f32 %v4268, %v4295
        %v4418 = vmul.f32 %v4269, %v4299
        %v4419 = vmul.f32 %v4270, %v4303
        %v4420 = vmul.f32 %v4271, %v4291
        %v4421 = vmul.f32 %v4272, %v4295
        %v4422 = vmul.f32 %v4273, %v4299
        %v4423 = vmul.f32 %v4274, %v4303
        %v4424 = vmul.f32 %v4275, %v4291
        %v4425 = vmul.f32 %v4276, %v4295
        %v4426 = vmul.f32 %v4277, %v4299
        %v4427 = vmul.f32 %v4278, %v4303
        %v4428 = vmul.f32 %v4279, %v4291
        %v4429 = vmul.f32 %v4280, %v4295
        %v4430 = vmul.f32 %v4281, %v4299
        %v4431 = vmul.f32 %v4282, %v4303
        %v4432 = vmul.f32 %v4283, %v4291
        %v4433 = vmul.f32 %v4284, %v4295
        %v4434 = vmul.f32 %v4285, %v4299
        %v4435 = vmul.f32 %v4286, %v4303
        %v4437 = vlaneseq
        %v4438 = vshrl.u32 %v4437, 7
        %v4439 = vsub.s32 0, %v4438
        %v4440 = vrot.slane %v3453, %v4439
        %v4441 = vlaneseq
        %v4442 = vshrl.u32 %v4441, 7
        %v4443 = vsub.s32 1, %v4442
        %v4444 = vrot.slane %v3453, %v4443
        %v4445 = vlaneseq
        %v4446 = vshrl.u32 %v4445, 7
        %v4447 = vsub.s32 2, %v4446
        %v4448 = vrot.slane %v3453, %v4447
        %v4449 = vlaneseq
        %v4450 = vshrl.u32 %v4449, 7
        %v4451 = vsub.s32 3, %v4450
        %v4452 = vrot.slane %v3453, %v4451
        %v4457 = vadd.f32 %v4308, %v4440
        %v4458 = vadd.f32 %v4309, %v4444
        %v4459 = vadd.f32 %v4310, %v4448
        %v4460 = vadd.f32 %v4311, %v4452
        %v4461 = vadd.f32 %v4312, %v4440
        %v4462 = vadd.f32 %v4313, %v4444
        %v4463 = vadd.f32 %v4314, %v4448
        %v4464 = vadd.f32 %v4315, %v4452
        %v4465 = vadd.f32 %v4316, %v4440
        %v4466 = vadd.f32 %v4317, %v4444
        %v4467 = vadd.f32 %v4318, %v4448
        %v4468 = vadd.f32 %v4319, %v4452
        %v4469 = vadd.f32 %v4320, %v4440
        %v4470 = vadd.f32 %v4321, %v4444
        %v4471 = vadd.f32 %v4322, %v4448
        %v4472 = vadd.f32 %v4323, %v4452
        %v4473 = vadd.f32 %v4324, %v4440
        %v4474 = vadd.f32 %v4325, %v4444
        %v4475 = vadd.f32 %v4326, %v4448
        %v4476 = vadd.f32 %v4327, %v4452
        %v4477 = vadd.f32 %v4328, %v4440
        %v4478 = vadd.f32 %v4329, %v4444
        %v4479 = vadd.f32 %v4330, %v4448
        %v4480 = vadd.f32 %v4331, %v4452
        %v4481 = vadd.f32 %v4332, %v4440
        %v4482 = vadd.f32 %v4333, %v4444
        %v4483 = vadd.f32 %v4334, %v4448
        %v4484 = vadd.f32 %v4335, %v4452
        %v4485 = vadd.f32 %v4336, %v4440
        %v4486 = vadd.f32 %v4337, %v4444
        %v4487 = vadd.f32 %v4338, %v4448
        %v4488 = vadd.f32 %v4339, %v4452
        %v4489 = vadd.f32 %v4340, %v4440
        %v4490 = vadd.f32 %v4341, %v4444
        %v4491 = vadd.f32 %v4342, %v4448
        %v4492 = vadd.f32 %v4343, %v4452
        %v4493 = vadd.f32 %v4344, %v4440
        %v4494 = vadd.f32 %v4345, %v4444
        %v4495 = vadd.f32 %v4346, %v4448
        %v4496 = vadd.f32 %v4347, %v4452
        %v4497 = vadd.f32 %v4348, %v4440
        %v4498 = vadd.f32 %v4349, %v4444
        %v4499 = vadd.f32 %v4350, %v4448
        %v4500 = vadd.f32 %v4351, %v4452
        %v4501 = vadd.f32 %v4352, %v4440
        %v4502 = vadd.f32 %v4353, %v4444
        %v4503 = vadd.f32 %v4354, %v4448
        %v4504 = vadd.f32 %v4355, %v4452
        %v4505 = vadd.f32 %v4356, %v4440
        %v4506 = vadd.f32 %v4357, %v4444
        %v4507 = vadd.f32 %v4358, %v4448
        %v4508 = vadd.f32 %v4359, %v4452
        %v4509 = vadd.f32 %v4360, %v4440
        %v4510 = vadd.f32 %v4361, %v4444
        %v4511 = vadd.f32 %v4362, %v4448
        %v4512 = vadd.f32 %v4363, %v4452
        %v4513 = vadd.f32 %v4364, %v4440
        %v4514 = vadd.f32 %v4365, %v4444
        %v4515 = vadd.f32 %v4366, %v4448
        %v4516 = vadd.f32 %v4367, %v4452
        %v4517 = vadd.f32 %v4368, %v4440
        %v4518 = vadd.f32 %v4369, %v4444
        %v4519 = vadd.f32 %v4370, %v4448
        %v4520 = vadd.f32 %v4371, %v4452
        %v4521 = vadd.f32 %v4372, %v4440
        %v4522 = vadd.f32 %v4373, %v4444
        %v4523 = vadd.f32 %v4374, %v4448
        %v4524 = vadd.f32 %v4375, %v4452
        %v4525 = vadd.f32 %v4376, %v4440
        %v4526 = vadd.f32 %v4377, %v4444
        %v4527 = vadd.f32 %v4378, %v4448
        %v4528 = vadd.f32 %v4379, %v4452
        %v4529 = vadd.f32 %v4380, %v4440
        %v4530 = vadd.f32 %v4381, %v4444
        %v4531 = vadd.f32 %v4382, %v4448
        %v4532 = vadd.f32 %v4383, %v4452
        %v4533 = vadd.f32 %v4384, %v4440
        %v4534 = vadd.f32 %v4385, %v4444
        %v4535 = vadd.f32 %v4386, %v4448
        %v4536 = vadd.f32 %v4387, %v4452
        %v4537 = vadd.f32 %v4388, %v4440
        %v4538 = vadd.f32 %v4389, %v4444
        %v4539 = vadd.f32 %v4390, %v4448
        %v4540 = vadd.f32 %v4391, %v4452
        %v4541 = vadd.f32 %v4392, %v4440
        %v4542 = vadd.f32 %v4393, %v4444
        %v4543 = vadd.f32 %v4394, %v4448
        %v4544 = vadd.f32 %v4395, %v4452
        %v4545 = vadd.f32 %v4396, %v4440
        %v4546 = vadd.f32 %v4397, %v4444
        %v4547 = vadd.f32 %v4398, %v4448
        %v4548 = vadd.f32 %v4399, %v4452
        %v4549 = vadd.f32 %v4400, %v4440
        %v4550 = vadd.f32 %v4401, %v4444
        %v4551 = vadd.f32 %v4402, %v4448
        %v4552 = vadd.f32 %v4403, %v4452
        %v4553 = vadd.f32 %v4404, %v4440
        %v4554 = vadd.f32 %v4405, %v4444
        %v4555 = vadd.f32 %v4406, %v4448
        %v4556 = vadd.f32 %v4407, %v4452
        %v4557 = vadd.f32 %v4408, %v4440
        %v4558 = vadd.f32 %v4409, %v4444
        %v4559 = vadd.f32 %v4410, %v4448
        %v4560 = vadd.f32 %v4411, %v4452
        %v4561 = vadd.f32 %v4412, %v4440
        %v4562 = vadd.f32 %v4413, %v4444
        %v4563 = vadd.f32 %v4414, %v4448
        %v4564 = vadd.f32 %v4415, %v4452
        %v4565 = vadd.f32 %v4416, %v4440
        %v4566 = vadd.f32 %v4417, %v4444
        %v4567 = vadd.f32 %v4418, %v4448
        %v4568 = vadd.f32 %v4419, %v4452
        %v4569 = vadd.f32 %v4420, %v4440
        %v4570 = vadd.f32 %v4421, %v4444
        %v4571 = vadd.f32 %v4422, %v4448
        %v4572 = vadd.f32 %v4423, %v4452
        %v4573 = vadd.f32 %v4424, %v4440
        %v4574 = vadd.f32 %v4425, %v4444
        %v4575 = vadd.f32 %v4426, %v4448
        %v4576 = vadd.f32 %v4427, %v4452
        %v4577 = vadd.f32 %v4428, %v4440
        %v4578 = vadd.f32 %v4429, %v4444
        %v4579 = vadd.f32 %v4430, %v4448
        %v4580 = vadd.f32 %v4431, %v4452
        %v4581 = vadd.f32 %v4432, %v4440
        %v4582 = vadd.f32 %v4433, %v4444
        %v4583 = vadd.f32 %v4434, %v4448
        %v4584 = vadd.f32 %v4435, %v4452
        %v4585 = vpack.c.bf16 %v4461, %v4457
        %v4586 = vpack.c.bf16 %v4462, %v4458
        %v4587 = vpack.c.bf16 %v4463, %v4459
        %v4588 = vpack.c.bf16 %v4464, %v4460
        %v4589 = vpack.c.bf16 %v4469, %v4465
        %v4590 = vpack.c.bf16 %v4470, %v4466
        %v4591 = vpack.c.bf16 %v4471, %v4467
        %v4592 = vpack.c.bf16 %v4472, %v4468
        %v4593 = vpack.c.bf16 %v4477, %v4473
        %v4594 = vpack.c.bf16 %v4478, %v4474
        %v4595 = vpack.c.bf16 %v4479, %v4475
        %v4596 = vpack.c.bf16 %v4480, %v4476
        %v4597 = vpack.c.bf16 %v4485, %v4481
        %v4598 = vpack.c.bf16 %v4486, %v4482
        %v4599 = vpack.c.bf16 %v4487, %v4483
        %v4600 = vpack.c.bf16 %v4488, %v4484
        %v4601 = vpack.c.bf16 %v4493, %v4489
        %v4602 = vpack.c.bf16 %v4494, %v4490
        %v4603 = vpack.c.bf16 %v4495, %v4491
        %v4604 = vpack.c.bf16 %v4496, %v4492
        %v4605 = vpack.c.bf16 %v4501, %v4497
        %v4606 = vpack.c.bf16 %v4502, %v4498
        %v4607 = vpack.c.bf16 %v4503, %v4499
        %v4608 = vpack.c.bf16 %v4504, %v4500
        %v4609 = vpack.c.bf16 %v4509, %v4505
        %v4610 = vpack.c.bf16 %v4510, %v4506
        %v4611 = vpack.c.bf16 %v4511, %v4507
        %v4612 = vpack.c.bf16 %v4512, %v4508
        %v4613 = vpack.c.bf16 %v4517, %v4513
        %v4614 = vpack.c.bf16 %v4518, %v4514
        %v4615 = vpack.c.bf16 %v4519, %v4515
        %v4616 = vpack.c.bf16 %v4520, %v4516
        %v4617 = vpack.c.bf16 %v4525, %v4521
        %v4618 = vpack.c.bf16 %v4526, %v4522
        %v4619 = vpack.c.bf16 %v4527, %v4523
        %v4620 = vpack.c.bf16 %v4528, %v4524
        %v4621 = vpack.c.bf16 %v4533, %v4529
        %v4622 = vpack.c.bf16 %v4534, %v4530
        %v4623 = vpack.c.bf16 %v4535, %v4531
        %v4624 = vpack.c.bf16 %v4536, %v4532
        %v4625 = vpack.c.bf16 %v4541, %v4537
        %v4626 = vpack.c.bf16 %v4542, %v4538
        %v4627 = vpack.c.bf16 %v4543, %v4539
        %v4628 = vpack.c.bf16 %v4544, %v4540
        %v4629 = vpack.c.bf16 %v4549, %v4545
        %v4630 = vpack.c.bf16 %v4550, %v4546
        %v4631 = vpack.c.bf16 %v4551, %v4547
        %v4632 = vpack.c.bf16 %v4552, %v4548
        %v4633 = vpack.c.bf16 %v4557, %v4553
        %v4634 = vpack.c.bf16 %v4558, %v4554
        %v4635 = vpack.c.bf16 %v4559, %v4555
        %v4636 = vpack.c.bf16 %v4560, %v4556
        %v4637 = vpack.c.bf16 %v4565, %v4561
        %v4638 = vpack.c.bf16 %v4566, %v4562
        %v4639 = vpack.c.bf16 %v4567, %v4563
        %v4640 = vpack.c.bf16 %v4568, %v4564
        %v4641 = vpack.c.bf16 %v4573, %v4569
        %v4642 = vpack.c.bf16 %v4574, %v4570
        %v4643 = vpack.c.bf16 %v4575, %v4571
        %v4644 = vpack.c.bf16 %v4576, %v4572
        %v4645 = vpack.c.bf16 %v4581, %v4577
        %v4646 = vpack.c.bf16 %v4582, %v4578
        %v4647 = vpack.c.bf16 %v4583, %v4579
        %v4648 = vpack.c.bf16 %v4584, %v4580
        %v4649 = vld [vmem:[#allocation10] sm:$0xff]
        %v4650 = vld [vmem:[#allocation10 + $0x8] sm:$0xff]
        %v4651 = vld [vmem:[#allocation10 + $0x10] sm:$0xff]
        %v4652 = vld [vmem:[#allocation10 + $0x18] sm:$0xff]
        %v4653 = vld [vmem:[#allocation10 + $0x20] sm:$0xff]
        %v4654 = vld [vmem:[#allocation10 + $0x28] sm:$0xff]
        %v4655 = vld [vmem:[#allocation10 + $0x30] sm:$0xff]
        %v4656 = vld [vmem:[#allocation10 + $0x38] sm:$0xff]
        %v4657 = vld [vmem:[#allocation10 + $0x40] sm:$0xff]
        %v4658 = vld [vmem:[#allocation10 + $0x48] sm:$0xff]
        %v4659 = vld [vmem:[#allocation10 + $0x50] sm:$0xff]
        %v4660 = vld [vmem:[#allocation10 + $0x58] sm:$0xff]
        %v4661 = vld [vmem:[#allocation10 + $0x60] sm:$0xff]
        %v4662 = vld [vmem:[#allocation10 + $0x68] sm:$0xff]
        %v4663 = vld [vmem:[#allocation10 + $0x70] sm:$0xff]
        %v4664 = vld [vmem:[#allocation10 + $0x78] sm:$0xff]
        %v4665 = vld [vmem:[#allocation10 + $0x80] sm:$0xff]
        %v4666 = vld [vmem:[#allocation10 + $0x88] sm:$0xff]
        %v4667 = vld [vmem:[#allocation10 + $0x90] sm:$0xff]
        %v4668 = vld [vmem:[#allocation10 + $0x98] sm:$0xff]
        %v4669 = vld [vmem:[#allocation10 + $0xa0] sm:$0xff]
        %v4670 = vld [vmem:[#allocation10 + $0xa8] sm:$0xff]
        %v4671 = vld [vmem:[#allocation10 + $0xb0] sm:$0xff]
        %v4672 = vld [vmem:[#allocation10 + $0xb8] sm:$0xff]
        %v4673 = vld [vmem:[#allocation10 + $0xc0] sm:$0xff]
        %v4674 = vld [vmem:[#allocation10 + $0xc8] sm:$0xff]
        %v4675 = vld [vmem:[#allocation10 + $0xd0] sm:$0xff]
        %v4676 = vld [vmem:[#allocation10 + $0xd8] sm:$0xff]
        %v4677 = vld [vmem:[#allocation10 + $0xe0] sm:$0xff]
        %v4678 = vld [vmem:[#allocation10 + $0xe8] sm:$0xff]
        %v4679 = vld [vmem:[#allocation10 + $0xf0] sm:$0xff]
        %v4680 = vld [vmem:[#allocation10 + $0xf8] sm:$0xff]
        %v4681 = vld [vmem:[#allocation10 + $0x100] sm:$0xff]
        %v4682 = vld [vmem:[#allocation10 + $0x108] sm:$0xff]
        %v4683 = vld [vmem:[#allocation10 + $0x110] sm:$0xff]
        %v4684 = vld [vmem:[#allocation10 + $0x118] sm:$0xff]
        %v4685 = vld [vmem:[#allocation10 + $0x120] sm:$0xff]
        %v4686 = vld [vmem:[#allocation10 + $0x128] sm:$0xff]
        %v4687 = vld [vmem:[#allocation10 + $0x130] sm:$0xff]
        %v4688 = vld [vmem:[#allocation10 + $0x138] sm:$0xff]
        %v4689 = vld [vmem:[#allocation10 + $0x140] sm:$0xff]
        %v4690 = vld [vmem:[#allocation10 + $0x148] sm:$0xff]
        %v4691 = vld [vmem:[#allocation10 + $0x150] sm:$0xff]
        %v4692 = vld [vmem:[#allocation10 + $0x158] sm:$0xff]
        %v4693 = vld [vmem:[#allocation10 + $0x160] sm:$0xff]
        %v4694 = vld [vmem:[#allocation10 + $0x168] sm:$0xff]
        %v4695 = vld [vmem:[#allocation10 + $0x170] sm:$0xff]
        %v4696 = vld [vmem:[#allocation10 + $0x178] sm:$0xff]
        %v4697 = vld [vmem:[#allocation10 + $0x180] sm:$0xff]
        %v4698 = vld [vmem:[#allocation10 + $0x188] sm:$0xff]
        %v4699 = vld [vmem:[#allocation10 + $0x190] sm:$0xff]
        %v4700 = vld [vmem:[#allocation10 + $0x198] sm:$0xff]
        %v4701 = vld [vmem:[#allocation10 + $0x1a0] sm:$0xff]
        %v4702 = vld [vmem:[#allocation10 + $0x1a8] sm:$0xff]
        %v4703 = vld [vmem:[#allocation10 + $0x1b0] sm:$0xff]
        %v4704 = vld [vmem:[#allocation10 + $0x1b8] sm:$0xff]
        %v4705 = vld [vmem:[#allocation10 + $0x1c0] sm:$0xff]
        %v4706 = vld [vmem:[#allocation10 + $0x1c8] sm:$0xff]
        %v4707 = vld [vmem:[#allocation10 + $0x1d0] sm:$0xff]
        %v4708 = vld [vmem:[#allocation10 + $0x1d8] sm:$0xff]
        %v4709 = vld [vmem:[#allocation10 + $0x1e0] sm:$0xff]
        %v4710 = vld [vmem:[#allocation10 + $0x1e8] sm:$0xff]
        %v4711 = vld [vmem:[#allocation10 + $0x1f0] sm:$0xff]
        %v4712 = vld [vmem:[#allocation10 + $0x1f8] sm:$0xff]
        %v4777 = vunpack.c.l.b16 %v4649
        %v4778 = vunpack.c.h.b16 %v4649
        %v4779 = vunpack.c.l.b16 %v4650
        %v4780 = vunpack.c.h.b16 %v4650
        %v4781 = vunpack.c.l.b16 %v4651
        %v4782 = vunpack.c.h.b16 %v4651
        %v4783 = vunpack.c.l.b16 %v4652
        %v4784 = vunpack.c.h.b16 %v4652
        %v4785 = vunpack.c.l.b16 %v4653
        %v4786 = vunpack.c.h.b16 %v4653
        %v4787 = vunpack.c.l.b16 %v4654
        %v4788 = vunpack.c.h.b16 %v4654
        %v4789 = vunpack.c.l.b16 %v4655
        %v4790 = vunpack.c.h.b16 %v4655
        %v4791 = vunpack.c.l.b16 %v4656
        %v4792 = vunpack.c.h.b16 %v4656
        %v4793 = vunpack.c.l.b16 %v4657
        %v4794 = vunpack.c.h.b16 %v4657
        %v4795 = vunpack.c.l.b16 %v4658
        %v4796 = vunpack.c.h.b16 %v4658
        %v4797 = vunpack.c.l.b16 %v4659
        %v4798 = vunpack.c.h.b16 %v4659
        %v4799 = vunpack.c.l.b16 %v4660
        %v4800 = vunpack.c.h.b16 %v4660
        %v4801 = vunpack.c.l.b16 %v4661
        %v4802 = vunpack.c.h.b16 %v4661
        %v4803 = vunpack.c.l.b16 %v4662
        %v4804 = vunpack.c.h.b16 %v4662
        %v4805 = vunpack.c.l.b16 %v4663
        %v4806 = vunpack.c.h.b16 %v4663
        %v4807 = vunpack.c.l.b16 %v4664
        %v4808 = vunpack.c.h.b16 %v4664
        %v4809 = vunpack.c.l.b16 %v4665
        %v4810 = vunpack.c.h.b16 %v4665
        %v4811 = vunpack.c.l.b16 %v4666
        %v4812 = vunpack.c.h.b16 %v4666
        %v4813 = vunpack.c.l.b16 %v4667
        %v4814 = vunpack.c.h.b16 %v4667
        %v4815 = vunpack.c.l.b16 %v4668
        %v4816 = vunpack.c.h.b16 %v4668
        %v4817 = vunpack.c.l.b16 %v4669
        %v4818 = vunpack.c.h.b16 %v4669
        %v4819 = vunpack.c.l.b16 %v4670
        %v4820 = vunpack.c.h.b16 %v4670
        %v4821 = vunpack.c.l.b16 %v4671
        %v4822 = vunpack.c.h.b16 %v4671
        %v4823 = vunpack.c.l.b16 %v4672
        %v4824 = vunpack.c.h.b16 %v4672
        %v4825 = vunpack.c.l.b16 %v4673
        %v4826 = vunpack.c.h.b16 %v4673
        %v4827 = vunpack.c.l.b16 %v4674
        %v4828 = vunpack.c.h.b16 %v4674
        %v4829 = vunpack.c.l.b16 %v4675
        %v4830 = vunpack.c.h.b16 %v4675
        %v4831 = vunpack.c.l.b16 %v4676
        %v4832 = vunpack.c.h.b16 %v4676
        %v4833 = vunpack.c.l.b16 %v4677
        %v4834 = vunpack.c.h.b16 %v4677
        %v4835 = vunpack.c.l.b16 %v4678
        %v4836 = vunpack.c.h.b16 %v4678
        %v4837 = vunpack.c.l.b16 %v4679
        %v4838 = vunpack.c.h.b16 %v4679
        %v4839 = vunpack.c.l.b16 %v4680
        %v4840 = vunpack.c.h.b16 %v4680
        %v4841 = vunpack.c.l.b16 %v4681
        %v4842 = vunpack.c.h.b16 %v4681
        %v4843 = vunpack.c.l.b16 %v4682
        %v4844 = vunpack.c.h.b16 %v4682
        %v4845 = vunpack.c.l.b16 %v4683
        %v4846 = vunpack.c.h.b16 %v4683
        %v4847 = vunpack.c.l.b16 %v4684
        %v4848 = vunpack.c.h.b16 %v4684
        %v4849 = vunpack.c.l.b16 %v4685
        %v4850 = vunpack.c.h.b16 %v4685
        %v4851 = vunpack.c.l.b16 %v4686
        %v4852 = vunpack.c.h.b16 %v4686
        %v4853 = vunpack.c.l.b16 %v4687
        %v4854 = vunpack.c.h.b16 %v4687
        %v4855 = vunpack.c.l.b16 %v4688
        %v4856 = vunpack.c.h.b16 %v4688
        %v4857 = vunpack.c.l.b16 %v4689
        %v4858 = vunpack.c.h.b16 %v4689
        %v4859 = vunpack.c.l.b16 %v4690
        %v4860 = vunpack.c.h.b16 %v4690
        %v4861 = vunpack.c.l.b16 %v4691
        %v4862 = vunpack.c.h.b16 %v4691
        %v4863 = vunpack.c.l.b16 %v4692
        %v4864 = vunpack.c.h.b16 %v4692
        %v4865 = vunpack.c.l.b16 %v4693
        %v4866 = vunpack.c.h.b16 %v4693
        %v4867 = vunpack.c.l.b16 %v4694
        %v4868 = vunpack.c.h.b16 %v4694
        %v4869 = vunpack.c.l.b16 %v4695
        %v4870 = vunpack.c.h.b16 %v4695
        %v4871 = vunpack.c.l.b16 %v4696
        %v4872 = vunpack.c.h.b16 %v4696
        %v4873 = vunpack.c.l.b16 %v4697
        %v4874 = vunpack.c.h.b16 %v4697
        %v4875 = vunpack.c.l.b16 %v4698
        %v4876 = vunpack.c.h.b16 %v4698
        %v4877 = vunpack.c.l.b16 %v4699
        %v4878 = vunpack.c.h.b16 %v4699
        %v4879 = vunpack.c.l.b16 %v4700
        %v4880 = vunpack.c.h.b16 %v4700
        %v4881 = vunpack.c.l.b16 %v4701
        %v4882 = vunpack.c.h.b16 %v4701
        %v4883 = vunpack.c.l.b16 %v4702
        %v4884 = vunpack.c.h.b16 %v4702
        %v4885 = vunpack.c.l.b16 %v4703
        %v4886 = vunpack.c.h.b16 %v4703
        %v4887 = vunpack.c.l.b16 %v4704
        %v4888 = vunpack.c.h.b16 %v4704
        %v4889 = vunpack.c.l.b16 %v4705
        %v4890 = vunpack.c.h.b16 %v4705
        %v4891 = vunpack.c.l.b16 %v4706
        %v4892 = vunpack.c.h.b16 %v4706
        %v4893 = vunpack.c.l.b16 %v4707
        %v4894 = vunpack.c.h.b16 %v4707
        %v4895 = vunpack.c.l.b16 %v4708
        %v4896 = vunpack.c.h.b16 %v4708
        %v4897 = vunpack.c.l.b16 %v4709
        %v4898 = vunpack.c.h.b16 %v4709
        %v4899 = vunpack.c.l.b16 %v4710
        %v4900 = vunpack.c.h.b16 %v4710
        %v4901 = vunpack.c.l.b16 %v4711
        %v4902 = vunpack.c.h.b16 %v4711
        %v4903 = vunpack.c.l.b16 %v4712
        %v4904 = vunpack.c.h.b16 %v4712
        %v4905 = vpack.c.b16 %v4779, %v4777
        %v4906 = vpack.c.b16 %v4780, %v4778
        %v4907 = vpack.c.b16 %v4783, %v4781
        %v4908 = vpack.c.b16 %v4784, %v4782
        %v4909 = vpack.c.b16 %v4787, %v4785
        %v4910 = vpack.c.b16 %v4788, %v4786
        %v4911 = vpack.c.b16 %v4791, %v4789
        %v4912 = vpack.c.b16 %v4792, %v4790
        %v4913 = vpack.c.b16 %v4795, %v4793
        %v4914 = vpack.c.b16 %v4796, %v4794
        %v4915 = vpack.c.b16 %v4799, %v4797
        %v4916 = vpack.c.b16 %v4800, %v4798
        %v4917 = vpack.c.b16 %v4803, %v4801
        %v4918 = vpack.c.b16 %v4804, %v4802
        %v4919 = vpack.c.b16 %v4807, %v4805
        %v4920 = vpack.c.b16 %v4808, %v4806
        %v4921 = vpack.c.b16 %v4811, %v4809
        %v4922 = vpack.c.b16 %v4812, %v4810
        %v4923 = vpack.c.b16 %v4815, %v4813
        %v4924 = vpack.c.b16 %v4816, %v4814
        %v4925 = vpack.c.b16 %v4819, %v4817
        %v4926 = vpack.c.b16 %v4820, %v4818
        %v4927 = vpack.c.b16 %v4823, %v4821
        %v4928 = vpack.c.b16 %v4824, %v4822
        %v4929 = vpack.c.b16 %v4827, %v4825
        %v4930 = vpack.c.b16 %v4828, %v4826
        %v4931 = vpack.c.b16 %v4831, %v4829
        %v4932 = vpack.c.b16 %v4832, %v4830
        %v4933 = vpack.c.b16 %v4835, %v4833
        %v4934 = vpack.c.b16 %v4836, %v4834
        %v4935 = vpack.c.b16 %v4839, %v4837
        %v4936 = vpack.c.b16 %v4840, %v4838
        %v4937 = vpack.c.b16 %v4843, %v4841
        %v4938 = vpack.c.b16 %v4844, %v4842
        %v4939 = vpack.c.b16 %v4847, %v4845
        %v4940 = vpack.c.b16 %v4848, %v4846
        %v4941 = vpack.c.b16 %v4851, %v4849
        %v4942 = vpack.c.b16 %v4852, %v4850
        %v4943 = vpack.c.b16 %v4855, %v4853
        %v4944 = vpack.c.b16 %v4856, %v4854
        %v4945 = vpack.c.b16 %v4859, %v4857
        %v4946 = vpack.c.b16 %v4860, %v4858
        %v4947 = vpack.c.b16 %v4863, %v4861
        %v4948 = vpack.c.b16 %v4864, %v4862
        %v4949 = vpack.c.b16 %v4867, %v4865
        %v4950 = vpack.c.b16 %v4868, %v4866
        %v4951 = vpack.c.b16 %v4871, %v4869
        %v4952 = vpack.c.b16 %v4872, %v4870
        %v4953 = vpack.c.b16 %v4875, %v4873
        %v4954 = vpack.c.b16 %v4876, %v4874
        %v4955 = vpack.c.b16 %v4879, %v4877
        %v4956 = vpack.c.b16 %v4880, %v4878
        %v4957 = vpack.c.b16 %v4883, %v4881
        %v4958 = vpack.c.b16 %v4884, %v4882
        %v4959 = vpack.c.b16 %v4887, %v4885
        %v4960 = vpack.c.b16 %v4888, %v4886
        %v4961 = vpack.c.b16 %v4891, %v4889
        %v4962 = vpack.c.b16 %v4892, %v4890
        %v4963 = vpack.c.b16 %v4895, %v4893
        %v4964 = vpack.c.b16 %v4896, %v4894
        %v4965 = vpack.c.b16 %v4899, %v4897
        %v4966 = vpack.c.b16 %v4900, %v4898
        %v4967 = vpack.c.b16 %v4903, %v4901
        %v4968 = vpack.c.b16 %v4904, %v4902
        %5033 = vmatprep.subr.bf16.mxu0 %v4906
        %5034 = vmatpush1.bf16.msra.mxu0 %v4905
        %5035 = vmatprep.subr.bf16.mxu0 %v4908
        %5036 = vmatpush1.bf16.msra.mxu0 %v4907
        %5037 = vmatprep.subr.bf16.mxu0 %v4910
        %5038 = vmatpush1.bf16.msra.mxu0 %v4909
        %5039 = vmatprep.subr.bf16.mxu0 %v4912
        %5040 = vmatpush1.bf16.msra.mxu0 %v4911
        %5041 = vmatprep.subr.bf16.mxu0 %v4914
        %5042 = vmatpush1.bf16.msra.mxu0 %v4913
        %5043 = vmatprep.subr.bf16.mxu0 %v4916
        %5044 = vmatpush1.bf16.msra.mxu0 %v4915
        %5045 = vmatprep.subr.bf16.mxu0 %v4918
        %5046 = vmatpush1.bf16.msra.mxu0 %v4917
        %5047 = vmatprep.subr.bf16.mxu0 %v4920
        %5048 = vmatpush1.bf16.msra.mxu0 %v4919
        %5049 = vmatprep.subr.bf16.mxu0 %v4922
        %5050 = vmatpush1.bf16.msra.mxu0 %v4921
        %5051 = vmatprep.subr.bf16.mxu0 %v4924
        %5052 = vmatpush1.bf16.msra.mxu0 %v4923
        %5053 = vmatprep.subr.bf16.mxu0 %v4926
        %5054 = vmatpush1.bf16.msra.mxu0 %v4925
        %5055 = vmatprep.subr.bf16.mxu0 %v4928
        %5056 = vmatpush1.bf16.msra.mxu0 %v4927
        %5057 = vmatprep.subr.bf16.mxu0 %v4930
        %5058 = vmatpush1.bf16.msra.mxu0 %v4929
        %5059 = vmatprep.subr.bf16.mxu0 %v4932
        %5060 = vmatpush1.bf16.msra.mxu0 %v4931
        %5061 = vmatprep.subr.bf16.mxu0 %v4934
        %5062 = vmatpush1.bf16.msra.mxu0 %v4933
        %5063 = vmatprep.subr.bf16.mxu0 %v4936
        %5064 = vmatpush1.bf16.msra.mxu0 %v4935
        %5065 = vmatprep.mubr.bf16.mxu0 %v4586
        %5066 = vmatmul.mubr.bf16.gmra.mrb[0].mxu0 %v4585
        %v5067 = vpop.f32.mrb[0].mxu0
        %v5068 = vadd.f32 0.0, %v5067
        %v5069 = vpop.f32.mrb[0].mxu0
        %v5070 = vadd.f32 0.0, %v5069
        %v5071 = vpop.f32.mrb[0].mxu0
        %v5072 = vadd.f32 0.0, %v5071
        %v5073 = vpop.f32.mrb[0].mxu0
        %v5074 = vadd.f32 0.0, %v5073
        %5075 = vmatprep.mubr.bf16.mxu0 %v4590
        %5076 = vmatmul.mubr.bf16.gmra.mrb[0].mxu0 %v4589
        %v5077 = vpop.f32.mrb[0].mxu0
        %v5078 = vadd.f32 0.0, %v5077
        %v5079 = vpop.f32.mrb[0].mxu0
        %v5080 = vadd.f32 0.0, %v5079
        %v5081 = vpop.f32.mrb[0].mxu0
        %v5082 = vadd.f32 0.0, %v5081
        %v5083 = vpop.f32.mrb[0].mxu0
        %v5084 = vadd.f32 0.0, %v5083
        %5085 = vmatprep.mubr.bf16.mxu0 %v4594
        %5086 = vmatmul.mubr.bf16.gmra.mrb[0].mxu0 %v4593
        %v5087 = vpop.f32.mrb[0].mxu0
        %v5088 = vadd.f32 0.0, %v5087
        %v5089 = vpop.f32.mrb[0].mxu0
        %v5090 = vadd.f32 0.0, %v5089
        %v5091 = vpop.f32.mrb[0].mxu0
        %v5092 = vadd.f32 0.0, %v5091
        %v5093 = vpop.f32.mrb[0].mxu0
        %v5094 = vadd.f32 0.0, %v5093
        %5095 = vmatprep.mubr.bf16.mxu0 %v4598
        %5096 = vmatmul.mubr.bf16.gmra.mrb[0].mxu0 %v4597
        %v5097 = vpop.f32.mrb[0].mxu0
        %v5098 = vadd.f32 0.0, %v5097
        %v5099 = vpop.f32.mrb[0].mxu0
        %v5100 = vadd.f32 0.0, %v5099
        %v5101 = vpop.f32.mrb[0].mxu0
        %v5102 = vadd.f32 0.0, %v5101
        %v5103 = vpop.f32.mrb[0].mxu0
        %v5104 = vadd.f32 0.0, %v5103
        %5105 = vmatprep.mubr.bf16.mxu0 %v4602
        %5106 = vmatmul.mubr.bf16.gmra.mrb[0].mxu0 %v4601
        %v5107 = vpop.f32.mrb[0].mxu0
        %v5108 = vadd.f32 0.0, %v5107
        %v5109 = vpop.f32.mrb[0].mxu0
        %v5110 = vadd.f32 0.0, %v5109
        %v5111 = vpop.f32.mrb[0].mxu0
        %v5112 = vadd.f32 0.0, %v5111
        %v5113 = vpop.f32.mrb[0].mxu0
        %v5114 = vadd.f32 0.0, %v5113
        %5115 = vmatprep.mubr.bf16.mxu0 %v4606
        %5116 = vmatmul.mubr.bf16.gmra.mrb[0].mxu0 %v4605
        %v5117 = vpop.f32.mrb[0].mxu0
        %v5118 = vadd.f32 0.0, %v5117
        %v5119 = vpop.f32.mrb[0].mxu0
        %v5120 = vadd.f32 0.0, %v5119
        %v5121 = vpop.f32.mrb[0].mxu0
        %v5122 = vadd.f32 0.0, %v5121
        %v5123 = vpop.f32.mrb[0].mxu0
        %v5124 = vadd.f32 0.0, %v5123
        %5125 = vmatprep.mubr.bf16.mxu0 %v4610
        %5126 = vmatmul.mubr.bf16.gmra.mrb[0].mxu0 %v4609
        %v5127 = vpop.f32.mrb[0].mxu0
        %v5128 = vadd.f32 0.0, %v5127
        %v5129 = vpop.f32.mrb[0].mxu0
        %v5130 = vadd.f32 0.0, %v5129
        %v5131 = vpop.f32.mrb[0].mxu0
        %v5132 = vadd.f32 0.0, %v5131
        %v5133 = vpop.f32.mrb[0].mxu0
        %v5134 = vadd.f32 0.0, %v5133
        %5135 = vmatprep.mubr.bf16.mxu0 %v4614
        %5136 = vmatmul.mubr.bf16.gmra.mrb[0].mxu0 %v4613
        %v5137 = vpop.f32.mrb[0].mxu0
        %v5138 = vadd.f32 0.0, %v5137
        %v5139 = vpop.f32.mrb[0].mxu0
        %v5140 = vadd.f32 0.0, %v5139
        %v5141 = vpop.f32.mrb[0].mxu0
        %v5142 = vadd.f32 0.0, %v5141
        %v5143 = vpop.f32.mrb[0].mxu0
        %v5144 = vadd.f32 0.0, %v5143
        %5145 = vmatprep.mubr.bf16.mxu0 %v4618
        %5146 = vmatmul.mubr.bf16.gmra.mrb[0].mxu0 %v4617
        %v5147 = vpop.f32.mrb[0].mxu0
        %v5148 = vadd.f32 0.0, %v5147
        %v5149 = vpop.f32.mrb[0].mxu0
        %v5150 = vadd.f32 0.0, %v5149
        %v5151 = vpop.f32.mrb[0].mxu0
        %v5152 = vadd.f32 0.0, %v5151
        %v5153 = vpop.f32.mrb[0].mxu0
        %v5154 = vadd.f32 0.0, %v5153
        %5155 = vmatprep.mubr.bf16.mxu0 %v4622
        %5156 = vmatmul.mubr.bf16.gmra.mrb[0].mxu0 %v4621
        %v5157 = vpop.f32.mrb[0].mxu0
        %v5158 = vadd.f32 0.0, %v5157
        %v5159 = vpop.f32.mrb[0].mxu0
        %v5160 = vadd.f32 0.0, %v5159
        %v5161 = vpop.f32.mrb[0].mxu0
        %v5162 = vadd.f32 0.0, %v5161
        %v5163 = vpop.f32.mrb[0].mxu0
        %v5164 = vadd.f32 0.0, %v5163
        %5165 = vmatprep.mubr.bf16.mxu0 %v4626
        %5166 = vmatmul.mubr.bf16.gmra.mrb[0].mxu0 %v4625
        %v5167 = vpop.f32.mrb[0].mxu0
        %v5168 = vadd.f32 0.0, %v5167
        %v5169 = vpop.f32.mrb[0].mxu0
        %v5170 = vadd.f32 0.0, %v5169
        %v5171 = vpop.f32.mrb[0].mxu0
        %v5172 = vadd.f32 0.0, %v5171
        %v5173 = vpop.f32.mrb[0].mxu0
        %v5174 = vadd.f32 0.0, %v5173
        %5175 = vmatprep.mubr.bf16.mxu0 %v4630
        %5176 = vmatmul.mubr.bf16.gmra.mrb[0].mxu0 %v4629
        %v5177 = vpop.f32.mrb[0].mxu0
        %v5178 = vadd.f32 0.0, %v5177
        %v5179 = vpop.f32.mrb[0].mxu0
        %v5180 = vadd.f32 0.0, %v5179
        %v5181 = vpop.f32.mrb[0].mxu0
        %v5182 = vadd.f32 0.0, %v5181
        %v5183 = vpop.f32.mrb[0].mxu0
        %v5184 = vadd.f32 0.0, %v5183
        %5185 = vmatprep.mubr.bf16.mxu0 %v4634
        %5186 = vmatmul.mubr.bf16.gmra.mrb[0].mxu0 %v4633
        %v5187 = vpop.f32.mrb[0].mxu0
        %v5188 = vadd.f32 0.0, %v5187
        %v5189 = vpop.f32.mrb[0].mxu0
        %v5190 = vadd.f32 0.0, %v5189
        %v5191 = vpop.f32.mrb[0].mxu0
        %v5192 = vadd.f32 0.0, %v5191
        %v5193 = vpop.f32.mrb[0].mxu0
        %v5194 = vadd.f32 0.0, %v5193
        %5195 = vmatprep.mubr.bf16.mxu0 %v4638
        %5196 = vmatmul.mubr.bf16.gmra.mrb[0].mxu0 %v4637
        %v5197 = vpop.f32.mrb[0].mxu0
        %v5198 = vadd.f32 0.0, %v5197
        %v5199 = vpop.f32.mrb[0].mxu0
        %v5200 = vadd.f32 0.0, %v5199
        %v5201 = vpop.f32.mrb[0].mxu0
        %v5202 = vadd.f32 0.0, %v5201
        %v5203 = vpop.f32.mrb[0].mxu0
        %v5204 = vadd.f32 0.0, %v5203
        %5205 = vmatprep.mubr.bf16.mxu0 %v4642
        %5206 = vmatmul.mubr.bf16.gmra.mrb[0].mxu0 %v4641
        %v5207 = vpop.f32.mrb[0].mxu0
        %v5208 = vadd.f32 0.0, %v5207
        %v5209 = vpop.f32.mrb[0].mxu0
        %v5210 = vadd.f32 0.0, %v5209
        %v5211 = vpop.f32.mrb[0].mxu0
        %v5212 = vadd.f32 0.0, %v5211
        %v5213 = vpop.f32.mrb[0].mxu0
        %v5214 = vadd.f32 0.0, %v5213
        %5215 = vmatprep.mubr.bf16.mxu0 %v4646
        %5216 = vmatmul.mubr.bf16.gmra.mrb[0].mxu0 %v4645
        %v5217 = vpop.f32.mrb[0].mxu0
        %v5218 = vadd.f32 0.0, %v5217
        %v5219 = vpop.f32.mrb[0].mxu0
        %v5220 = vadd.f32 0.0, %v5219
        %v5221 = vpop.f32.mrb[0].mxu0
        %v5222 = vadd.f32 0.0, %v5221
        %v5223 = vpop.f32.mrb[0].mxu0
        %v5224 = vadd.f32 0.0, %v5223
        %5225 = vdwg.mxu0
        %5226 = vmatprep.subr.bf16.mxu0 %v4938
        %5227 = vmatpush1.bf16.msra.mxu0 %v4937
        %5228 = vmatprep.subr.bf16.mxu0 %v4940
        %5229 = vmatpush1.bf16.msra.mxu0 %v4939
        %5230 = vmatprep.subr.bf16.mxu0 %v4942
        %5231 = vmatpush1.bf16.msra.mxu0 %v4941
        %5232 = vmatprep.subr.bf16.mxu0 %v4944
        %5233 = vmatpush1.bf16.msra.mxu0 %v4943
        %5234 = vmatprep.subr.bf16.mxu0 %v4946
        %5235 = vmatpush1.bf16.msra.mxu0 %v4945
        %5236 = vmatprep.subr.bf16.mxu0 %v4948
        %5237 = vmatpush1.bf16.msra.mxu0 %v4947
        %5238 = vmatprep.subr.bf16.mxu0 %v4950
        %5239 = vmatpush1.bf16.msra.mxu0 %v4949
        %5240 = vmatprep.subr.bf16.mxu0 %v4952
        %5241 = vmatpush1.bf16.msra.mxu0 %v4951
        %5242 = vmatprep.subr.bf16.mxu0 %v4954
        %5243 = vmatpush1.bf16.msra.mxu0 %v4953
        %5244 = vmatprep.subr.bf16.mxu0 %v4956
        %5245 = vmatpush1.bf16.msra.mxu0 %v4955
        %5246 = vmatprep.subr.bf16.mxu0 %v4958
        %5247 = vmatpush1.bf16.msra.mxu0 %v4957
        %5248 = vmatprep.subr.bf16.mxu0 %v4960
        %5249 = vmatpush1.bf16.msra.mxu0 %v4959
        %5250 = vmatprep.subr.bf16.mxu0 %v4962
        %5251 = vmatpush1.bf16.msra.mxu0 %v4961
        %5252 = vmatprep.subr.bf16.mxu0 %v4964
        %5253 = vmatpush1.bf16.msra.mxu0 %v4963
        %5254 = vmatprep.subr.bf16.mxu0 %v4966
        %5255 = vmatpush1.bf16.msra.mxu0 %v4965
        %5256 = vmatprep.subr.bf16.mxu0 %v4968
        %5257 = vmatpush1.bf16.msra.mxu0 %v4967
        %5258 = vmatprep.mubr.bf16.mxu0 %v4588
        %5259 = vmatmul.mubr.bf16.gmra.mrb[0].mxu0 %v4587
        %v5260 = vpop.f32.mrb[0].mxu0
        %v5261 = vadd.f32 %v5068, %v5260
        %v5262 = vpop.f32.mrb[0].mxu0
        %v5263 = vadd.f32 %v5070, %v5262
        %v5264 = vpop.f32.mrb[0].mxu0
        %v5265 = vadd.f32 %v5072, %v5264
        %v5266 = vpop.f32.mrb[0].mxu0
        %v5267 = vadd.f32 %v5074, %v5266
        %5268 = vmatprep.mubr.bf16.mxu0 %v4592
        %5269 = vmatmul.mubr.bf16.gmra.mrb[0].mxu0 %v4591
        %v5270 = vpop.f32.mrb[0].mxu0
        %v5271 = vadd.f32 %v5078, %v5270
        %v5272 = vpop.f32.mrb[0].mxu0
        %v5273 = vadd.f32 %v5080, %v5272
        %v5274 = vpop.f32.mrb[0].mxu0
        %v5275 = vadd.f32 %v5082, %v5274
        %v5276 = vpop.f32.mrb[0].mxu0
        %v5277 = vadd.f32 %v5084, %v5276
        %5278 = vmatprep.mubr.bf16.mxu0 %v4596
        %5279 = vmatmul.mubr.bf16.gmra.mrb[0].mxu0 %v4595
        %v5280 = vpop.f32.mrb[0].mxu0
        %v5281 = vadd.f32 %v5088, %v5280
        %v5282 = vpop.f32.mrb[0].mxu0
        %v5283 = vadd.f32 %v5090, %v5282
        %v5284 = vpop.f32.mrb[0].mxu0
        %v5285 = vadd.f32 %v5092, %v5284
        %v5286 = vpop.f32.mrb[0].mxu0
        %v5287 = vadd.f32 %v5094, %v5286
        %5288 = vmatprep.mubr.bf16.mxu0 %v4600
        %5289 = vmatmul.mubr.bf16.gmra.mrb[0].mxu0 %v4599
        %v5290 = vpop.f32.mrb[0].mxu0
        %v5291 = vadd.f32 %v5098, %v5290
        %v5292 = vpop.f32.mrb[0].mxu0
        %v5293 = vadd.f32 %v5100, %v5292
        %v5294 = vpop.f32.mrb[0].mxu0
        %v5295 = vadd.f32 %v5102, %v5294
        %v5296 = vpop.f32.mrb[0].mxu0
        %v5297 = vadd.f32 %v5104, %v5296
        %5298 = vmatprep.mubr.bf16.mxu0 %v4604
        %5299 = vmatmul.mubr.bf16.gmra.mrb[0].mxu0 %v4603
        %v5300 = vpop.f32.mrb[0].mxu0
        %v5301 = vadd.f32 %v5108, %v5300
        %v5302 = vpop.f32.mrb[0].mxu0
        %v5303 = vadd.f32 %v5110, %v5302
        %v5304 = vpop.f32.mrb[0].mxu0
        %v5305 = vadd.f32 %v5112, %v5304
        %v5306 = vpop.f32.mrb[0].mxu0
        %v5307 = vadd.f32 %v5114, %v5306
        %5308 = vmatprep.mubr.bf16.mxu0 %v4608
        %5309 = vmatmul.mubr.bf16.gmra.mrb[0].mxu0 %v4607
        %v5310 = vpop.f32.mrb[0].mxu0
        %v5311 = vadd.f32 %v5118, %v5310
        %v5312 = vpop.f32.mrb[0].mxu0
        %v5313 = vadd.f32 %v5120, %v5312
        %v5314 = vpop.f32.mrb[0].mxu0
        %v5315 = vadd.f32 %v5122, %v5314
        %v5316 = vpop.f32.mrb[0].mxu0
        %v5317 = vadd.f32 %v5124, %v5316
        %5318 = vmatprep.mubr.bf16.mxu0 %v4612
        %5319 = vmatmul.mubr.bf16.gmra.mrb[0].mxu0 %v4611
        %v5320 = vpop.f32.mrb[0].mxu0
        %v5321 = vadd.f32 %v5128, %v5320
        %v5322 = vpop.f32.mrb[0].mxu0
        %v5323 = vadd.f32 %v5130, %v5322
        %v5324 = vpop.f32.mrb[0].mxu0
        %v5325 = vadd.f32 %v5132, %v5324
        %v5326 = vpop.f32.mrb[0].mxu0
        %v5327 = vadd.f32 %v5134, %v5326
        %5328 = vmatprep.mubr.bf16.mxu0 %v4616
        %5329 = vmatmul.mubr.bf16.gmra.mrb[0].mxu0 %v4615
        %v5330 = vpop.f32.mrb[0].mxu0
        %v5331 = vadd.f32 %v5138, %v5330
        %v5332 = vpop.f32.mrb[0].mxu0
        %v5333 = vadd.f32 %v5140, %v5332
        %v5334 = vpop.f32.mrb[0].mxu0
        %v5335 = vadd.f32 %v5142, %v5334
        %v5336 = vpop.f32.mrb[0].mxu0
        %v5337 = vadd.f32 %v5144, %v5336
        %5338 = vmatprep.mubr.bf16.mxu0 %v4620
        %5339 = vmatmul.mubr.bf16.gmra.mrb[0].mxu0 %v4619
        %v5340 = vpop.f32.mrb[0].mxu0
        %v5341 = vadd.f32 %v5148, %v5340
        %v5342 = vpop.f32.mrb[0].mxu0
        %v5343 = vadd.f32 %v5150, %v5342
        %v5344 = vpop.f32.mrb[0].mxu0
        %v5345 = vadd.f32 %v5152, %v5344
        %v5346 = vpop.f32.mrb[0].mxu0
        %v5347 = vadd.f32 %v5154, %v5346
        %5348 = vmatprep.mubr.bf16.mxu0 %v4624
        %5349 = vmatmul.mubr.bf16.gmra.mrb[0].mxu0 %v4623
        %v5350 = vpop.f32.mrb[0].mxu0
        %v5351 = vadd.f32 %v5158, %v5350
        %v5352 = vpop.f32.mrb[0].mxu0
        %v5353 = vadd.f32 %v5160, %v5352
        %v5354 = vpop.f32.mrb[0].mxu0
        %v5355 = vadd.f32 %v5162, %v5354
        %v5356 = vpop.f32.mrb[0].mxu0
        %v5357 = vadd.f32 %v5164, %v5356
        %5358 = vmatprep.mubr.bf16.mxu0 %v4628
        %5359 = vmatmul.mubr.bf16.gmra.mrb[0].mxu0 %v4627
        %v5360 = vpop.f32.mrb[0].mxu0
        %v5361 = vadd.f32 %v5168, %v5360
        %v5362 = vpop.f32.mrb[0].mxu0
        %v5363 = vadd.f32 %v5170, %v5362
        %v5364 = vpop.f32.mrb[0].mxu0
        %v5365 = vadd.f32 %v5172, %v5364
        %v5366 = vpop.f32.mrb[0].mxu0
        %v5367 = vadd.f32 %v5174, %v5366
        %5368 = vmatprep.mubr.bf16.mxu0 %v4632
        %5369 = vmatmul.mubr.bf16.gmra.mrb[0].mxu0 %v4631
        %v5370 = vpop.f32.mrb[0].mxu0
        %v5371 = vadd.f32 %v5178, %v5370
        %v5372 = vpop.f32.mrb[0].mxu0
        %v5373 = vadd.f32 %v5180, %v5372
        %v5374 = vpop.f32.mrb[0].mxu0
        %v5375 = vadd.f32 %v5182, %v5374
        %v5376 = vpop.f32.mrb[0].mxu0
        %v5377 = vadd.f32 %v5184, %v5376
        %5378 = vmatprep.mubr.bf16.mxu0 %v4636
        %5379 = vmatmul.mubr.bf16.gmra.mrb[0].mxu0 %v4635
        %v5380 = vpop.f32.mrb[0].mxu0
        %v5381 = vadd.f32 %v5188, %v5380
        %v5382 = vpop.f32.mrb[0].mxu0
        %v5383 = vadd.f32 %v5190, %v5382
        %v5384 = vpop.f32.mrb[0].mxu0
        %v5385 = vadd.f32 %v5192, %v5384
        %v5386 = vpop.f32.mrb[0].mxu0
        %v5387 = vadd.f32 %v5194, %v5386
        %5388 = vmatprep.mubr.bf16.mxu0 %v4640
        %5389 = vmatmul.mubr.bf16.gmra.mrb[0].mxu0 %v4639
        %v5390 = vpop.f32.mrb[0].mxu0
        %v5391 = vadd.f32 %v5198, %v5390
        %v5392 = vpop.f32.mrb[0].mxu0
        %v5393 = vadd.f32 %v5200, %v5392
        %v5394 = vpop.f32.mrb[0].mxu0
        %v5395 = vadd.f32 %v5202, %v5394
        %v5396 = vpop.f32.mrb[0].mxu0
        %v5397 = vadd.f32 %v5204, %v5396
        %5398 = vmatprep.mubr.bf16.mxu0 %v4644
        %5399 = vmatmul.mubr.bf16.gmra.mrb[0].mxu0 %v4643
        %v5400 = vpop.f32.mrb[0].mxu0
        %v5401 = vadd.f32 %v5208, %v5400
        %v5402 = vpop.f32.mrb[0].mxu0
        %v5403 = vadd.f32 %v5210, %v5402
        %v5404 = vpop.f32.mrb[0].mxu0
        %v5405 = vadd.f32 %v5212, %v5404
        %v5406 = vpop.f32.mrb[0].mxu0
        %v5407 = vadd.f32 %v5214, %v5406
        %5408 = vmatprep.mubr.bf16.mxu0 %v4648
        %5409 = vmatmul.mubr.bf16.gmra.mrb[0].mxu0 %v4647
        %v5410 = vpop.f32.mrb[0].mxu0
        %v5411 = vadd.f32 %v5218, %v5410
        %v5412 = vpop.f32.mrb[0].mxu0
        %v5413 = vadd.f32 %v5220, %v5412
        %v5414 = vpop.f32.mrb[0].mxu0
        %v5415 = vadd.f32 %v5222, %v5414
        %v5416 = vpop.f32.mrb[0].mxu0
        %v5417 = vadd.f32 %v5224, %v5416
        %5418 = vdwg.mxu0
        %5419 = vst [vmem:[%s380] sm:$0xff] %v5261
        %5420 = vst [vmem:[%s380 + $0x8] sm:$0xff] %v5263
        %5421 = vst [vmem:[%s380 + $0x10] sm:$0xff] %v5265
        %5422 = vst [vmem:[%s380 + $0x18] sm:$0xff] %v5267
        %5423 = vst [vmem:[%s380 + $0x20] sm:$0xff] %v5271
        %5424 = vst [vmem:[%s380 + $0x28] sm:$0xff] %v5273
        %5425 = vst [vmem:[%s380 + $0x30] sm:$0xff] %v5275
        %5426 = vst [vmem:[%s380 + $0x38] sm:$0xff] %v5277
        %5427 = vst [vmem:[%s380 + $0x40] sm:$0xff] %v5281
        %5428 = vst [vmem:[%s380 + $0x48] sm:$0xff] %v5283
        %5429 = vst [vmem:[%s380 + $0x50] sm:$0xff] %v5285
        %5430 = vst [vmem:[%s380 + $0x58] sm:$0xff] %v5287
        %5431 = vst [vmem:[%s380 + $0x60] sm:$0xff] %v5291
        %5432 = vst [vmem:[%s380 + $0x68] sm:$0xff] %v5293
        %5433 = vst [vmem:[%s380 + $0x70] sm:$0xff] %v5295
        %5434 = vst [vmem:[%s380 + $0x78] sm:$0xff] %v5297
        %5435 = vst [vmem:[%s380 + $0x80] sm:$0xff] %v5301
        %5436 = vst [vmem:[%s380 + $0x88] sm:$0xff] %v5303
        %5437 = vst [vmem:[%s380 + $0x90] sm:$0xff] %v5305
        %5438 = vst [vmem:[%s380 + $0x98] sm:$0xff] %v5307
        %5439 = vst [vmem:[%s380 + $0xa0] sm:$0xff] %v5311
        %5440 = vst [vmem:[%s380 + $0xa8] sm:$0xff] %v5313
        %5441 = vst [vmem:[%s380 + $0xb0] sm:$0xff] %v5315
        %5442 = vst [vmem:[%s380 + $0xb8] sm:$0xff] %v5317
        %5443 = vst [vmem:[%s380 + $0xc0] sm:$0xff] %v5321
        %5444 = vst [vmem:[%s380 + $0xc8] sm:$0xff] %v5323
        %5445 = vst [vmem:[%s380 + $0xd0] sm:$0xff] %v5325
        %5446 = vst [vmem:[%s380 + $0xd8] sm:$0xff] %v5327
        %5447 = vst [vmem:[%s380 + $0xe0] sm:$0xff] %v5331
        %5448 = vst [vmem:[%s380 + $0xe8] sm:$0xff] %v5333
        %5449 = vst [vmem:[%s380 + $0xf0] sm:$0xff] %v5335
        %5450 = vst [vmem:[%s380 + $0xf8] sm:$0xff] %v5337
        %5451 = vst [vmem:[%s380 + $0x100] sm:$0xff] %v5341
        %5452 = vst [vmem:[%s380 + $0x108] sm:$0xff] %v5343
        %5453 = vst [vmem:[%s380 + $0x110] sm:$0xff] %v5345
        %5454 = vst [vmem:[%s380 + $0x118] sm:$0xff] %v5347
        %5455 = vst [vmem:[%s380 + $0x120] sm:$0xff] %v5351
        %5456 = vst [vmem:[%s380 + $0x128] sm:$0xff] %v5353
        %5457 = vst [vmem:[%s380 + $0x130] sm:$0xff] %v5355
        %5458 = vst [vmem:[%s380 + $0x138] sm:$0xff] %v5357
        %5459 = vst [vmem:[%s380 + $0x140] sm:$0xff] %v5361
        %5460 = vst [vmem:[%s380 + $0x148] sm:$0xff] %v5363
        %5461 = vst [vmem:[%s380 + $0x150] sm:$0xff] %v5365
        %5462 = vst [vmem:[%s380 + $0x158] sm:$0xff] %v5367
        %5463 = vst [vmem:[%s380 + $0x160] sm:$0xff] %v5371
        %5464 = vst [vmem:[%s380 + $0x168] sm:$0xff] %v5373
        %5465 = vst [vmem:[%s380 + $0x170] sm:$0xff] %v5375
        %5466 = vst [vmem:[%s380 + $0x178] sm:$0xff] %v5377
        %5467 = vst [vmem:[%s380 + $0x180] sm:$0xff] %v5381
        %5468 = vst [vmem:[%s380 + $0x188] sm:$0xff] %v5383
        %5469 = vst [vmem:[%s380 + $0x190] sm:$0xff] %v5385
        %5470 = vst [vmem:[%s380 + $0x198] sm:$0xff] %v5387
        %5471 = vst [vmem:[%s380 + $0x1a0] sm:$0xff] %v5391
        %5472 = vst [vmem:[%s380 + $0x1a8] sm:$0xff] %v5393
        %5473 = vst [vmem:[%s380 + $0x1b0] sm:$0xff] %v5395
        %5474 = vst [vmem:[%s380 + $0x1b8] sm:$0xff] %v5397
        %5475 = vst [vmem:[%s380 + $0x1c0] sm:$0xff] %v5401
        %5476 = vst [vmem:[%s380 + $0x1c8] sm:$0xff] %v5403
        %5477 = vst [vmem:[%s380 + $0x1d0] sm:$0xff] %v5405
        %5478 = vst [vmem:[%s380 + $0x1d8] sm:$0xff] %v5407
        %5479 = vst [vmem:[%s380 + $0x1e0] sm:$0xff] %v5411
        %5480 = vst [vmem:[%s380 + $0x1e8] sm:$0xff] %v5413
        %5481 = vst [vmem:[%s380 + $0x1f0] sm:$0xff] %v5415
        %5482 = vst [vmem:[%s380 + $0x1f8] sm:$0xff] %v5417
        %s5483 = sand.u32 %s208, 1
        %s5484 = scalar_lea.sflag [#allocation4], %s5483
        %s5485 = sand.u32 %s208, 1
        %s5486 = smul.addr %s5485, 512
        %s5487 = scalar_lea.vmem [#allocation11], %s5486
        // Predicated region
        $region73: #{tpu_custom_call.1} parent=51 // pred_check
          %p5488 = pneg %p218
        $region74: #{tpu_custom_call.1} parent=51 // pred_check_branch
          %5490 = sbr.rel (%p5488) target = $region76
        $region75: #{tpu_custom_call.1} parent=51 // pred_region
          %s5491 = smul.u32 32, %s27
          %s5493 = ssub.s32 8192, 8192
          %5494 = vsyncadd %s5484, %s5493
          %s5495 = smul.addr %s5491, 2
          %s5496 = smul.addr %s5495, 128
          %s5497 = scalar_lea.hbm %s8, %s5496
          %s5498 = sshll.u32 %s5487, 4
          %s5499 = int_to_ptr.vmem [resolvable:$true] %s5498
          %5504 = dma.vmem_to_hbm [thread:$0]  %s5499, 8192, %s5497, %s5484, 256, 256, 16
        $region76: #{tpu_custom_call.1} parent=51 // pred_fallthru
          _
      $region52: #{tpu_custom_call.1} parent=5 // pred_fallthru
        _
      %p5505 = scmp.le.s32.totalorder 2, %s22
      // Predicated region
      $region77: #{tpu_custom_call.1} parent=5 // pred_check
        %p5506 = pneg %p5505
      $region78: #{tpu_custom_call.1} parent=5 // pred_check_branch
        %5508 = sbr.rel (%p5506) target = $region80
      $region79: #{tpu_custom_call.1} parent=5 // pred_region
        %s5509 = ssub.s32 %s22, 2
        // Predicated region
        $region81: #{tpu_custom_call.1} parent=79 // pred_check
          %p5510 = pneg %p224
        $region82: #{tpu_custom_call.1} parent=79 // pred_check_branch
          %5512 = sbr.rel (%p5510) target = $region84
        $region83: #{tpu_custom_call.1} parent=79 // pred_region
          %s5513 = sand.u32 %s209, 1
          %s5514 = scalar_lea.sflag [#allocation4], %s5513
          %s5515 = sand.u32 %s209, 1
          %s5516 = smul.addr %s5515, 512
          %s5517 = scalar_lea.vmem [#allocation11], %s5516
          %5518 = dma.done %s5514, 8192
        $region84: #{tpu_custom_call.1} parent=79 // pred_fallthru
          _
      $region80: #{tpu_custom_call.1} parent=5 // pred_fallthru
        _
    $region6: #{tpu_custom_call.1} parent=1 // loop_footer
      %s26 = sadd.s32 1, %s22
    $region7: #{tpu_custom_call.1} parent=1 // loop_footer_branch
      %21 = sbr.rel target = $region3
    $region8: #{tpu_custom_call.1} parent=1 // loop_exit
      _
    %5519 = vsyncpa [#allocation3], 1
    %s5520 = scalar_lea.sflag [#allocation3], 1
    %5521 = vsyncpa %s5520, 1
    %5522 = vsyncpa [#allocation6], 1
    %5523 = vsyncpa [#allocation9], 1
    %5524 = vsyncpa [#allocation4], 1
    %s5525 = scalar_lea.sflag [#allocation4], 1
    %5526 = vsyncpa %s5525, 1

</llo_original>
